<compile_context>
chip_gen: v7x
topology: tpu7x:2x2x1
jax: 0.10.0
libtpu: 0.0.40
codegen_flags: <defaults>
</compile_context>

<pallas_src>
import functools

import numpy as np
import jax
import jax.numpy as jnp
from jax.experimental import pallas as pl
from jax.experimental.pallas import tpu as pltpu


# ----------------------------------------------------------------------------
# Trace-time geometry & constant builders
# ----------------------------------------------------------------------------
def _round_up(x, m):
    return ((x + m - 1) // m) * m


def _pick_divisor(n, cap):
    cap = max(1, min(cap, n))
    for d in range(cap, 0, -1):
        if n % d == 0:
            return d
    return 1


def _geometry(H, W):
    HW = H * W                           # dense conv1 rows per image (row = h*W + w)
    Ho, Wo = H // 2, W // 2              # spatial dims after 2x2/2 maxpool
    PWo = Wo + 2                         # pooled width + 1 zero column each side
    C2ROWS = Ho * PWo                    # conv2 output rows per image (row = ho*PWo + wo)
    PROWS = _round_up((Ho + 3) * PWo, 8) # padded pooled rows per image (top/bottom zero rows)
    return HW, Ho, Wo, PWo, PROWS, C2ROWS


def _build_pool_selector(Ho, Wo, W, PWo, PROWS, HW):
    """One-hot matrix: stride-2 downsample of the (already max-reduced) conv1 map and
    re-zero-padding into the padded pooled layout used by conv2's shifted-window matmul."""
    sel = np.zeros((PROWS, HW), dtype=np.float32)
    for ho in range(Ho):
        for wo in range(Wo):
            sel[(ho + 1) * PWo + (wo + 1), (2 * ho) * W + 2 * wo] = 1.0
    return sel


def _build_fc1_permutation(Ho, Wo, PWo, C2):
    """Fold PyTorch's NCHW flatten into fc1_w's rows (zero rows kill the junk columns
    coming from the padded pooled-row layout)."""
    rows = Ho * PWo * C2
    perm = np.zeros((rows,), dtype=np.int32)
    mask = np.zeros((rows,), dtype=np.float32)
    for ho in range(Ho):
        for wo in range(PWo):
            for c in range(C2):
                dst = (ho * PWo + wo) * C2 + c
                if wo < Wo:
                    perm[dst] = c * Ho * Wo + ho * Wo + wo
                    mask[dst] = 1.0
    return perm, mask


# ----------------------------------------------------------------------------
# Kernel 1: conv1(3x3,p1)+ReLU -> MaxPool(2,2) -> conv2(3x3,p1)+ReLU
# ----------------------------------------------------------------------------
def _conv_block_kernel(xp_ref, w1_ref, b1_ref, sel_ref, w2_ref, b2_ref, o_ref,
                       y1_ref, p_ref, *, BB, HW, W, PWo, PROWS, C2ROWS):
    C1 = w1_ref.shape[1]
    M1 = BB * HW                       # conv1 rows for the whole batch tile
    PTOT = BB * PROWS                  # padded pooled rows for the whole batch tile
    PAD1 = y1_ref.shape[0] - M1
    PAD2 = p_ref.shape[0] - PTOT

    # conv1: one MXU matmul (taps packed into K = 9*Cin, batch folded into M) + ReLU.
    a1 = jnp.dot(xp_ref[...], w1_ref[...], preferred_element_type=jnp.float32)
    y1_ref[pl.ds(0, M1), :] = jnp.maximum(a1 + b1_ref[...], 0.0)
    # keep the over-read tail finite so the one-hot selection matmul cannot be NaN-poisoned
    y1_ref[pl.ds(M1, PAD1), :] = jnp.zeros((PAD1, C1), y1_ref.dtype)

    # 2x2 stride-2 max pool: elementwise max of four shifted views (no MXU work).
    cmax = jnp.maximum(
        jnp.maximum(y1_ref[pl.ds(0, M1), :], y1_ref[pl.ds(1, M1), :]),
        jnp.maximum(y1_ref[pl.ds(W, M1), :], y1_ref[pl.ds(W + 1, M1), :]),
    ).astype(jnp.bfloat16)

    # stride-2 downsample + re-zero-pad for conv2: ONE one-hot selection matmul per image.
    for b in range(BB):
        pooled = jnp.dot(sel_ref[...], cmax[b * HW:(b + 1) * HW, :],
                         preferred_element_type=jnp.float32)
        p_ref[pl.ds(b * PROWS, PROWS), :] = pooled
    p_ref[pl.ds(PTOT, PAD2), :] = jnp.zeros((PAD2, C1), p_ref.dtype)

    # conv2: pack the 9 taps into K = 9*C1 (lane-concat of shifted views) -> one matmul + ReLU.
    patches2 = jnp.concatenate(
        [p_ref[pl.ds(dy * PWo + dx, PTOT), :] for dy in range(3) for dx in range(3)],
        axis=1).astype(jnp.bfloat16)
    a2 = jnp.dot(patches2, w2_ref[...], preferred_element_type=jnp.float32)
    y2 = jnp.maximum(a2 + b2_ref[...], 0.0).astype(o_ref.dtype)

    # keep only the C2ROWS rows per image that feed the FC stack
    for b in range(BB):
        o_ref[pl.ds(b * C2ROWS, C2ROWS), :] = y2[b * PROWS:b * PROWS + C2ROWS, :]


def conv_block(x_nhwc, prep):
    B, H, W, Cin = x_nhwc.shape
    assert H % 2 == 0 and W % 2 == 0, "MaxPool2d(2,2) path assumes even H, W"
    HW, Ho, Wo, PWo, PROWS, C2ROWS = _geometry(H, W)
    KP, C1 = prep["w1"].shape
    C2 = prep["w2"].shape[1]

    # Host-side im2col for conv1 (taps packed into the contraction dim), bf16.
    xpad = jnp.pad(x_nhwc.astype(jnp.bfloat16), ((0, 0), (1, 1), (1, 1), (0, 0)))
    patches = jnp.concatenate(
        [xpad[:, dy:dy + H, dx:dx + W, :] for dy in range(3) for dx in range(3)], axis=-1)
    patches = patches.reshape(B * HW, KP)

    BB = _pick_divisor(B, min(8, max(1, B // 2)))          # >=2 grid steps when B > 1
    grid = (B // BB,)
    kernel = functools.partial(_conv_block_kernel, BB=BB, HW=HW, W=W,
                               PWo=PWo, PROWS=PROWS, C2ROWS=C2ROWS)
    return pl.pallas_call(
        kernel,
        out_shape=jax.ShapeDtypeStruct((B * C2ROWS, C2), jnp.bfloat16),
        grid=grid,
        in_specs=[
            pl.BlockSpec((BB * HW, KP), lambda i: (i, 0)),
            pl.BlockSpec((KP, C1), lambda i: (0, 0)),
            pl.BlockSpec((1, C1), lambda i: (0, 0)),
            pl.BlockSpec((PROWS, HW), lambda i: (0, 0)),
            pl.BlockSpec((9 * C1, C2), lambda i: (0, 0)),
            pl.BlockSpec((1, C2), lambda i: (0, 0)),
        ],
        out_specs=pl.BlockSpec((BB * C2ROWS, C2), lambda i: (i, 0)),
        scratch_shapes=[pltpu.VMEM((BB * HW + 24, C1), jnp.float32),
                        pltpu.VMEM((BB * PROWS + 24, C1), jnp.float32)],
        compiler_params=pltpu.CompilerParams(dimension_semantics=("parallel",)),
    )(patches, prep["w1"], prep["b1"], prep["sel"], prep["w2"], prep["b2"])


# ----------------------------------------------------------------------------
# Kernel 2: fc1 + act + fc2 + act + output layer (one fused kernel, weights resident)
# ----------------------------------------------------------------------------
def _activate(y, act):
    if act == "relu":
        return jnp.maximum(y, 0.0)
    if act == "tanh":
        return jnp.tanh(y)
    if act == "sigmoid":
        return jax.nn.sigmoid(y)
    raise ValueError(f"Activation function {act} not supported.")


def _fc_stack_kernel(x_ref, w1_ref, b1_ref, w2_ref, b2_ref, w3_ref, b3_ref,
                     o_ref, *, act):
    h = jnp.dot(x_ref[...], w1_ref[...], preferred_element_type=jnp.float32) + b1_ref[...]
    h = _activate(h, act)
    h = jnp.dot(h.astype(jnp.bfloat16), w2_ref[...],
                preferred_element_type=jnp.float32) + b2_ref[...]
    h = _activate(h, act)
    y = jnp.dot(h.astype(jnp.bfloat16), w3_ref[...],
                preferred_element_type=jnp.float32) + b3_ref[...]
    o_ref[...] = y.astype(o_ref.dtype)


def fc_stack(flat_bf16, w1, b1, w2, b2, w3, b3, act):
    B, K = flat_bf16.shape
    N1, N2, N3 = w1.shape[1], w2.shape[1], w3.shape[1]
    # >=2 "parallel" grid steps when possible (v7x: both TensorCores), <=512 rows per tile.
    BM = min(B, 512, _round_up(-(-B // 2), 8))
    grid = (pl.cdiv(B, BM),)
    kernel = functools.partial(_fc_stack_kernel, act=act)
    return pl.pallas_call(
        kernel,
        out_shape=jax.ShapeDtypeStruct((B, N3), jnp.float32),
        grid=grid,
        in_specs=[
            pl.BlockSpec((BM, K), lambda m: (m, 0)),
            pl.BlockSpec((K, N1), lambda m: (0, 0)),
            pl.BlockSpec((1, N1), lambda m: (0, 0)),
            pl.BlockSpec((N1, N2), lambda m: (0, 0)),
            pl.BlockSpec((1, N2), lambda m: (0, 0)),
            pl.BlockSpec((N2, N3), lambda m: (0, 0)),
            pl.BlockSpec((1, N3), lambda m: (0, 0)),
        ],
        out_specs=pl.BlockSpec((BM, N3), lambda m: (m, 0)),
        compiler_params=pltpu.CompilerParams(dimension_semantics=("parallel",)),
    )(flat_bf16, w1, b1, w2, b2, w3, b3)


# ----------------------------------------------------------------------------
# Parameter preparation (done ONCE, outside the per-call forward)
# ----------------------------------------------------------------------------
def init_params(key, num_outputs, flat_features):
    ks = jax.random.split(key, 10)
    scale = 0.05
    return {
        "conv1_w": scale * jax.random.normal(ks[0], (3, 3, 4, 16), jnp.float32),
        "conv1_b": scale * jax.random.normal(ks[1], (16,), jnp.float32),
        "conv2_w": scale * jax.random.normal(ks[2], (3, 3, 16, 32), jnp.float32),
        "conv2_b": scale * jax.random.normal(ks[3], (32,), jnp.float32),
        "fc1_w": scale * jax.random.normal(ks[4], (flat_features, 128), jnp.float32),
        "fc1_b": scale * jax.random.normal(ks[5], (128,), jnp.float32),
        "fc2_w": scale * jax.random.normal(ks[6], (128, 128), jnp.float32),
        "fc2_b": scale * jax.random.normal(ks[7], (128,), jnp.float32),
        "out_w": scale * jax.random.normal(ks[8], (128, num_outputs), jnp.float32),
        "out_b": scale * jax.random.normal(ks[9], (num_outputs,), jnp.float32),
    }


def prepare_params(params, H, W):
    """One-time fold/cast of weights: tap packing, pool selector, fc1 flatten permutation."""
    HW, Ho, Wo, PWo, PROWS, C2ROWS = _geometry(H, W)
    Cin, C1 = params["conv1_w"].shape[2], params["conv1_w"].shape[3]
    C2 = params["conv2_w"].shape[3]
    assert params["fc1_w"].shape[0] == C2 * Ho * Wo
    perm, mask = _build_fc1_permutation(Ho, Wo, PWo, C2)
    w1p = params["fc1_w"][jnp.asarray(perm)] * jnp.asarray(mask)[:, None]
    return {
        "w1": params["conv1_w"].reshape(9 * Cin, C1).astype(jnp.bfloat16),
        "b1": params["conv1_b"].reshape(1, C1).astype(jnp.float32),
        "sel": jnp.asarray(_build_pool_selector(Ho, Wo, W, PWo, PROWS, HW), jnp.bfloat16),
        "w2": params["conv2_w"].reshape(9 * C1, C2).astype(jnp.bfloat16),
        "b2": params["conv2_b"].reshape(1, C2).astype(jnp.float32),
        "fc1_w": w1p.astype(jnp.bfloat16),
        "fc1_b": params["fc1_b"].reshape(1, -1).astype(jnp.float32),
        "fc2_w": params["fc2_w"].astype(jnp.bfloat16),
        "fc2_b": params["fc2_b"].reshape(1, -1).astype(jnp.float32),
        "out_w": params["out_w"].astype(jnp.bfloat16),
        "out_b": params["out_b"].reshape(1, -1).astype(jnp.float32),
    }


def custom_cnn_forward(x_nhwc, prep, activation="relu"):
    B, H, W, _ = x_nhwc.shape
    _, _, _, _, _, C2ROWS = _geometry(H, W)
    C2 = prep["w2"].shape[1]
    y2 = conv_block(x_nhwc, prep)                 # (B*C2ROWS, C2) bf16
    flat = y2.reshape(B, C2ROWS * C2)             # free row-major regroup, no transpose
    return fc_stack(flat, prep["fc1_w"], prep["fc1_b"],
                    prep["fc2_w"], prep["fc2_b"],
                    prep["out_w"], prep["out_b"], activation)


# ----------------------------------------------------------------------------
# Pure-JAX reference (f32, HIGHEST precision)
# ----------------------------------------------------------------------------
def reference_forward(x_nhwc, params, activation="relu"):
    hp = jax.lax.Precision.HIGHEST
    x = jnp.transpose(x_nhwc.astype(jnp.float32), (0, 3, 1, 2))     # NCHW

    def conv(inp, w_hwio, b):
        w_oihw = jnp.transpose(w_hwio, (3, 2, 0, 1))
        y = jax.lax.conv_general_dilated(
            inp, w_oihw, window_strides=(1, 1), padding=((1, 1), (1, 1)),
            dimension_numbers=("NCHW", "OIHW", "NCHW"), precision=hp)
        return y + b[None, :, None, None]

    y = jnp.maximum(conv(x, params["conv1_w"], params["conv1_b"]), 0.0)
    y = jax.lax.reduce_window(y, -jnp.inf, jax.lax.max,
                              (1, 1, 2, 2), (1, 1, 2, 2), "VALID")
    y = jnp.maximum(conv(y, params["conv2_w"], params["conv2_b"]), 0.0)
    flat = y.reshape(y.shape[0], -1)

    def act(h):
        return {"relu": jax.nn.relu, "tanh": jnp.tanh,
                "sigmoid": jax.nn.sigmoid}[activation](h)

    h = act(jnp.dot(flat, params["fc1_w"], precision=hp) + params["fc1_b"])
    h = act(jnp.dot(h, params["fc2_w"], precision=hp) + params["fc2_b"])
    return jnp.dot(h, params["out_w"], precision=hp) + params["out_b"]


if __name__ == "__main__":
    B, H, W, C = 2, 16, 16, 4
    num_outputs = 8
    flat_features = 32 * (H // 2) * (W // 2)   # conv output: 32 x 8 x 8 = 2048

    key = jax.random.PRNGKey(0)
    k_in, k_par = jax.random.split(key)
    x = jax.random.normal(k_in, (B, H, W, C), dtype=jnp.float32)   # NHWC obs
    params = init_params(k_par, num_outputs, flat_features)

    prep = prepare_params(params, H, W)        # one-time weight fold (hoisted out of forward)
    fwd = jax.jit(functools.partial(custom_cnn_forward, activation="relu"))
    out = fwd(x, prep)
    jax.block_until_ready(out)
    assert out.shape == (B, num_outputs), out.shape

    ref = reference_forward(x, params)
    np.testing.assert_allclose(np.asarray(out), np.asarray(ref),
                               rtol=1e-1, atol=2e-2)
    print("KERNEL_OK")
</pallas_src>

<mosaic_0001>
module attributes {stable_mosaic.version = 11 : i64} {
  func.func @_conv_block_kernel(%arg0: i32, %arg1: memref<256x36xbf16, #tpu.memory_space<vmem>>, %arg2: memref<36x16xbf16, #tpu.memory_space<vmem>>, %arg3: memref<1x16xf32, #tpu.memory_space<vmem>>, %arg4: memref<112x256xbf16, #tpu.memory_space<vmem>>, %arg5: memref<144x32xbf16, #tpu.memory_space<vmem>>, %arg6: memref<1x32xf32, #tpu.memory_space<vmem>>, %arg7: memref<80x32xbf16, #tpu.memory_space<vmem>>, %arg8: memref<280x16xf32, #tpu.memory_space<vmem>>, %arg9: memref<136x16xf32, #tpu.memory_space<vmem>>) attributes {dimension_semantics = [#tpu.dimension_semantics<parallel>], iteration_bounds = array<i64: 2>, scalar_prefetch = 0 : i64, scratch_operands = 2 : i64, tpu.core_type = #tpu.core_type<tc>, window_params = [{transform_indices = @transform_0, window_bounds = array<i64: 256, 36>}, {pipeline_mode = #tpu.pipeline_mode<synchronous>, transform_indices = @transform_1, window_bounds = array<i64: 36, 16>}, {pipeline_mode = #tpu.pipeline_mode<synchronous>, transform_indices = @transform_2, window_bounds = array<i64: 1, 16>}, {pipeline_mode = #tpu.pipeline_mode<synchronous>, transform_indices = @transform_3, window_bounds = array<i64: 112, 256>}, {pipeline_mode = #tpu.pipeline_mode<synchronous>, transform_indices = @transform_4, window_bounds = array<i64: 144, 32>}, {pipeline_mode = #tpu.pipeline_mode<synchronous>, transform_indices = @transform_5, window_bounds = array<i64: 1, 32>}, {transform_indices = @transform_6, window_bounds = array<i64: 80, 32>}]} {
    %c0 = arith.constant 0 : index
    %c0_0 = arith.constant 0 : index
    %0 = vector.load %arg1[%c0, %c0_0] : memref<256x36xbf16, #tpu.memory_space<vmem>>, vector<256x36xbf16>
    %c0_1 = arith.constant 0 : index
    %c0_2 = arith.constant 0 : index
    %1 = vector.load %arg2[%c0_1, %c0_2] : memref<36x16xbf16, #tpu.memory_space<vmem>>, vector<36x16xbf16>
    %cst = arith.constant dense<0.000000e+00> : vector<256x16xf32>
    %2 = tpu.matmul %0, %1, %cst {dimension_numbers = #tpu.dot_dimension_numbers<[1], [0], [0], [1], [0, 0, 1, 1], [], []>} : vector<256x36xbf16>, vector<36x16xbf16>, vector<256x16xf32> -> vector<256x16xf32>
    %c0_3 = arith.constant 0 : index
    %c0_4 = arith.constant 0 : index
    %3 = vector.load %arg3[%c0_3, %c0_4] : memref<1x16xf32, #tpu.memory_space<vmem>>, vector<1x16xf32>
    %4 = vector.broadcast %3 : vector<1x16xf32> to vector<256x16xf32>
    %5 = arith.addf %2, %4 : vector<256x16xf32>
    %cst_5 = arith.constant 0.000000e+00 : f32
    %6 = vector.broadcast %cst_5 : f32 to vector<256x16xf32>
    %7 = arith.maximumf %5, %6 : vector<256x16xf32>
    %c0_6 = arith.constant 0 : index
    %c0_7 = arith.constant 0 : index
    %8 = vector.load %arg8[%c0_6, %c0_7] : memref<280x16xf32, #tpu.memory_space<vmem>>, vector<256x16xf32>
    tpu.vector_store %arg8[%c0_6, %c0_7], %7 {strides = array<i32>} : memref<280x16xf32, #tpu.memory_space<vmem>>, vector<256x16xf32>,
    %cst_8 = arith.constant 0.000000e+00 : f32
    %9 = vector.broadcast %cst_8 : f32 to vector<24x16xf32>
    %c256 = arith.constant 256 : index
    %c0_9 = arith.constant 0 : index
    %10 = vector.load %arg8[%c256, %c0_9] : memref<280x16xf32, #tpu.memory_space<vmem>>, vector<24x16xf32>
    tpu.vector_store %arg8[%c256, %c0_9], %9 {strides = array<i32>} : memref<280x16xf32, #tpu.memory_space<vmem>>, vector<24x16xf32>,
    %c0_10 = arith.constant 0 : index
    %c0_11 = arith.constant 0 : index
    %11 = vector.load %arg8[%c0_10, %c0_11] : memref<280x16xf32, #tpu.memory_space<vmem>>, vector<256x16xf32>
    %c1 = arith.constant 1 : index
    %c0_12 = arith.constant 0 : index
    %12 = vector.load %arg8[%c1, %c0_12] : memref<280x16xf32, #tpu.memory_space<vmem>>, vector<256x16xf32>
    %13 = arith.maximumf %11, %12 : vector<256x16xf32>
    %c16 = arith.constant 16 : index
    %c0_13 = arith.constant 0 : index
    %14 = vector.load %arg8[%c16, %c0_13] : memref<280x16xf32, #tpu.memory_space<vmem>>, vector<256x16xf32>
    %c17 = arith.constant 17 : index
    %c0_14 = arith.constant 0 : index
    %15 = vector.load %arg8[%c17, %c0_14] : memref<280x16xf32, #tpu.memory_space<vmem>>, vector<256x16xf32>
    %16 = arith.maximumf %14, %15 : vector<256x16xf32>
    %17 = arith.maximumf %13, %16 : vector<256x16xf32>
    %18 = arith.truncf %17 : vector<256x16xf32> to vector<256x16xbf16>
    %c0_15 = arith.constant 0 : index
    %c0_16 = arith.constant 0 : index
    %19 = vector.load %arg4[%c0_15, %c0_16] : memref<112x256xbf16, #tpu.memory_space<vmem>>, vector<112x256xbf16>
    %cst_17 = arith.constant dense<0.000000e+00> : vector<112x16xf32>
    %20 = tpu.matmul %19, %18, %cst_17 {dimension_numbers = #tpu.dot_dimension_numbers<[1], [0], [0], [1], [0, 0, 1, 1], [], []>} : vector<112x256xbf16>, vector<256x16xbf16>, vector<112x16xf32> -> vector<112x16xf32>
    %c0_18 = arith.constant 0 : index
    %c0_19 = arith.constant 0 : index
    %21 = vector.load %arg9[%c0_18, %c0_19] : memref<136x16xf32, #tpu.memory_space<vmem>>, vector<112x16xf32>
    tpu.vector_store %arg9[%c0_18, %c0_19], %20 {strides = array<i32>} : memref<136x16xf32, #tpu.memory_space<vmem>>, vector<112x16xf32>,
    %cst_20 = arith.constant 0.000000e+00 : f32
    %22 = vector.broadcast %cst_20 : f32 to vector<24x16xf32>
    %c112 = arith.constant 112 : index
    %c0_21 = arith.constant 0 : index
    %23 = vector.load %arg9[%c112, %c0_21] : memref<136x16xf32, #tpu.memory_space<vmem>>, vector<24x16xf32>
    tpu.vector_store %arg9[%c112, %c0_21], %22 {strides = array<i32>} : memref<136x16xf32, #tpu.memory_space<vmem>>, vector<24x16xf32>,
    %c0_22 = arith.constant 0 : index
    %c0_23 = arith.constant 0 : index
    %24 = vector.load %arg9[%c0_22, %c0_23] : memref<136x16xf32, #tpu.memory_space<vmem>>, vector<112x16xf32>
    %c1_24 = arith.constant 1 : index
    %c0_25 = arith.constant 0 : index
    %25 = vector.load %arg9[%c1_24, %c0_25] : memref<136x16xf32, #tpu.memory_space<vmem>>, vector<112x16xf32>
    %c2 = arith.constant 2 : index
    %c0_26 = arith.constant 0 : index
    %26 = vector.load %arg9[%c2, %c0_26] : memref<136x16xf32, #tpu.memory_space<vmem>>, vector<112x16xf32>
    %c10 = arith.constant 10 : index
    %c0_27 = arith.constant 0 : index
    %27 = vector.load %arg9[%c10, %c0_27] : memref<136x16xf32, #tpu.memory_space<vmem>>, vector<112x16xf32>
    %c11 = arith.constant 11 : index
    %c0_28 = arith.constant 0 : index
    %28 = vector.load %arg9[%c11, %c0_28] : memref<136x16xf32, #tpu.memory_space<vmem>>, vector<112x16xf32>
    %c12 = arith.constant 12 : index
    %c0_29 = arith.constant 0 : index
    %29 = vector.load %arg9[%c12, %c0_29] : memref<136x16xf32, #tpu.memory_space<vmem>>, vector<112x16xf32>
    %c20 = arith.constant 20 : index
    %c0_30 = arith.constant 0 : index
    %30 = vector.load %arg9[%c20, %c0_30] : memref<136x16xf32, #tpu.memory_space<vmem>>, vector<112x16xf32>
    %c21 = arith.constant 21 : index
    %c0_31 = arith.constant 0 : index
    %31 = vector.load %arg9[%c21, %c0_31] : memref<136x16xf32, #tpu.memory_space<vmem>>, vector<112x16xf32>
    %c22 = arith.constant 22 : index
    %c0_32 = arith.constant 0 : index
    %32 = vector.load %arg9[%c22, %c0_32] : memref<136x16xf32, #tpu.memory_space<vmem>>, vector<112x16xf32>
    %33 = tpu.concatenate %24, %25, %26, %27, %28, %29, %30, %31, %32 in 1 : vector<112x16xf32>, vector<112x16xf32>, vector<112x16xf32>, vector<112x16xf32>, vector<112x16xf32>, vector<112x16xf32>, vector<112x16xf32>, vector<112x16xf32>, vector<112x16xf32> -> vector<112x144xf32>
    %34 = arith.truncf %33 : vector<112x144xf32> to vector<112x144xbf16>
    %c0_33 = arith.constant 0 : index
    %c0_34 = arith.constant 0 : index
    %35 = vector.load %arg5[%c0_33, %c0_34] : memref<144x32xbf16, #tpu.memory_space<vmem>>, vector<144x32xbf16>
    %cst_35 = arith.constant dense<0.000000e+00> : vector<112x32xf32>
    %36 = tpu.matmul %34, %35, %cst_35 {dimension_numbers = #tpu.dot_dimension_numbers<[1], [0], [0], [1], [0, 0, 1, 1], [], []>} : vector<112x144xbf16>, vector<144x32xbf16>, vector<112x32xf32> -> vector<112x32xf32>
    %c0_36 = arith.constant 0 : index
    %c0_37 = arith.constant 0 : index
    %37 = vector.load %arg6[%c0_36, %c0_37] : memref<1x32xf32, #tpu.memory_space<vmem>>, vector<1x32xf32>
    %38 = vector.broadcast %37 : vector<1x32xf32> to vector<112x32xf32>
    %39 = arith.addf %36, %38 : vector<112x32xf32>
    %cst_38 = arith.constant 0.000000e+00 : f32
    %40 = vector.broadcast %cst_38 : f32 to vector<112x32xf32>
    %41 = arith.maximumf %39, %40 : vector<112x32xf32>
    %42 = arith.truncf %41 : vector<112x32xf32> to vector<112x32xbf16>
    %43 = vector.extract_strided_slice %42 {offsets = [0, 0], sizes = [80, 32], strides = [1, 1]} : vector<112x32xbf16> to vector<80x32xbf16>
    %c0_39 = arith.constant 0 : index
    %c0_40 = arith.constant 0 : index
    %44 = vector.load %arg7[%c0_39, %c0_40] : memref<80x32xbf16, #tpu.memory_space<vmem>>, vector<80x32xbf16>
    tpu.vector_store %arg7[%c0_39, %c0_40], %43 {strides = array<i32>} : memref<80x32xbf16, #tpu.memory_space<vmem>>, vector<80x32xbf16>,
    return
  }
  func.func @transform_0(%arg0: i32) -> (i32, i32) {
    %c0_i32 = arith.constant 0 : i32
    %c0_i32_0 = arith.constant 0 : i32
    return %arg0, %c0_i32 : i32, i32
  }
  func.func @transform_1(%arg0: i32) -> (i32, i32) {
    %c0_i32 = arith.constant 0 : i32
    %c0_i32_0 = arith.constant 0 : i32
    %c0_i32_1 = arith.constant 0 : i32
    return %c0_i32, %c0_i32_0 : i32, i32
  }
  func.func @transform_2(%arg0: i32) -> (i32, i32) {
    %c0_i32 = arith.constant 0 : i32
    %c0_i32_0 = arith.constant 0 : i32
    %c0_i32_1 = arith.constant 0 : i32
    return %c0_i32, %c0_i32_0 : i32, i32
  }
  func.func @transform_3(%arg0: i32) -> (i32, i32) {
    %c0_i32 = arith.constant 0 : i32
    %c0_i32_0 = arith.constant 0 : i32
    %c0_i32_1 = arith.constant 0 : i32
    return %c0_i32, %c0_i32_0 : i32, i32
  }
  func.func @transform_4(%arg0: i32) -> (i32, i32) {
    %c0_i32 = arith.constant 0 : i32
    %c0_i32_0 = arith.constant 0 : i32
    %c0_i32_1 = arith.constant 0 : i32
    return %c0_i32, %c0_i32_0 : i32, i32
  }
  func.func @transform_5(%arg0: i32) -> (i32, i32) {
    %c0_i32 = arith.constant 0 : i32
    %c0_i32_0 = arith.constant 0 : i32
    %c0_i32_1 = arith.constant 0 : i32
    return %c0_i32, %c0_i32_0 : i32, i32
  }
  func.func @transform_6(%arg0: i32) -> (i32, i32) {
    %c0_i32 = arith.constant 0 : i32
    %c0_i32_0 = arith.constant 0 : i32
    return %arg0, %c0_i32 : i32, i32
  }
}

module attributes {stable_mosaic.version = 11 : i64} {
  func.func @_fc_stack_kernel(%arg0: i32, %arg1: memref<2x2560xbf16, #tpu.memory_space<vmem>>, %arg2: memref<2560x128xbf16, #tpu.memory_space<vmem>>, %arg3: memref<1x128xf32, #tpu.memory_space<vmem>>, %arg4: memref<128x128xbf16, #tpu.memory_space<vmem>>, %arg5: memref<1x128xf32, #tpu.memory_space<vmem>>, %arg6: memref<128x8xbf16, #tpu.memory_space<vmem>>, %arg7: memref<1x8xf32, #tpu.memory_space<vmem>>, %arg8: memref<2x8xf32, #tpu.memory_space<vmem>>) attributes {dimension_semantics = [#tpu.dimension_semantics<parallel>], iteration_bounds = array<i64: 1>, scalar_prefetch = 0 : i64, scratch_operands = 0 : i64, tpu.core_type = #tpu.core_type<tc>, window_params = [{transform_indices = @transform_0, window_bounds = array<i64: 2, 2560>}, {pipeline_mode = #tpu.pipeline_mode<synchronous>, transform_indices = @transform_1, window_bounds = array<i64: 2560, 128>}, {pipeline_mode = #tpu.pipeline_mode<synchronous>, transform_indices = @transform_2, window_bounds = array<i64: 1, 128>}, {pipeline_mode = #tpu.pipeline_mode<synchronous>, transform_indices = @transform_3, window_bounds = array<i64: 128, 128>}, {pipeline_mode = #tpu.pipeline_mode<synchronous>, transform_indices = @transform_4, window_bounds = array<i64: 1, 128>}, {pipeline_mode = #tpu.pipeline_mode<synchronous>, transform_indices = @transform_5, window_bounds = array<i64: 128, 8>}, {pipeline_mode = #tpu.pipeline_mode<synchronous>, transform_indices = @transform_6, window_bounds = array<i64: 1, 8>}, {transform_indices = @transform_7, window_bounds = array<i64: 2, 8>}]} {
    %c0 = arith.constant 0 : index
    %c0_0 = arith.constant 0 : index
    %0 = vector.load %arg1[%c0, %c0_0] : memref<2x2560xbf16, #tpu.memory_space<vmem>>, vector<2x2560xbf16>
    %c0_1 = arith.constant 0 : index
    %c0_2 = arith.constant 0 : index
    %1 = vector.load %arg2[%c0_1, %c0_2] : memref<2560x128xbf16, #tpu.memory_space<vmem>>, vector<2560x128xbf16>
    %cst = arith.constant dense<0.000000e+00> : vector<2x128xf32>
    %2 = tpu.matmul %0, %1, %cst {dimension_numbers = #tpu.dot_dimension_numbers<[1], [0], [0], [1], [0, 0, 1, 1], [], []>} : vector<2x2560xbf16>, vector<2560x128xbf16>, vector<2x128xf32> -> vector<2x128xf32>
    %c0_3 = arith.constant 0 : index
    %c0_4 = arith.constant 0 : index
    %3 = vector.load %arg3[%c0_3, %c0_4] : memref<1x128xf32, #tpu.memory_space<vmem>>, vector<1x128xf32>
    %4 = vector.broadcast %3 : vector<1x128xf32> to vector<2x128xf32>
    %5 = arith.addf %2, %4 : vector<2x128xf32>
    %cst_5 = arith.constant 0.000000e+00 : f32
    %6 = vector.broadcast %cst_5 : f32 to vector<2x128xf32>
    %7 = arith.maximumf %5, %6 : vector<2x128xf32>
    %8 = arith.truncf %7 : vector<2x128xf32> to vector<2x128xbf16>
    %c0_6 = arith.constant 0 : index
    %c0_7 = arith.constant 0 : index
    %9 = vector.load %arg4[%c0_6, %c0_7] : memref<128x128xbf16, #tpu.memory_space<vmem>>, vector<128x128xbf16>
    %cst_8 = arith.constant dense<0.000000e+00> : vector<2x128xf32>
    %10 = tpu.matmul %8, %9, %cst_8 {dimension_numbers = #tpu.dot_dimension_numbers<[1], [0], [0], [1], [0, 0, 1, 1], [], []>} : vector<2x128xbf16>, vector<128x128xbf16>, vector<2x128xf32> -> vector<2x128xf32>
    %c0_9 = arith.constant 0 : index
    %c0_10 = arith.constant 0 : index
    %11 = vector.load %arg5[%c0_9, %c0_10] : memref<1x128xf32, #tpu.memory_space<vmem>>, vector<1x128xf32>
    %12 = vector.broadcast %11 : vector<1x128xf32> to vector<2x128xf32>
    %13 = arith.addf %10, %12 : vector<2x128xf32>
    %cst_11 = arith.constant 0.000000e+00 : f32
    %14 = vector.broadcast %cst_11 : f32 to vector<2x128xf32>
    %15 = arith.maximumf %13, %14 : vector<2x128xf32>
    %16 = arith.truncf %15 : vector<2x128xf32> to vector<2x128xbf16>
    %c0_12 = arith.constant 0 : index
    %c0_13 = arith.constant 0 : index
    %17 = vector.load %arg6[%c0_12, %c0_13] : memref<128x8xbf16, #tpu.memory_space<vmem>>, vector<128x8xbf16>
    %cst_14 = arith.constant dense<0.000000e+00> : vector<2x8xf32>
    %18 = tpu.matmul %16, %17, %cst_14 {dimension_numbers = #tpu.dot_dimension_numbers<[1], [0], [0], [1], [0, 0, 1, 1], [], []>} : vector<2x128xbf16>, vector<128x8xbf16>, vector<2x8xf32> -> vector<2x8xf32>
    %c0_15 = arith.constant 0 : index
    %c0_16 = arith.constant 0 : index
    %19 = vector.load %arg7[%c0_15, %c0_16] : memref<1x8xf32, #tpu.memory_space<vmem>>, vector<1x8xf32>
    %20 = vector.broadcast %19 : vector<1x8xf32> to vector<2x8xf32>
    %21 = arith.addf %18, %20 : vector<2x8xf32>
    %c0_17 = arith.constant 0 : index
    %c0_18 = arith.constant 0 : index
    %22 = vector.load %arg8[%c0_17, %c0_18] : memref<2x8xf32, #tpu.memory_space<vmem>>, vector<2x8xf32>
    tpu.vector_store %arg8[%c0_17, %c0_18], %21 {strides = array<i32>} : memref<2x8xf32, #tpu.memory_space<vmem>>, vector<2x8xf32>,
    return
  }
  func.func @transform_0(%arg0: i32) -> (i32, i32) {
    %c0_i32 = arith.constant 0 : i32
    %c0_i32_0 = arith.constant 0 : i32
    return %arg0, %c0_i32 : i32, i32
  }
  func.func @transform_1(%arg0: i32) -> (i32, i32) {
    %c0_i32 = arith.constant 0 : i32
    %c0_i32_0 = arith.constant 0 : i32
    %c0_i32_1 = arith.constant 0 : i32
    return %c0_i32, %c0_i32_0 : i32, i32
  }
  func.func @transform_2(%arg0: i32) -> (i32, i32) {
    %c0_i32 = arith.constant 0 : i32
    %c0_i32_0 = arith.constant 0 : i32
    %c0_i32_1 = arith.constant 0 : i32
    return %c0_i32, %c0_i32_0 : i32, i32
  }
  func.func @transform_3(%arg0: i32) -> (i32, i32) {
    %c0_i32 = arith.constant 0 : i32
    %c0_i32_0 = arith.constant 0 : i32
    %c0_i32_1 = arith.constant 0 : i32
    return %c0_i32, %c0_i32_0 : i32, i32
  }
  func.func @transform_4(%arg0: i32) -> (i32, i32) {
    %c0_i32 = arith.constant 0 : i32
    %c0_i32_0 = arith.constant 0 : i32
    %c0_i32_1 = arith.constant 0 : i32
    return %c0_i32, %c0_i32_0 : i32, i32
  }
  func.func @transform_5(%arg0: i32) -> (i32, i32) {
    %c0_i32 = arith.constant 0 : i32
    %c0_i32_0 = arith.constant 0 : i32
    %c0_i32_1 = arith.constant 0 : i32
    return %c0_i32, %c0_i32_0 : i32, i32
  }
  func.func @transform_6(%arg0: i32) -> (i32, i32) {
    %c0_i32 = arith.constant 0 : i32
    %c0_i32_0 = arith.constant 0 : i32
    %c0_i32_1 = arith.constant 0 : i32
    return %c0_i32, %c0_i32_0 : i32, i32
  }
  func.func @transform_7(%arg0: i32) -> (i32, i32) {
    %c0_i32 = arith.constant 0 : i32
    %c0_i32_0 = arith.constant 0 : i32
    return %arg0, %c0_i32 : i32, i32
  }
}

</mosaic_0001>

<llo_original>
// kernel: custom_cnn_forward.2
$region0: #{custom_cnn_forward.2}
  #allocation0 [shape = 'u32[]', space=smem, size = 0x4, offset = 0x4, fixed_abs, tag = 'smem constant byte address 0x4 - core index']
  #allocation1 [shape = 'u32[144,128]{1,0:T(1,128)}', space=vmem, size = 0x12000, scoped, tag = 'internal scratch']
  #allocation2 [shape = 'f32[280,16]{1,0:T(8,128)}', space=vmem, size = 0x23000, scoped, tag = 'scratch operand']
  #allocation3 [shape = 'f32[136,16]{1,0:T(8,128)}', space=vmem, size = 0x11000, scoped, tag = 'scratch operand']
  %s0 = inlined_call_operand.vmem [shape: bf16[512,36], index: 0, kind: input, shape index: {}]
  %s1 = inlined_call_operand.vmem [shape: bf16[36,16], index: 1, kind: input, shape index: {}]
  %s2 = inlined_call_operand.vmem [shape: f32[1,16], index: 2, kind: input, shape index: {}]
  %s3 = inlined_call_operand.vmem [shape: bf16[112,256], index: 3, kind: input, shape index: {}]
  %s4 = inlined_call_operand.vmem [shape: bf16[144,32], index: 4, kind: input, shape index: {}]
  %s5 = inlined_call_operand.vmem [shape: f32[1,32], index: 5, kind: input, shape index: {}]
  %s6 = inlined_call_operand.vmem [shape: bf16[160,32], index: 6, kind: output, shape index: {}]
  %s7 = sld [smem:[#allocation0]]
  $region57: #{custom_cnn_forward.2} parent=0
    _
  %s9 = ssub.s32 1, %s7
  %s10 = scalar_select 0, %s9, %s7
  loop: start=0, step=1, limit=4
  $region2: #{custom_cnn_forward.2} parent=0 // loop_pre_header
    _
  $region3: #{custom_cnn_forward.2} parent=0 // loop_header
    %s12 = sphi 0, %s16
    %p13 = scmp.ge.s32.totalorder %s12, 4
    %s22 = sphi 0, %s24
    %s25 = sphi 0, %s22
    %s26 = sphi 0, %s25
    %s42 = sphi 0, %s26
    %s46 = sphi 0, %s46
    %s48 = sphi 0, %s46
    %s49 = sphi 0, %s48
    %s63 = sphi 0, %s49
    %s67 = sphi 0, %s67
    %s69 = sphi 0, %s67
    %s70 = sphi 0, %s69
    %s84 = sphi 0, %s70
    %s88 = sphi 0, %s88
    %s90 = sphi 0, %s88
    %s91 = sphi 0, %s90
    %s105 = sphi 0, %s91
    %s109 = sphi 0, %s109
    %s111 = sphi 0, %s109
    %s112 = sphi 0, %s111
    %s126 = sphi 0, %s112
    %s130 = sphi 0, %s130
    %s132 = sphi 0, %s130
    %s133 = sphi 0, %s132
    %s147 = sphi 0, %s133
    %s153 = sphi 0, %s155
    %s156 = sphi 0, %s153
    %s157 = sphi 0, %s156
    %s173 = sphi 0, %s157
  $region4: #{custom_cnn_forward.2} parent=0 // loop_header_branch
    %15 = sbr.rel (%p13) target = $region8
  $region5: #{custom_cnn_forward.2} parent=0 // loop_body
    %s17 = ssub.s32 %s12, 1
    %s18 = ssub.s32 %s12, 2
    %s19 = sadd.s32 %s12, 1
    %s20 = ssub.s32 %s12, %s19
    %p21 = scmp.eq.s32.totalorder %s20, 0
    %s23 = sadd.s32 %s22, 1
    %s24 = scalar_select %p21, %s22, %s23
    %p27 = pneg %p21
    %p28 = scmp.eq.s32.totalorder %s12, 1
    %p29 = por %p27, %p28
    %p30 = scmp.ne.s32.totalorder %s22, %s25
    %p31 = scmp.eq.s32.totalorder %s12, 0
    %p32 = por %p30, %p31
    %p33 = scmp.ne.s32.totalorder %s22, %s25
    %p34 = scmp.eq.s32.totalorder %s17, 1
    %p35 = por %p33, %p34
    %p36 = scmp.ne.s32.totalorder %s25, %s26
    %p37 = scmp.eq.s32.totalorder %s17, 0
    %p38 = por %p36, %p37
    %p39 = scmp.ne.s32.totalorder %s25, %s26
    %p40 = scmp.eq.s32.totalorder %s18, 1
    %p41 = por %p39, %p40
    %p43 = scmp.ne.s32.totalorder %s26, %s42
    %p44 = scmp.eq.s32.totalorder %s18, 0
    %p45 = por %p43, %p44
    %s47 = sadd.s32 %s46, 1
    %p50 = scmp.eq.s32.totalorder %s12, 1
    %p51 = scmp.ne.s32.totalorder %s46, %s48
    %p52 = scmp.eq.s32.totalorder %s12, 0
    %p53 = por %p51, %p52
    %p54 = scmp.ne.s32.totalorder %s46, %s48
    %p55 = scmp.eq.s32.totalorder %s17, 1
    %p56 = por %p54, %p55
    %p57 = scmp.ne.s32.totalorder %s48, %s49
    %p58 = scmp.eq.s32.totalorder %s17, 0
    %p59 = por %p57, %p58
    %p60 = scmp.ne.s32.totalorder %s48, %s49
    %p61 = scmp.eq.s32.totalorder %s18, 1
    %p62 = por %p60, %p61
    %p64 = scmp.ne.s32.totalorder %s49, %s63
    %p65 = scmp.eq.s32.totalorder %s18, 0
    %p66 = por %p64, %p65
    %s68 = sadd.s32 %s67, 1
    %p71 = scmp.eq.s32.totalorder %s12, 1
    %p72 = scmp.ne.s32.totalorder %s67, %s69
    %p73 = scmp.eq.s32.totalorder %s12, 0
    %p74 = por %p72, %p73
    %p75 = scmp.ne.s32.totalorder %s67, %s69
    %p76 = scmp.eq.s32.totalorder %s17, 1
    %p77 = por %p75, %p76
    %p78 = scmp.ne.s32.totalorder %s69, %s70
    %p79 = scmp.eq.s32.totalorder %s17, 0
    %p80 = por %p78, %p79
    %p81 = scmp.ne.s32.totalorder %s69, %s70
    %p82 = scmp.eq.s32.totalorder %s18, 1
    %p83 = por %p81, %p82
    %p85 = scmp.ne.s32.totalorder %s70, %s84
    %p86 = scmp.eq.s32.totalorder %s18, 0
    %p87 = por %p85, %p86
    %s89 = sadd.s32 %s88, 1
    %p92 = scmp.eq.s32.totalorder %s12, 1
    %p93 = scmp.ne.s32.totalorder %s88, %s90
    %p94 = scmp.eq.s32.totalorder %s12, 0
    %p95 = por %p93, %p94
    %p96 = scmp.ne.s32.totalorder %s88, %s90
    %p97 = scmp.eq.s32.totalorder %s17, 1
    %p98 = por %p96, %p97
    %p99 = scmp.ne.s32.totalorder %s90, %s91
    %p100 = scmp.eq.s32.totalorder %s17, 0
    %p101 = por %p99, %p100
    %p102 = scmp.ne.s32.totalorder %s90, %s91
    %p103 = scmp.eq.s32.totalorder %s18, 1
    %p104 = por %p102, %p103
    %p106 = scmp.ne.s32.totalorder %s91, %s105
    %p107 = scmp.eq.s32.totalorder %s18, 0
    %p108 = por %p106, %p107
    %s110 = sadd.s32 %s109, 1
    %p113 = scmp.eq.s32.totalorder %s12, 1
    %p114 = scmp.ne.s32.totalorder %s109, %s111
    %p115 = scmp.eq.s32.totalorder %s12, 0
    %p116 = por %p114, %p115
    %p117 = scmp.ne.s32.totalorder %s109, %s111
    %p118 = scmp.eq.s32.totalorder %s17, 1
    %p119 = por %p117, %p118
    %p120 = scmp.ne.s32.totalorder %s111, %s112
    %p121 = scmp.eq.s32.totalorder %s17, 0
    %p122 = por %p120, %p121
    %p123 = scmp.ne.s32.totalorder %s111, %s112
    %p124 = scmp.eq.s32.totalorder %s18, 1
    %p125 = por %p123, %p124
    %p127 = scmp.ne.s32.totalorder %s112, %s126
    %p128 = scmp.eq.s32.totalorder %s18, 0
    %p129 = por %p127, %p128
    %s131 = sadd.s32 %s130, 1
    %p134 = scmp.eq.s32.totalorder %s12, 1
    %p135 = scmp.ne.s32.totalorder %s130, %s132
    %p136 = scmp.eq.s32.totalorder %s12, 0
    %p137 = por %p135, %p136
    %p138 = scmp.ne.s32.totalorder %s130, %s132
    %p139 = scmp.eq.s32.totalorder %s17, 1
    %p140 = por %p138, %p139
    %p141 = scmp.ne.s32.totalorder %s132, %s133
    %p142 = scmp.eq.s32.totalorder %s17, 0
    %p143 = por %p141, %p142
    %p144 = scmp.ne.s32.totalorder %s132, %s133
    %p145 = scmp.eq.s32.totalorder %s18, 1
    %p146 = por %p144, %p145
    %p148 = scmp.ne.s32.totalorder %s133, %s147
    %p149 = scmp.eq.s32.totalorder %s18, 0
    %p150 = por %p148, %p149
    %s151 = ssub.s32 %s12, %s19
    %p152 = scmp.eq.s32.totalorder %s151, 0
    %s154 = sadd.s32 %s153, 1
    %s155 = scalar_select %p152, %s153, %s154
    %p158 = pneg %p152
    %p159 = scmp.eq.s32.totalorder %s12, 1
    %p160 = por %p158, %p159
    %p161 = scmp.ne.s32.totalorder %s153, %s156
    %p162 = scmp.eq.s32.totalorder %s12, 0
    %p163 = por %p161, %p162
    %p164 = scmp.ne.s32.totalorder %s153, %s156
    %p165 = scmp.eq.s32.totalorder %s17, 1
    %p166 = por %p164, %p165
    %p167 = scmp.ne.s32.totalorder %s156, %s157
    %p168 = scmp.eq.s32.totalorder %s17, 0
    %p169 = por %p167, %p168
    %p170 = scmp.ne.s32.totalorder %s156, %s157
    %p171 = scmp.eq.s32.totalorder %s18, 1
    %p172 = por %p170, %p171
    %p174 = scmp.ne.s32.totalorder %s157, %s173
    %p175 = scmp.eq.s32.totalorder %s18, 0
    %p176 = por %p174, %p175
    %p177 = scmp.le.s32.totalorder 1, %s12
    %p178 = scmp.lt.s32.totalorder %s12, 3
    %p179 = pnand %p177, %p178
    %p180 = pneg %p179
    // Predicated region
    $region9: #{custom_cnn_forward.2} parent=5 // pred_check
      _
    $region10: #{custom_cnn_forward.2} parent=5 // pred_check_branch
      %182 = sbr.rel (%p179) target = $region12
    $region11: #{custom_cnn_forward.2} parent=5 // pred_region
      %s183 = ssub.s32 %s12, 1
      // Predicated region
      $region13: #{custom_cnn_forward.2} parent=11 // pred_check
        %p184 = pneg %p59
      $region14: #{custom_cnn_forward.2} parent=11 // pred_check_branch
        %186 = sbr.rel (%p184) target = $region16
      $region15: #{custom_cnn_forward.2} parent=11 // pred_region
        _
      $region16: #{custom_cnn_forward.2} parent=11 // pred_fallthru
        _
      // Predicated region
      $region17: #{custom_cnn_forward.2} parent=11 // pred_check
        %p187 = pneg %p80
      $region18: #{custom_cnn_forward.2} parent=11 // pred_check_branch
        %189 = sbr.rel (%p187) target = $region20
      $region19: #{custom_cnn_forward.2} parent=11 // pred_region
        _
      $region20: #{custom_cnn_forward.2} parent=11 // pred_fallthru
        _
      // Predicated region
      $region21: #{custom_cnn_forward.2} parent=11 // pred_check
        %p190 = pneg %p101
      $region22: #{custom_cnn_forward.2} parent=11 // pred_check_branch
        %192 = sbr.rel (%p190) target = $region24
      $region23: #{custom_cnn_forward.2} parent=11 // pred_region
        _
      $region24: #{custom_cnn_forward.2} parent=11 // pred_fallthru
        _
      // Predicated region
      $region25: #{custom_cnn_forward.2} parent=11 // pred_check
        %p193 = pneg %p122
      $region26: #{custom_cnn_forward.2} parent=11 // pred_check_branch
        %195 = sbr.rel (%p193) target = $region28
      $region27: #{custom_cnn_forward.2} parent=11 // pred_region
        _
      $region28: #{custom_cnn_forward.2} parent=11 // pred_fallthru
        _
      // Predicated region
      $region29: #{custom_cnn_forward.2} parent=11 // pred_check
        %p196 = pneg %p143
      $region30: #{custom_cnn_forward.2} parent=11 // pred_check_branch
        %198 = sbr.rel (%p196) target = $region32
      $region31: #{custom_cnn_forward.2} parent=11 // pred_region
        _
      $region32: #{custom_cnn_forward.2} parent=11 // pred_fallthru
        _
    $region12: #{custom_cnn_forward.2} parent=5 // pred_fallthru
      _
    %p199 = scmp.lt.s32.totalorder %s12, 2
    // Predicated region
    $region33: #{custom_cnn_forward.2} parent=5 // pred_check
      %p200 = pneg %p199
    $region34: #{custom_cnn_forward.2} parent=5 // pred_check_branch
      %202 = sbr.rel (%p200) target = $region36
    $region35: #{custom_cnn_forward.2} parent=5 // pred_region
      // Predicated region
      $region37: #{custom_cnn_forward.2} parent=35 // pred_check
        %p203 = pneg %p32
      $region38: #{custom_cnn_forward.2} parent=35 // pred_check_branch
        %205 = sbr.rel (%p203) target = $region40
      $region39: #{custom_cnn_forward.2} parent=35 // pred_region
        %s206 = smul.u32 32, %s12
        %p207 = scmp.lt.s32.totalorder %s206, 63
        %s208 = scalar_select %p207, %s206, 63
        %s209 = smul.addr %s208, 4
        %s210 = scalar_lea.vmem %s0, %s209
        %s211 = smul.u32 32, %s12
      $region40: #{custom_cnn_forward.2} parent=35 // pred_fallthru
        _
    $region36: #{custom_cnn_forward.2} parent=5 // pred_fallthru
      _
    %p212 = scmp.le.s32.totalorder 1, %s12
    %p213 = scmp.lt.s32.totalorder %s12, 3
    %p214 = pnand %p212, %p213
    %p215 = pneg %p214
    // Predicated region
    $region41: #{custom_cnn_forward.2} parent=5 // pred_check
      _
    $region42: #{custom_cnn_forward.2} parent=5 // pred_check_branch
      %217 = sbr.rel (%p214) target = $region44
    $region43: #{custom_cnn_forward.2} parent=5 // pred_region
      %s218 = ssub.s32 %s12, 1
      %s219 = smul.u32 32, %s17
      %p220 = scmp.lt.s32.totalorder %s219, 63
      %s221 = scalar_select %p220, %s219, 63
      %s222 = smul.addr %s221, 4
      %s223 = scalar_lea.vmem %s0, %s222
      %p224 = pneg %p38
      %p225 = pneg %p35
      %p226 = pneg %p59
      %p227 = pneg %p56
      %p228 = pneg %p80
      %p229 = pneg %p77
      %p230 = pneg %p101
      %p231 = pneg %p98
      %p232 = pneg %p122
      %p233 = pneg %p119
      %p234 = pneg %p143
      %p235 = pneg %p140
      %p236 = pneg %p169
      %p237 = pneg %p166
      %s238 = smul.u32 10, %s17
      %p239 = scmp.lt.s32.totalorder %s238, 19
      %s240 = scalar_select %p239, %s238, 19
      %s241 = smul.addr %s240, 4
      %s242 = scalar_lea.vmem %s6, %s241
      %s243 = smul.u32 32, %s17
      %p244 = scmp.lt.s32.totalorder %s243, 63
      %s245 = scalar_select %p244, %s243, 63
      %s246 = smul.addr %s245, 4
      %s247 = scalar_lea.vmem %s0, %s246
      %s248 = smul.u32 32, %s17
      %s249 = smul.u32 10, %s17
      %p250 = scmp.lt.s32.totalorder %s249, 19
      %s251 = scalar_select %p250, %s249, 19
      %s252 = smul.addr %s251, 4
      %s253 = scalar_lea.vmem %s6, %s252
      %s254 = smul.u32 10, %s17
      %v256 = vld [vmem:[%s247] sm:$0xf]
      %v257 = vld [vmem:[%s247 + $0x4] sm:$0xf]
      %v258 = vld [vmem:[%s247 + $0x8] sm:$0xf]
      %v259 = vld [vmem:[%s247 + $0xc] sm:$0xf]
      %v260 = vld [vmem:[%s247 + $0x10] sm:$0xf]
      %v261 = vld [vmem:[%s247 + $0x14] sm:$0xf]
      %v262 = vld [vmem:[%s247 + $0x18] sm:$0xf]
      %v263 = vld [vmem:[%s247 + $0x1c] sm:$0xf]
      %v264 = vld [vmem:[%s247 + $0x20] sm:$0xf]
      %v265 = vld [vmem:[%s247 + $0x24] sm:$0xf]
      %v266 = vld [vmem:[%s247 + $0x28] sm:$0xf]
      %v267 = vld [vmem:[%s247 + $0x2c] sm:$0xf]
      %v268 = vld [vmem:[%s247 + $0x30] sm:$0xf]
      %v269 = vld [vmem:[%s247 + $0x34] sm:$0xf]
      %v270 = vld [vmem:[%s247 + $0x38] sm:$0xf]
      %v271 = vld [vmem:[%s247 + $0x3c] sm:$0xf]
      %v272 = vld [vmem:[%s247 + $0x40] sm:$0xf]
      %v273 = vld [vmem:[%s247 + $0x44] sm:$0xf]
      %v274 = vld [vmem:[%s247 + $0x48] sm:$0xf]
      %v275 = vld [vmem:[%s247 + $0x4c] sm:$0xf]
      %v276 = vld [vmem:[%s247 + $0x50] sm:$0xf]
      %v277 = vld [vmem:[%s247 + $0x54] sm:$0xf]
      %v278 = vld [vmem:[%s247 + $0x58] sm:$0xf]
      %v279 = vld [vmem:[%s247 + $0x5c] sm:$0xf]
      %v280 = vld [vmem:[%s247 + $0x60] sm:$0xf]
      %v281 = vld [vmem:[%s247 + $0x64] sm:$0xf]
      %v282 = vld [vmem:[%s247 + $0x68] sm:$0xf]
      %v283 = vld [vmem:[%s247 + $0x6c] sm:$0xf]
      %v284 = vld [vmem:[%s247 + $0x70] sm:$0xf]
      %v285 = vld [vmem:[%s247 + $0x74] sm:$0xf]
      %v286 = vld [vmem:[%s247 + $0x78] sm:$0xf]
      %v287 = vld [vmem:[%s247 + $0x7c] sm:$0xf]
      %v288 = vld [vmem:[%s1] sm:$0xf]
      %v289 = vld [vmem:[%s1 + $0x4] sm:$0xf]
      %v290 = vld [vmem:[%s1 + $0x8] sm:$0xf]
      %v291 = vld [vmem:[%s1 + $0xc] sm:$0xf]
      %v292 = vld [vmem:[%s1 + $0x10] sm:$0x3]
      %v293 = vld [vmem:[%s2] sm:$0x1]
      %v295 = vlaneseq
      %v296 = vshrl.u32 %v295, 7
      %v297 = vsub.s32 0, %v296
      %v298 = vrot.slane %v293, %v297
      %v332 = vunpack.c.l.b16 %v256
      %v333 = vunpack.c.l.b16 %v257
      %v334 = vunpack.c.l.b16 %v258
      %v335 = vunpack.c.l.b16 %v259
      %v336 = vunpack.c.l.b16 %v260
      %v337 = vunpack.c.l.b16 %v261
      %v338 = vunpack.c.l.b16 %v262
      %v339 = vunpack.c.l.b16 %v263
      %v340 = vunpack.c.l.b16 %v264
      %v341 = vunpack.c.l.b16 %v265
      %v342 = vunpack.c.l.b16 %v266
      %v343 = vunpack.c.l.b16 %v267
      %v344 = vunpack.c.l.b16 %v268
      %v345 = vunpack.c.l.b16 %v269
      %v346 = vunpack.c.l.b16 %v270
      %v347 = vunpack.c.l.b16 %v271
      %v348 = vunpack.c.l.b16 %v272
      %v349 = vunpack.c.l.b16 %v273
      %v350 = vunpack.c.l.b16 %v274
      %v351 = vunpack.c.l.b16 %v275
      %v352 = vunpack.c.l.b16 %v276
      %v353 = vunpack.c.l.b16 %v277
      %v354 = vunpack.c.l.b16 %v278
      %v355 = vunpack.c.l.b16 %v279
      %v356 = vunpack.c.l.b16 %v280
      %v357 = vunpack.c.l.b16 %v281
      %v358 = vunpack.c.l.b16 %v282
      %v359 = vunpack.c.l.b16 %v283
      %v360 = vunpack.c.l.b16 %v284
      %v361 = vunpack.c.l.b16 %v285
      %v362 = vunpack.c.l.b16 %v286
      %v363 = vunpack.c.l.b16 %v287
      %v364 = vpack.c.b16 %v333, %v332
      %v365 = vpack.c.b16 %v335, %v334
      %v366 = vpack.c.b16 %v337, %v336
      %v367 = vpack.c.b16 %v339, %v338
      %v368 = vpack.c.b16 %v341, %v340
      %v369 = vpack.c.b16 %v343, %v342
      %v370 = vpack.c.b16 %v345, %v344
      %v371 = vpack.c.b16 %v347, %v346
      %v372 = vpack.c.b16 %v349, %v348
      %v373 = vpack.c.b16 %v351, %v350
      %v374 = vpack.c.b16 %v353, %v352
      %v375 = vpack.c.b16 %v355, %v354
      %v376 = vpack.c.b16 %v357, %v356
      %v377 = vpack.c.b16 %v359, %v358
      %v378 = vpack.c.b16 %v361, %v360
      %v379 = vpack.c.b16 %v363, %v362
      %v385 = vunpack.c.l.b16 %v288
      %v386 = vunpack.c.l.b16 %v289
      %v387 = vunpack.c.l.b16 %v290
      %v388 = vunpack.c.l.b16 %v291
      %v389 = vunpack.c.l.b16 %v292
      %v390 = vpack.c.b16 %v386, %v385
      %v391 = vpack.c.b16 %v388, %v387
      %v392 = vpack.c.b16 %v389, %v389
      %vm395 = vcmask 293888
      %v397 = vsel %vm395, %v364, 0
      %v400 = vsel %vm395, %v365, 0
      %v403 = vsel %vm395, %v366, 0
      %v406 = vsel %vm395, %v367, 0
      %v409 = vsel %vm395, %v368, 0
      %v412 = vsel %vm395, %v369, 0
      %v415 = vsel %vm395, %v370, 0
      %v418 = vsel %vm395, %v371, 0
      %v421 = vsel %vm395, %v372, 0
      %v424 = vsel %vm395, %v373, 0
      %v427 = vsel %vm395, %v374, 0
      %v430 = vsel %vm395, %v375, 0
      %v433 = vsel %vm395, %v376, 0
      %v436 = vsel %vm395, %v377, 0
      %v439 = vsel %vm395, %v378, 0
      %v442 = vsel %vm395, %v379, 0
      %vm444 = vcmask 1041408
      %v446 = vsel %vm444, %v392, 0
      %448 = vmatprep.subr.bf16.mxu0 0
      %449 = vmatpush1.bf16.msra.mxu0 %v390
      %450 = vmatprep.subr.bf16.mxu0 0
      %451 = vmatpush1.bf16.msra.mxu0 %v391
      %452 = vmatprep.subr.bf16.mxu0 0
      %453 = vmatpush1.bf16.msra.mxu0 %v446
      %454 = vmatprep.subr.bf16.mxu0 0
      %455 = vmatpush1.bf16.msra.mxu0 0
      %456 = vmatprep.subr.bf16.mxu0 0
      %457 = vmatpush1.bf16.msra.mxu0 0
      %458 = vmatprep.subr.bf16.mxu0 0
      %459 = vmatpush1.bf16.msra.mxu0 0
      %460 = vmatprep.subr.bf16.mxu0 0
      %461 = vmatpush1.bf16.msra.mxu0 0
      %462 = vmatprep.subr.bf16.mxu0 0
      %463 = vmatpush1.bf16.msra.mxu0 0
      %464 = vmatprep.subr.bf16.mxu0 0
      %465 = vmatpush1.bf16.msra.mxu0 0
      %466 = vmatprep.subr.bf16.mxu0 0
      %467 = vmatpush1.bf16.msra.mxu0 0
      %468 = vmatprep.subr.bf16.mxu0 0
      %469 = vmatpush1.bf16.msra.mxu0 0
      %470 = vmatprep.subr.bf16.mxu0 0
      %471 = vmatpush1.bf16.msra.mxu0 0
      %472 = vmatprep.subr.bf16.mxu0 0
      %473 = vmatpush1.bf16.msra.mxu0 0
      %474 = vmatprep.subr.bf16.mxu0 0
      %475 = vmatpush1.bf16.msra.mxu0 0
      %476 = vmatprep.subr.bf16.mxu0 0
      %477 = vmatpush1.bf16.msra.mxu0 0
      %478 = vmatprep.subr.bf16.mxu0 0
      %479 = vmatpush1.bf16.msra.mxu0 0
      %480 = vmatprep.mubr.bf16.mxu0 0
      %481 = vmatmul.mubr.bf16.gmra.mrb[0].mxu0 %v397
      %v482 = vpop.f32.mrb[0].mxu0
      %v483 = vadd.f32 %v298, %v482
      %v484 = vpop.f32.mrb[0].mxu0
      %v485 = vpop.f32.mrb[0].mxu0
      %v486 = vadd.f32 %v298, %v485
      %v487 = vpop.f32.mrb[0].mxu0
      %488 = vmatprep.mubr.bf16.mxu0 0
      %489 = vmatmul.mubr.bf16.gmra.mrb[0].mxu0 %v400
      %v490 = vpop.f32.mrb[0].mxu0
      %v491 = vadd.f32 %v298, %v490
      %v492 = vpop.f32.mrb[0].mxu0
      %v493 = vpop.f32.mrb[0].mxu0
      %v494 = vadd.f32 %v298, %v493
      %v495 = vpop.f32.mrb[0].mxu0
      %496 = vmatprep.mubr.bf16.mxu0 0
      %497 = vmatmul.mubr.bf16.gmra.mrb[0].mxu0 %v403
      %v498 = vpop.f32.mrb[0].mxu0
      %v499 = vadd.f32 %v298, %v498
      %v500 = vpop.f32.mrb[0].mxu0
      %v501 = vpop.f32.mrb[0].mxu0
      %v502 = vadd.f32 %v298, %v501
      %v503 = vpop.f32.mrb[0].mxu0
      %504 = vmatprep.mubr.bf16.mxu0 0
      %505 = vmatmul.mubr.bf16.gmra.mrb[0].mxu0 %v406
      %v506 = vpop.f32.mrb[0].mxu0
      %v507 = vadd.f32 %v298, %v506
      %v508 = vpop.f32.mrb[0].mxu0
      %v509 = vpop.f32.mrb[0].mxu0
      %v510 = vadd.f32 %v298, %v509
      %v511 = vpop.f32.mrb[0].mxu0
      %512 = vmatprep.mubr.bf16.mxu0 0
      %513 = vmatmul.mubr.bf16.gmra.mrb[0].mxu0 %v409
      %v514 = vpop.f32.mrb[0].mxu0
      %v515 = vadd.f32 %v298, %v514
      %v516 = vpop.f32.mrb[0].mxu0
      %v517 = vpop.f32.mrb[0].mxu0
      %v518 = vadd.f32 %v298, %v517
      %v519 = vpop.f32.mrb[0].mxu0
      %520 = vmatprep.mubr.bf16.mxu0 0
      %521 = vmatmul.mubr.bf16.gmra.mrb[0].mxu0 %v412
      %v522 = vpop.f32.mrb[0].mxu0
      %v523 = vadd.f32 %v298, %v522
      %v524 = vpop.f32.mrb[0].mxu0
      %v525 = vpop.f32.mrb[0].mxu0
      %v526 = vadd.f32 %v298, %v525
      %v527 = vpop.f32.mrb[0].mxu0
      %528 = vmatprep.mubr.bf16.mxu0 0
      %529 = vmatmul.mubr.bf16.gmra.mrb[0].mxu0 %v415
      %v530 = vpop.f32.mrb[0].mxu0
      %v531 = vadd.f32 %v298, %v530
      %v532 = vpop.f32.mrb[0].mxu0
      %v533 = vpop.f32.mrb[0].mxu0
      %v534 = vadd.f32 %v298, %v533
      %v535 = vpop.f32.mrb[0].mxu0
      %536 = vmatprep.mubr.bf16.mxu0 0
      %537 = vmatmul.mubr.bf16.gmra.mrb[0].mxu0 %v418
      %v538 = vpop.f32.mrb[0].mxu0
      %v539 = vadd.f32 %v298, %v538
      %v540 = vpop.f32.mrb[0].mxu0
      %v541 = vpop.f32.mrb[0].mxu0
      %v542 = vadd.f32 %v298, %v541
      %v543 = vpop.f32.mrb[0].mxu0
      %544 = vmatprep.mubr.bf16.mxu0 0
      %545 = vmatmul.mubr.bf16.gmra.mrb[0].mxu0 %v421
      %v546 = vpop.f32.mrb[0].mxu0
      %v547 = vadd.f32 %v298, %v546
      %v548 = vpop.f32.mrb[0].mxu0
      %v549 = vpop.f32.mrb[0].mxu0
      %v550 = vadd.f32 %v298, %v549
      %v551 = vpop.f32.mrb[0].mxu0
      %552 = vmatprep.mubr.bf16.mxu0 0
      %553 = vmatmul.mubr.bf16.gmra.mrb[0].mxu0 %v424
      %v554 = vpop.f32.mrb[0].mxu0
      %v555 = vadd.f32 %v298, %v554
      %v556 = vpop.f32.mrb[0].mxu0
      %v557 = vpop.f32.mrb[0].mxu0
      %v558 = vadd.f32 %v298, %v557
      %v559 = vpop.f32.mrb[0].mxu0
      %560 = vmatprep.mubr.bf16.mxu0 0
      %561 = vmatmul.mubr.bf16.gmra.mrb[0].mxu0 %v427
      %v562 = vpop.f32.mrb[0].mxu0
      %v563 = vadd.f32 %v298, %v562
      %v564 = vpop.f32.mrb[0].mxu0
      %v565 = vpop.f32.mrb[0].mxu0
      %v566 = vadd.f32 %v298, %v565
      %v567 = vpop.f32.mrb[0].mxu0
      %568 = vmatprep.mubr.bf16.mxu0 0
      %569 = vmatmul.mubr.bf16.gmra.mrb[0].mxu0 %v430
      %v570 = vpop.f32.mrb[0].mxu0
      %v571 = vadd.f32 %v298, %v570
      %v572 = vpop.f32.mrb[0].mxu0
      %v573 = vpop.f32.mrb[0].mxu0
      %v574 = vadd.f32 %v298, %v573
      %v575 = vpop.f32.mrb[0].mxu0
      %576 = vmatprep.mubr.bf16.mxu0 0
      %577 = vmatmul.mubr.bf16.gmra.mrb[0].mxu0 %v433
      %v578 = vpop.f32.mrb[0].mxu0
      %v579 = vadd.f32 %v298, %v578
      %v580 = vpop.f32.mrb[0].mxu0
      %v581 = vpop.f32.mrb[0].mxu0
      %v582 = vadd.f32 %v298, %v581
      %v583 = vpop.f32.mrb[0].mxu0
      %584 = vmatprep.mubr.bf16.mxu0 0
      %585 = vmatmul.mubr.bf16.gmra.mrb[0].mxu0 %v436
      %v586 = vpop.f32.mrb[0].mxu0
      %v587 = vadd.f32 %v298, %v586
      %v588 = vpop.f32.mrb[0].mxu0
      %v589 = vpop.f32.mrb[0].mxu0
      %v590 = vadd.f32 %v298, %v589
      %v591 = vpop.f32.mrb[0].mxu0
      %592 = vmatprep.mubr.bf16.mxu0 0
      %593 = vmatmul.mubr.bf16.gmra.mrb[0].mxu0 %v439
      %v594 = vpop.f32.mrb[0].mxu0
      %v595 = vadd.f32 %v298, %v594
      %v596 = vpop.f32.mrb[0].mxu0
      %v597 = vpop.f32.mrb[0].mxu0
      %v598 = vadd.f32 %v298, %v597
      %v599 = vpop.f32.mrb[0].mxu0
      %600 = vmatprep.mubr.bf16.mxu0 0
      %601 = vmatmul.mubr.bf16.gmra.mrb[0].mxu0 %v442
      %v602 = vpop.f32.mrb[0].mxu0
      %v603 = vadd.f32 %v298, %v602
      %v604 = vpop.f32.mrb[0].mxu0
      %v605 = vpop.f32.mrb[0].mxu0
      %v606 = vadd.f32 %v298, %v605
      %v607 = vpop.f32.mrb[0].mxu0
      %608 = vdwg.mxu0
      %v609 = vmax.f32 %v483, 0.0
      %v610 = vmax.f32 %v486, 0.0
      %v611 = vmax.f32 %v491, 0.0
      %v612 = vmax.f32 %v494, 0.0
      %v613 = vmax.f32 %v499, 0.0
      %v614 = vmax.f32 %v502, 0.0
      %v615 = vmax.f32 %v507, 0.0
      %v616 = vmax.f32 %v510, 0.0
      %v617 = vmax.f32 %v515, 0.0
      %v618 = vmax.f32 %v518, 0.0
      %v619 = vmax.f32 %v523, 0.0
      %v620 = vmax.f32 %v526, 0.0
      %v621 = vmax.f32 %v531, 0.0
      %v622 = vmax.f32 %v534, 0.0
      %v623 = vmax.f32 %v539, 0.0
      %v624 = vmax.f32 %v542, 0.0
      %v625 = vmax.f32 %v547, 0.0
      %v626 = vmax.f32 %v550, 0.0
      %v627 = vmax.f32 %v555, 0.0
      %v628 = vmax.f32 %v558, 0.0
      %v629 = vmax.f32 %v563, 0.0
      %v630 = vmax.f32 %v566, 0.0
      %v631 = vmax.f32 %v571, 0.0
      %v632 = vmax.f32 %v574, 0.0
      %v633 = vmax.f32 %v579, 0.0
      %v634 = vmax.f32 %v582, 0.0
      %v635 = vmax.f32 %v587, 0.0
      %v636 = vmax.f32 %v590, 0.0
      %v637 = vmax.f32 %v595, 0.0
      %v638 = vmax.f32 %v598, 0.0
      %v639 = vmax.f32 %v603, 0.0
      %v640 = vmax.f32 %v606, 0.0
      %vm641 = vcmask 130048
      %642 = vst.msk [vmem:[#allocation2] sm:$0xff] %vm641, %v609
      %643 = vst.msk [vmem:[#allocation2 + $0x8] sm:$0xff] %vm641, %v610
      %644 = vst.msk [vmem:[#allocation2 + $0x10] sm:$0xff] %vm641, %v611
      %645 = vst.msk [vmem:[#allocation2 + $0x18] sm:$0xff] %vm641, %v612
      %646 = vst.msk [vmem:[#allocation2 + $0x20] sm:$0xff] %vm641, %v613
      %647 = vst.msk [vmem:[#allocation2 + $0x28] sm:$0xff] %vm641, %v614
      %648 = vst.msk [vmem:[#allocation2 + $0x30] sm:$0xff] %vm641, %v615
      %649 = vst.msk [vmem:[#allocation2 + $0x38] sm:$0xff] %vm641, %v616
      %650 = vst.msk [vmem:[#allocation2 + $0x40] sm:$0xff] %vm641, %v617
      %651 = vst.msk [vmem:[#allocation2 + $0x48] sm:$0xff] %vm641, %v618
      %652 = vst.msk [vmem:[#allocation2 + $0x50] sm:$0xff] %vm641, %v619
      %653 = vst.msk [vmem:[#allocation2 + $0x58] sm:$0xff] %vm641, %v620
      %654 = vst.msk [vmem:[#allocation2 + $0x60] sm:$0xff] %vm641, %v621
      %655 = vst.msk [vmem:[#allocation2 + $0x68] sm:$0xff] %vm641, %v622
      %656 = vst.msk [vmem:[#allocation2 + $0x70] sm:$0xff] %vm641, %v623
      %657 = vst.msk [vmem:[#allocation2 + $0x78] sm:$0xff] %vm641, %v624
      %658 = vst.msk [vmem:[#allocation2 + $0x80] sm:$0xff] %vm641, %v625
      %659 = vst.msk [vmem:[#allocation2 + $0x88] sm:$0xff] %vm641, %v626
      %660 = vst.msk [vmem:[#allocation2 + $0x90] sm:$0xff] %vm641, %v627
      %661 = vst.msk [vmem:[#allocation2 + $0x98] sm:$0xff] %vm641, %v628
      %662 = vst.msk [vmem:[#allocation2 + $0xa0] sm:$0xff] %vm641, %v629
      %663 = vst.msk [vmem:[#allocation2 + $0xa8] sm:$0xff] %vm641, %v630
      %664 = vst.msk [vmem:[#allocation2 + $0xb0] sm:$0xff] %vm641, %v631
      %665 = vst.msk [vmem:[#allocation2 + $0xb8] sm:$0xff] %vm641, %v632
      %666 = vst.msk [vmem:[#allocation2 + $0xc0] sm:$0xff] %vm641, %v633
      %667 = vst.msk [vmem:[#allocation2 + $0xc8] sm:$0xff] %vm641, %v634
      %668 = vst.msk [vmem:[#allocation2 + $0xd0] sm:$0xff] %vm641, %v635
      %669 = vst.msk [vmem:[#allocation2 + $0xd8] sm:$0xff] %vm641, %v636
      %670 = vst.msk [vmem:[#allocation2 + $0xe0] sm:$0xff] %vm641, %v637
      %671 = vst.msk [vmem:[#allocation2 + $0xe8] sm:$0xff] %vm641, %v638
      %672 = vst.msk [vmem:[#allocation2 + $0xf0] sm:$0xff] %vm641, %v639
      %673 = vst.msk [vmem:[#allocation2 + $0xf8] sm:$0xff] %vm641, %v640
      %674 = vst.msk [vmem:[#allocation2 + $0x100] sm:$0xff] %vm641, 0.0
      %675 = vst.msk [vmem:[#allocation2 + $0x108] sm:$0xff] %vm641, 0.0
      %676 = vst.msk [vmem:[#allocation2 + $0x110] sm:$0xff] %vm641, 0.0
      %v677 = vld [vmem:[#allocation2] sm:$0xff]
      %v678 = vld [vmem:[#allocation2 + $0x8] sm:$0xff]
      %v679 = vld [vmem:[#allocation2 + $0x10] sm:$0xff]
      %v680 = vld [vmem:[#allocation2 + $0x18] sm:$0xff]
      %v681 = vld [vmem:[#allocation2 + $0x20] sm:$0xff]
      %v682 = vld [vmem:[#allocation2 + $0x28] sm:$0xff]
      %v683 = vld [vmem:[#allocation2 + $0x30] sm:$0xff]
      %v684 = vld [vmem:[#allocation2 + $0x38] sm:$0xff]
      %v685 = vld [vmem:[#allocation2 + $0x40] sm:$0xff]
      %v686 = vld [vmem:[#allocation2 + $0x48] sm:$0xff]
      %v687 = vld [vmem:[#allocation2 + $0x50] sm:$0xff]
      %v688 = vld [vmem:[#allocation2 + $0x58] sm:$0xff]
      %v689 = vld [vmem:[#allocation2 + $0x60] sm:$0xff]
      %v690 = vld [vmem:[#allocation2 + $0x68] sm:$0xff]
      %v691 = vld [vmem:[#allocation2 + $0x70] sm:$0xff]
      %v692 = vld [vmem:[#allocation2 + $0x78] sm:$0xff]
      %v693 = vld [vmem:[#allocation2 + $0x80] sm:$0xff]
      %v694 = vld [vmem:[#allocation2 + $0x88] sm:$0xff]
      %v695 = vld [vmem:[#allocation2 + $0x90] sm:$0xff]
      %v696 = vld [vmem:[#allocation2 + $0x98] sm:$0xff]
      %v697 = vld [vmem:[#allocation2 + $0xa0] sm:$0xff]
      %v698 = vld [vmem:[#allocation2 + $0xa8] sm:$0xff]
      %v699 = vld [vmem:[#allocation2 + $0xb0] sm:$0xff]
      %v700 = vld [vmem:[#allocation2 + $0xb8] sm:$0xff]
      %v701 = vld [vmem:[#allocation2 + $0xc0] sm:$0xff]
      %v702 = vld [vmem:[#allocation2 + $0xc8] sm:$0xff]
      %v703 = vld [vmem:[#allocation2 + $0xd0] sm:$0xff]
      %v704 = vld [vmem:[#allocation2 + $0xd8] sm:$0xff]
      %v705 = vld [vmem:[#allocation2 + $0xe0] sm:$0xff]
      %v706 = vld [vmem:[#allocation2 + $0xe8] sm:$0xff]
      %v707 = vld [vmem:[#allocation2 + $0xf0] sm:$0xff]
      %v708 = vld [vmem:[#allocation2 + $0xf8] sm:$0xff]
      %v709 = vld [vmem:[#allocation2 + $0x1] sm:$0xff]
      %v710 = vld [vmem:[#allocation2 + $0x9] sm:$0xff]
      %v711 = vld [vmem:[#allocation2 + $0x11] sm:$0xff]
      %v712 = vld [vmem:[#allocation2 + $0x19] sm:$0xff]
      %v713 = vld [vmem:[#allocation2 + $0x21] sm:$0xff]
      %v714 = vld [vmem:[#allocation2 + $0x29] sm:$0xff]
      %v715 = vld [vmem:[#allocation2 + $0x31] sm:$0xff]
      %v716 = vld [vmem:[#allocation2 + $0x39] sm:$0xff]
      %v717 = vld [vmem:[#allocation2 + $0x41] sm:$0xff]
      %v718 = vld [vmem:[#allocation2 + $0x49] sm:$0xff]
      %v719 = vld [vmem:[#allocation2 + $0x51] sm:$0xff]
      %v720 = vld [vmem:[#allocation2 + $0x59] sm:$0xff]
      %v721 = vld [vmem:[#allocation2 + $0x61] sm:$0xff]
      %v722 = vld [vmem:[#allocation2 + $0x69] sm:$0xff]
      %v723 = vld [vmem:[#allocation2 + $0x71] sm:$0xff]
      %v724 = vld [vmem:[#allocation2 + $0x79] sm:$0xff]
      %v725 = vld [vmem:[#allocation2 + $0x81] sm:$0xff]
      %v726 = vld [vmem:[#allocation2 + $0x89] sm:$0xff]
      %v727 = vld [vmem:[#allocation2 + $0x91] sm:$0xff]
      %v728 = vld [vmem:[#allocation2 + $0x99] sm:$0xff]
      %v729 = vld [vmem:[#allocation2 + $0xa1] sm:$0xff]
      %v730 = vld [vmem:[#allocation2 + $0xa9] sm:$0xff]
      %v731 = vld [vmem:[#allocation2 + $0xb1] sm:$0xff]
      %v732 = vld [vmem:[#allocation2 + $0xb9] sm:$0xff]
      %v733 = vld [vmem:[#allocation2 + $0xc1] sm:$0xff]
      %v734 = vld [vmem:[#allocation2 + $0xc9] sm:$0xff]
      %v735 = vld [vmem:[#allocation2 + $0xd1] sm:$0xff]
      %v736 = vld [vmem:[#allocation2 + $0xd9] sm:$0xff]
      %v737 = vld [vmem:[#allocation2 + $0xe1] sm:$0xff]
      %v738 = vld [vmem:[#allocation2 + $0xe9] sm:$0xff]
      %v739 = vld [vmem:[#allocation2 + $0xf1] sm:$0xff]
      %v740 = vld [vmem:[#allocation2 + $0xf9] sm:$0xff]
      %v741 = vmax.f32 %v677, %v709
      %v742 = vmax.f32 %v678, %v710
      %v743 = vmax.f32 %v679, %v711
      %v744 = vmax.f32 %v680, %v712
      %v745 = vmax.f32 %v681, %v713
      %v746 = vmax.f32 %v682, %v714
      %v747 = vmax.f32 %v683, %v715
      %v748 = vmax.f32 %v684, %v716
      %v749 = vmax.f32 %v685, %v717
      %v750 = vmax.f32 %v686, %v718
      %v751 = vmax.f32 %v687, %v719
      %v752 = vmax.f32 %v688, %v720
      %v753 = vmax.f32 %v689, %v721
      %v754 = vmax.f32 %v690, %v722
      %v755 = vmax.f32 %v691, %v723
      %v756 = vmax.f32 %v692, %v724
      %v757 = vmax.f32 %v693, %v725
      %v758 = vmax.f32 %v694, %v726
      %v759 = vmax.f32 %v695, %v727
      %v760 = vmax.f32 %v696, %v728
      %v761 = vmax.f32 %v697, %v729
      %v762 = vmax.f32 %v698, %v730
      %v763 = vmax.f32 %v699, %v731
      %v764 = vmax.f32 %v700, %v732
      %v765 = vmax.f32 %v701, %v733
      %v766 = vmax.f32 %v702, %v734
      %v767 = vmax.f32 %v703, %v735
      %v768 = vmax.f32 %v704, %v736
      %v769 = vmax.f32 %v705, %v737
      %v770 = vmax.f32 %v706, %v738
      %v771 = vmax.f32 %v707, %v739
      %v772 = vmax.f32 %v708, %v740
      %v773 = vld [vmem:[#allocation2 + $0x100] sm:$0xff]
      %v774 = vld [vmem:[#allocation2 + $0x108] sm:$0xff]
      %v775 = vld [vmem:[#allocation2 + $0x101] sm:$0xff]
      %v776 = vld [vmem:[#allocation2 + $0x109] sm:$0xff]
      %v777 = vmax.f32 %v773, %v775
      %v778 = vmax.f32 %v774, %v776
      %v779 = vmax.f32 %v741, %v743
      %v780 = vmax.f32 %v742, %v744
      %v781 = vmax.f32 %v743, %v745
      %v782 = vmax.f32 %v744, %v746
      %v783 = vmax.f32 %v745, %v747
      %v784 = vmax.f32 %v746, %v748
      %v785 = vmax.f32 %v747, %v749
      %v786 = vmax.f32 %v748, %v750
      %v787 = vmax.f32 %v749, %v751
      %v788 = vmax.f32 %v750, %v752
      %v789 = vmax.f32 %v751, %v753
      %v790 = vmax.f32 %v752, %v754
      %v791 = vmax.f32 %v753, %v755
      %v792 = vmax.f32 %v754, %v756
      %v793 = vmax.f32 %v755, %v757
      %v794 = vmax.f32 %v756, %v758
      %v795 = vmax.f32 %v757, %v759
      %v796 = vmax.f32 %v758, %v760
      %v797 = vmax.f32 %v759, %v761
      %v798 = vmax.f32 %v760, %v762
      %v799 = vmax.f32 %v761, %v763
      %v800 = vmax.f32 %v762, %v764
      %v801 = vmax.f32 %v763, %v765
      %v802 = vmax.f32 %v764, %v766
      %v803 = vmax.f32 %v765, %v767
      %v804 = vmax.f32 %v766, %v768
      %v805 = vmax.f32 %v767, %v769
      %v806 = vmax.f32 %v768, %v770
      %v807 = vmax.f32 %v769, %v771
      %v808 = vmax.f32 %v770, %v772
      %v809 = vmax.f32 %v771, %v777
      %v810 = vmax.f32 %v772, %v778
      %v811 = vpack.c.bf16 %v780, %v779
      %v812 = vpack.c.bf16 %v782, %v781
      %v813 = vpack.c.bf16 %v784, %v783
      %v814 = vpack.c.bf16 %v786, %v785
      %v815 = vpack.c.bf16 %v788, %v787
      %v816 = vpack.c.bf16 %v790, %v789
      %v817 = vpack.c.bf16 %v792, %v791
      %v818 = vpack.c.bf16 %v794, %v793
      %v819 = vpack.c.bf16 %v796, %v795
      %v820 = vpack.c.bf16 %v798, %v797
      %v821 = vpack.c.bf16 %v800, %v799
      %v822 = vpack.c.bf16 %v802, %v801
      %v823 = vpack.c.bf16 %v804, %v803
      %v824 = vpack.c.bf16 %v806, %v805
      %v825 = vpack.c.bf16 %v808, %v807
      %v826 = vpack.c.bf16 %v810, %v809
      %v827 = vld [vmem:[%s3] sm:$0xff]
      %v828 = vld [vmem:[%s3 + $0x8] sm:$0xff]
      %v829 = vld [vmem:[%s3 + $0x10] sm:$0xff]
      %v830 = vld [vmem:[%s3 + $0x18] sm:$0xff]
      %v831 = vld [vmem:[%s3 + $0x20] sm:$0xff]
      %v832 = vld [vmem:[%s3 + $0x28] sm:$0xff]
      %v833 = vld [vmem:[%s3 + $0x30] sm:$0xff]
      %v834 = vld [vmem:[%s3 + $0x38] sm:$0xff]
      %v835 = vld [vmem:[%s3 + $0x40] sm:$0xff]
      %v836 = vld [vmem:[%s3 + $0x48] sm:$0xff]
      %v837 = vld [vmem:[%s3 + $0x50] sm:$0xff]
      %v838 = vld [vmem:[%s3 + $0x58] sm:$0xff]
      %v839 = vld [vmem:[%s3 + $0x60] sm:$0xff]
      %v840 = vld [vmem:[%s3 + $0x68] sm:$0xff]
      %v855 = vunpack.c.l.b16 %v827
      %v856 = vunpack.c.h.b16 %v827
      %v857 = vunpack.c.l.b16 %v828
      %v858 = vunpack.c.h.b16 %v828
      %v859 = vunpack.c.l.b16 %v829
      %v860 = vunpack.c.h.b16 %v829
      %v861 = vunpack.c.l.b16 %v830
      %v862 = vunpack.c.h.b16 %v830
      %v863 = vunpack.c.l.b16 %v831
      %v864 = vunpack.c.h.b16 %v831
      %v865 = vunpack.c.l.b16 %v832
      %v866 = vunpack.c.h.b16 %v832
      %v867 = vunpack.c.l.b16 %v833
      %v868 = vunpack.c.h.b16 %v833
      %v869 = vunpack.c.l.b16 %v834
      %v870 = vunpack.c.h.b16 %v834
      %v871 = vunpack.c.l.b16 %v835
      %v872 = vunpack.c.h.b16 %v835
      %v873 = vunpack.c.l.b16 %v836
      %v874 = vunpack.c.h.b16 %v836
      %v875 = vunpack.c.l.b16 %v837
      %v876 = vunpack.c.h.b16 %v837
      %v877 = vunpack.c.l.b16 %v838
      %v878 = vunpack.c.h.b16 %v838
      %v879 = vunpack.c.l.b16 %v839
      %v880 = vunpack.c.h.b16 %v839
      %v881 = vunpack.c.l.b16 %v840
      %v882 = vunpack.c.h.b16 %v840
      %v883 = vpack.c.b16 %v857, %v855
      %v884 = vpack.c.b16 %v858, %v856
      %v885 = vpack.c.b16 %v861, %v859
      %v886 = vpack.c.b16 %v862, %v860
      %v887 = vpack.c.b16 %v865, %v863
      %v888 = vpack.c.b16 %v866, %v864
      %v889 = vpack.c.b16 %v869, %v867
      %v890 = vpack.c.b16 %v870, %v868
      %v891 = vpack.c.b16 %v873, %v871
      %v892 = vpack.c.b16 %v874, %v872
      %v893 = vpack.c.b16 %v877, %v875
      %v894 = vpack.c.b16 %v878, %v876
      %v895 = vpack.c.b16 %v881, %v879
      %v896 = vpack.c.b16 %v882, %v880
      %911 = vmatprep.subr.bf16.mxu0 0
      %912 = vmatpush1.bf16.msra.mxu0 %v811
      %913 = vmatprep.subr.bf16.mxu0 0
      %914 = vmatpush1.bf16.msra.mxu0 %v812
      %915 = vmatprep.subr.bf16.mxu0 0
      %916 = vmatpush1.bf16.msra.mxu0 %v813
      %917 = vmatprep.subr.bf16.mxu0 0
      %918 = vmatpush1.bf16.msra.mxu0 %v814
      %919 = vmatprep.subr.bf16.mxu0 0
      %920 = vmatpush1.bf16.msra.mxu0 %v815
      %921 = vmatprep.subr.bf16.mxu0 0
      %922 = vmatpush1.bf16.msra.mxu0 %v816
      %923 = vmatprep.subr.bf16.mxu0 0
      %924 = vmatpush1.bf16.msra.mxu0 %v817
      %925 = vmatprep.subr.bf16.mxu0 0
      %926 = vmatpush1.bf16.msra.mxu0 %v818
      %927 = vmatprep.subr.bf16.mxu0 0
      %928 = vmatpush1.bf16.msra.mxu0 %v819
      %929 = vmatprep.subr.bf16.mxu0 0
      %930 = vmatpush1.bf16.msra.mxu0 %v820
      %931 = vmatprep.subr.bf16.mxu0 0
      %932 = vmatpush1.bf16.msra.mxu0 %v821
      %933 = vmatprep.subr.bf16.mxu0 0
      %934 = vmatpush1.bf16.msra.mxu0 %v822
      %935 = vmatprep.subr.bf16.mxu0 0
      %936 = vmatpush1.bf16.msra.mxu0 %v823
      %937 = vmatprep.subr.bf16.mxu0 0
      %938 = vmatpush1.bf16.msra.mxu0 %v824
      %939 = vmatprep.subr.bf16.mxu0 0
      %940 = vmatpush1.bf16.msra.mxu0 %v825
      %941 = vmatprep.subr.bf16.mxu0 0
      %942 = vmatpush1.bf16.msra.mxu0 %v826
      %943 = vmatprep.mubr.bf16.mxu0 %v884
      %944 = vmatmul.mubr.bf16.gmra.mrb[0].mxu0 %v883
      %v945 = vpop.f32.mrb[0].mxu0
      %v946 = vadd.f32 0.0, %v945
      %v947 = vpop.f32.mrb[0].mxu0
      %v948 = vpop.f32.mrb[0].mxu0
      %v949 = vadd.f32 0.0, %v948
      %v950 = vpop.f32.mrb[0].mxu0
      %951 = vmatprep.mubr.bf16.mxu0 %v886
      %952 = vmatmul.mubr.bf16.gmra.mrb[0].mxu0 %v885
      %v953 = vpop.f32.mrb[0].mxu0
      %v954 = vadd.f32 0.0, %v953
      %v955 = vpop.f32.mrb[0].mxu0
      %v956 = vpop.f32.mrb[0].mxu0
      %v957 = vadd.f32 0.0, %v956
      %v958 = vpop.f32.mrb[0].mxu0
      %959 = vmatprep.mubr.bf16.mxu0 %v888
      %960 = vmatmul.mubr.bf16.gmra.mrb[0].mxu0 %v887
      %v961 = vpop.f32.mrb[0].mxu0
      %v962 = vadd.f32 0.0, %v961
      %v963 = vpop.f32.mrb[0].mxu0
      %v964 = vpop.f32.mrb[0].mxu0
      %v965 = vadd.f32 0.0, %v964
      %v966 = vpop.f32.mrb[0].mxu0
      %967 = vmatprep.mubr.bf16.mxu0 %v890
      %968 = vmatmul.mubr.bf16.gmra.mrb[0].mxu0 %v889
      %v969 = vpop.f32.mrb[0].mxu0
      %v970 = vadd.f32 0.0, %v969
      %v971 = vpop.f32.mrb[0].mxu0
      %v972 = vpop.f32.mrb[0].mxu0
      %v973 = vadd.f32 0.0, %v972
      %v974 = vpop.f32.mrb[0].mxu0
      %975 = vmatprep.mubr.bf16.mxu0 %v892
      %976 = vmatmul.mubr.bf16.gmra.mrb[0].mxu0 %v891
      %v977 = vpop.f32.mrb[0].mxu0
      %v978 = vadd.f32 0.0, %v977
      %v979 = vpop.f32.mrb[0].mxu0
      %v980 = vpop.f32.mrb[0].mxu0
      %v981 = vadd.f32 0.0, %v980
      %v982 = vpop.f32.mrb[0].mxu0
      %983 = vmatprep.mubr.bf16.mxu0 %v894
      %984 = vmatmul.mubr.bf16.gmra.mrb[0].mxu0 %v893
      %v985 = vpop.f32.mrb[0].mxu0
      %v986 = vadd.f32 0.0, %v985
      %v987 = vpop.f32.mrb[0].mxu0
      %v988 = vpop.f32.mrb[0].mxu0
      %v989 = vadd.f32 0.0, %v988
      %v990 = vpop.f32.mrb[0].mxu0
      %991 = vmatprep.mubr.bf16.mxu0 %v896
      %992 = vmatmul.mubr.bf16.gmra.mrb[0].mxu0 %v895
      %v993 = vpop.f32.mrb[0].mxu0
      %v994 = vadd.f32 0.0, %v993
      %v995 = vpop.f32.mrb[0].mxu0
      %v996 = vpop.f32.mrb[0].mxu0
      %v997 = vadd.f32 0.0, %v996
      %v998 = vpop.f32.mrb[0].mxu0
      %999 = vdwg.mxu0
      %1000 = vst.msk [vmem:[#allocation3] sm:$0xff] %vm641, %v946
      %1001 = vst.msk [vmem:[#allocation3 + $0x8] sm:$0xff] %vm641, %v949
      %1002 = vst.msk [vmem:[#allocation3 + $0x10] sm:$0xff] %vm641, %v954
      %1003 = vst.msk [vmem:[#allocation3 + $0x18] sm:$0xff] %vm641, %v957
      %1004 = vst.msk [vmem:[#allocation3 + $0x20] sm:$0xff] %vm641, %v962
      %1005 = vst.msk [vmem:[#allocation3 + $0x28] sm:$0xff] %vm641, %v965
      %1006 = vst.msk [vmem:[#allocation3 + $0x30] sm:$0xff] %vm641, %v970
      %1007 = vst.msk [vmem:[#allocation3 + $0x38] sm:$0xff] %vm641, %v973
      %1008 = vst.msk [vmem:[#allocation3 + $0x40] sm:$0xff] %vm641, %v978
      %1009 = vst.msk [vmem:[#allocation3 + $0x48] sm:$0xff] %vm641, %v981
      %1010 = vst.msk [vmem:[#allocation3 + $0x50] sm:$0xff] %vm641, %v986
      %1011 = vst.msk [vmem:[#allocation3 + $0x58] sm:$0xff] %vm641, %v989
      %1012 = vst.msk [vmem:[#allocation3 + $0x60] sm:$0xff] %vm641, %v994
      %1013 = vst.msk [vmem:[#allocation3 + $0x68] sm:$0xff] %vm641, %v997
      %1014 = vst.msk [vmem:[#allocation3 + $0x70] sm:$0xff] %vm641, 0.0
      %1015 = vst.msk [vmem:[#allocation3 + $0x78] sm:$0xff] %vm641, 0.0
      %1016 = vst.msk [vmem:[#allocation3 + $0x80] sm:$0xff] %vm641, 0.0
      %v1017 = vld [vmem:[#allocation3] sm:$0xff]
      %v1018 = vld [vmem:[#allocation3 + $0x8] sm:$0xff]
      %v1019 = vld [vmem:[#allocation3 + $0x10] sm:$0xff]
      %v1020 = vld [vmem:[#allocation3 + $0x18] sm:$0xff]
      %v1021 = vld [vmem:[#allocation3 + $0x20] sm:$0xff]
      %v1022 = vld [vmem:[#allocation3 + $0x28] sm:$0xff]
      %v1023 = vld [vmem:[#allocation3 + $0x30] sm:$0xff]
      %v1024 = vld [vmem:[#allocation3 + $0x38] sm:$0xff]
      %v1025 = vld [vmem:[#allocation3 + $0x40] sm:$0xff]
      %v1026 = vld [vmem:[#allocation3 + $0x48] sm:$0xff]
      %v1027 = vld [vmem:[#allocation3 + $0x50] sm:$0xff]
      %v1028 = vld [vmem:[#allocation3 + $0x58] sm:$0xff]
      %v1029 = vld [vmem:[#allocation3 + $0x60] sm:$0xff]
      %v1030 = vld [vmem:[#allocation3 + $0x68] sm:$0xff]
      %v1031 = vld [vmem:[#allocation3 + $0x1] sm:$0xff]
      %v1032 = vld [vmem:[#allocation3 + $0x9] sm:$0xff]
      %v1033 = vld [vmem:[#allocation3 + $0x11] sm:$0xff]
      %v1034 = vld [vmem:[#allocation3 + $0x19] sm:$0xff]
      %v1035 = vld [vmem:[#allocation3 + $0x21] sm:$0xff]
      %v1036 = vld [vmem:[#allocation3 + $0x29] sm:$0xff]
      %v1037 = vld [vmem:[#allocation3 + $0x31] sm:$0xff]
      %v1038 = vld [vmem:[#allocation3 + $0x39] sm:$0xff]
      %v1039 = vld [vmem:[#allocation3 + $0x41] sm:$0xff]
      %v1040 = vld [vmem:[#allocation3 + $0x49] sm:$0xff]
      %v1041 = vld [vmem:[#allocation3 + $0x51] sm:$0xff]
      %v1042 = vld [vmem:[#allocation3 + $0x59] sm:$0xff]
      %v1043 = vld [vmem:[#allocation3 + $0x61] sm:$0xff]
      %v1044 = vld [vmem:[#allocation3 + $0x69] sm:$0xff]
      %v1045 = vld [vmem:[#allocation3 + $0x2] sm:$0xff]
      %v1046 = vld [vmem:[#allocation3 + $0xa] sm:$0xff]
      %v1047 = vld [vmem:[#allocation3 + $0x12] sm:$0xff]
      %v1048 = vld [vmem:[#allocation3 + $0x1a] sm:$0xff]
      %v1049 = vld [vmem:[#allocation3 + $0x22] sm:$0xff]
      %v1050 = vld [vmem:[#allocation3 + $0x2a] sm:$0xff]
      %v1051 = vld [vmem:[#allocation3 + $0x32] sm:$0xff]
      %v1052 = vld [vmem:[#allocation3 + $0x3a] sm:$0xff]
      %v1053 = vld [vmem:[#allocation3 + $0x42] sm:$0xff]
      %v1054 = vld [vmem:[#allocation3 + $0x4a] sm:$0xff]
      %v1055 = vld [vmem:[#allocation3 + $0x52] sm:$0xff]
      %v1056 = vld [vmem:[#allocation3 + $0x5a] sm:$0xff]
      %v1057 = vld [vmem:[#allocation3 + $0x62] sm:$0xff]
      %v1058 = vld [vmem:[#allocation3 + $0x6a] sm:$0xff]
      %v1059 = vld [vmem:[#allocation3 + $0x72] sm:$0xff]
      %v1060 = vld [vmem:[#allocation3 + $0xb] sm:$0xff]
      %v1061 = vld [vmem:[#allocation3 + $0x13] sm:$0xff]
      %v1062 = vld [vmem:[#allocation3 + $0x1b] sm:$0xff]
      %v1063 = vld [vmem:[#allocation3 + $0x23] sm:$0xff]
      %v1064 = vld [vmem:[#allocation3 + $0x2b] sm:$0xff]
      %v1065 = vld [vmem:[#allocation3 + $0x33] sm:$0xff]
      %v1066 = vld [vmem:[#allocation3 + $0x3b] sm:$0xff]
      %v1067 = vld [vmem:[#allocation3 + $0x43] sm:$0xff]
      %v1068 = vld [vmem:[#allocation3 + $0x4b] sm:$0xff]
      %v1069 = vld [vmem:[#allocation3 + $0x53] sm:$0xff]
      %v1070 = vld [vmem:[#allocation3 + $0x5b] sm:$0xff]
      %v1071 = vld [vmem:[#allocation3 + $0x63] sm:$0xff]
      %v1072 = vld [vmem:[#allocation3 + $0x6b] sm:$0xff]
      %v1073 = vld [vmem:[#allocation3 + $0x73] sm:$0xff]
      %v1074 = vld [vmem:[#allocation3 + $0xc] sm:$0xff]
      %v1075 = vld [vmem:[#allocation3 + $0x14] sm:$0xff]
      %v1076 = vld [vmem:[#allocation3 + $0x1c] sm:$0xff]
      %v1077 = vld [vmem:[#allocation3 + $0x24] sm:$0xff]
      %v1078 = vld [vmem:[#allocation3 + $0x2c] sm:$0xff]
      %v1079 = vld [vmem:[#allocation3 + $0x34] sm:$0xff]
      %v1080 = vld [vmem:[#allocation3 + $0x3c] sm:$0xff]
      %v1081 = vld [vmem:[#allocation3 + $0x44] sm:$0xff]
      %v1082 = vld [vmem:[#allocation3 + $0x4c] sm:$0xff]
      %v1083 = vld [vmem:[#allocation3 + $0x54] sm:$0xff]
      %v1084 = vld [vmem:[#allocation3 + $0x5c] sm:$0xff]
      %v1085 = vld [vmem:[#allocation3 + $0x64] sm:$0xff]
      %v1086 = vld [vmem:[#allocation3 + $0x6c] sm:$0xff]
      %v1087 = vld [vmem:[#allocation3 + $0x74] sm:$0xff]
      %v1088 = vld [vmem:[#allocation3 + $0x7c] sm:$0xff]
      %v1089 = vld [vmem:[#allocation3 + $0x15] sm:$0xff]
      %v1090 = vld [vmem:[#allocation3 + $0x1d] sm:$0xff]
      %v1091 = vld [vmem:[#allocation3 + $0x25] sm:$0xff]
      %v1092 = vld [vmem:[#allocation3 + $0x2d] sm:$0xff]
      %v1093 = vld [vmem:[#allocation3 + $0x35] sm:$0xff]
      %v1094 = vld [vmem:[#allocation3 + $0x3d] sm:$0xff]
      %v1095 = vld [vmem:[#allocation3 + $0x45] sm:$0xff]
      %v1096 = vld [vmem:[#allocation3 + $0x4d] sm:$0xff]
      %v1097 = vld [vmem:[#allocation3 + $0x55] sm:$0xff]
      %v1098 = vld [vmem:[#allocation3 + $0x5d] sm:$0xff]
      %v1099 = vld [vmem:[#allocation3 + $0x65] sm:$0xff]
      %v1100 = vld [vmem:[#allocation3 + $0x6d] sm:$0xff]
      %v1101 = vld [vmem:[#allocation3 + $0x75] sm:$0xff]
      %v1102 = vld [vmem:[#allocation3 + $0x7d] sm:$0xff]
      %v1103 = vld [vmem:[#allocation3 + $0x16] sm:$0xff]
      %v1104 = vld [vmem:[#allocation3 + $0x1e] sm:$0xff]
      %v1105 = vld [vmem:[#allocation3 + $0x26] sm:$0xff]
      %v1106 = vld [vmem:[#allocation3 + $0x2e] sm:$0xff]
      %v1107 = vld [vmem:[#allocation3 + $0x36] sm:$0xff]
      %v1108 = vld [vmem:[#allocation3 + $0x3e] sm:$0xff]
      %v1109 = vld [vmem:[#allocation3 + $0x46] sm:$0xff]
      %v1110 = vld [vmem:[#allocation3 + $0x4e] sm:$0xff]
      %v1111 = vld [vmem:[#allocation3 + $0x56] sm:$0xff]
      %v1112 = vld [vmem:[#allocation3 + $0x5e] sm:$0xff]
      %v1113 = vld [vmem:[#allocation3 + $0x66] sm:$0xff]
      %v1114 = vld [vmem:[#allocation3 + $0x6e] sm:$0xff]
      %v1115 = vld [vmem:[#allocation3 + $0x76] sm:$0xff]
      %v1116 = vld [vmem:[#allocation3 + $0x7e] sm:$0xff]
      %1131 = vrot.lane.b32.xlu0 %v1031, 16
      %v1132 = vpop.permute.xlu0 %1131
      %1133 = vrot.lane.b32.xlu0 %v1032, 16
      %v1134 = vpop.permute.xlu0 %1133
      %1135 = vrot.lane.b32.xlu0 %v1033, 16
      %v1136 = vpop.permute.xlu0 %1135
      %1137 = vrot.lane.b32.xlu0 %v1034, 16
      %v1138 = vpop.permute.xlu0 %1137
      %1139 = vrot.lane.b32.xlu0 %v1035, 16
      %v1140 = vpop.permute.xlu0 %1139
      %1141 = vrot.lane.b32.xlu0 %v1036, 16
      %v1142 = vpop.permute.xlu0 %1141
      %1143 = vrot.lane.b32.xlu0 %v1037, 16
      %v1144 = vpop.permute.xlu0 %1143
      %1145 = vrot.lane.b32.xlu0 %v1038, 16
      %v1146 = vpop.permute.xlu0 %1145
      %1147 = vrot.lane.b32.xlu0 %v1039, 16
      %v1148 = vpop.permute.xlu0 %1147
      %1149 = vrot.lane.b32.xlu0 %v1040, 16
      %v1150 = vpop.permute.xlu0 %1149
      %1151 = vrot.lane.b32.xlu0 %v1041, 16
      %v1152 = vpop.permute.xlu0 %1151
      %1153 = vrot.lane.b32.xlu0 %v1042, 16
      %v1154 = vpop.permute.xlu0 %1153
      %1155 = vrot.lane.b32.xlu0 %v1043, 16
      %v1156 = vpop.permute.xlu0 %1155
      %1157 = vrot.lane.b32.xlu0 %v1044, 16
      %v1158 = vpop.permute.xlu0 %1157
      %1187 = vrot.lane.b32.xlu0 %v1045, 32
      %v1188 = vpop.permute.xlu0 %1187
      %1189 = vrot.lane.b32.xlu0 %v1046, 32
      %v1190 = vpop.permute.xlu0 %1189
      %1191 = vrot.lane.b32.xlu0 %v1047, 32
      %v1192 = vpop.permute.xlu0 %1191
      %1193 = vrot.lane.b32.xlu0 %v1048, 32
      %v1194 = vpop.permute.xlu0 %1193
      %1195 = vrot.lane.b32.xlu0 %v1049, 32
      %v1196 = vpop.permute.xlu0 %1195
      %1197 = vrot.lane.b32.xlu0 %v1050, 32
      %v1198 = vpop.permute.xlu0 %1197
      %1199 = vrot.lane.b32.xlu0 %v1051, 32
      %v1200 = vpop.permute.xlu0 %1199
      %1201 = vrot.lane.b32.xlu0 %v1052, 32
      %v1202 = vpop.permute.xlu0 %1201
      %1203 = vrot.lane.b32.xlu0 %v1053, 32
      %v1204 = vpop.permute.xlu0 %1203
      %1205 = vrot.lane.b32.xlu0 %v1054, 32
      %v1206 = vpop.permute.xlu0 %1205
      %1207 = vrot.lane.b32.xlu0 %v1055, 32
      %v1208 = vpop.permute.xlu0 %1207
      %1209 = vrot.lane.b32.xlu0 %v1056, 32
      %v1210 = vpop.permute.xlu0 %1209
      %1211 = vrot.lane.b32.xlu0 %v1057, 32
      %v1212 = vpop.permute.xlu0 %1211
      %1213 = vrot.lane.b32.xlu0 %v1058, 32
      %v1214 = vpop.permute.xlu0 %1213
      %1230 = vrot.lane.b32.xlu0 %v1046, 48
      %v1231 = vpop.permute.xlu0 %1230
      %1232 = vrot.lane.b32.xlu0 %v1047, 48
      %v1233 = vpop.permute.xlu0 %1232
      %1234 = vrot.lane.b32.xlu0 %v1048, 48
      %v1235 = vpop.permute.xlu0 %1234
      %1236 = vrot.lane.b32.xlu0 %v1049, 48
      %v1237 = vpop.permute.xlu0 %1236
      %1238 = vrot.lane.b32.xlu0 %v1050, 48
      %v1239 = vpop.permute.xlu0 %1238
      %1240 = vrot.lane.b32.xlu0 %v1051, 48
      %v1241 = vpop.permute.xlu0 %1240
      %1242 = vrot.lane.b32.xlu0 %v1052, 48
      %v1243 = vpop.permute.xlu0 %1242
      %1244 = vrot.lane.b32.xlu0 %v1053, 48
      %v1245 = vpop.permute.xlu0 %1244
      %1246 = vrot.lane.b32.xlu0 %v1054, 48
      %v1247 = vpop.permute.xlu0 %1246
      %1248 = vrot.lane.b32.xlu0 %v1055, 48
      %v1249 = vpop.permute.xlu0 %1248
      %1250 = vrot.lane.b32.xlu0 %v1056, 48
      %v1251 = vpop.permute.xlu0 %1250
      %1252 = vrot.lane.b32.xlu0 %v1057, 48
      %v1253 = vpop.permute.xlu0 %1252
      %1254 = vrot.lane.b32.xlu0 %v1058, 48
      %v1255 = vpop.permute.xlu0 %1254
      %1256 = vrot.lane.b32.xlu0 %v1059, 48
      %v1257 = vpop.permute.xlu0 %1256
      %1286 = vrot.lane.b32.xlu0 %v1060, 64
      %v1287 = vpop.permute.xlu0 %1286
      %1288 = vrot.lane.b32.xlu0 %v1061, 64
      %v1289 = vpop.permute.xlu0 %1288
      %1290 = vrot.lane.b32.xlu0 %v1062, 64
      %v1291 = vpop.permute.xlu0 %1290
      %1292 = vrot.lane.b32.xlu0 %v1063, 64
      %v1293 = vpop.permute.xlu0 %1292
      %1294 = vrot.lane.b32.xlu0 %v1064, 64
      %v1295 = vpop.permute.xlu0 %1294
      %1296 = vrot.lane.b32.xlu0 %v1065, 64
      %v1297 = vpop.permute.xlu0 %1296
      %1298 = vrot.lane.b32.xlu0 %v1066, 64
      %v1299 = vpop.permute.xlu0 %1298
      %1300 = vrot.lane.b32.xlu0 %v1067, 64
      %v1301 = vpop.permute.xlu0 %1300
      %1302 = vrot.lane.b32.xlu0 %v1068, 64
      %v1303 = vpop.permute.xlu0 %1302
      %1304 = vrot.lane.b32.xlu0 %v1069, 64
      %v1305 = vpop.permute.xlu0 %1304
      %1306 = vrot.lane.b32.xlu0 %v1070, 64
      %v1307 = vpop.permute.xlu0 %1306
      %1308 = vrot.lane.b32.xlu0 %v1071, 64
      %v1309 = vpop.permute.xlu0 %1308
      %1310 = vrot.lane.b32.xlu0 %v1072, 64
      %v1311 = vpop.permute.xlu0 %1310
      %1312 = vrot.lane.b32.xlu0 %v1073, 64
      %v1313 = vpop.permute.xlu0 %1312
      %1342 = vrot.lane.b32.xlu0 %v1074, 80
      %v1343 = vpop.permute.xlu0 %1342
      %1344 = vrot.lane.b32.xlu0 %v1075, 80
      %v1345 = vpop.permute.xlu0 %1344
      %1346 = vrot.lane.b32.xlu0 %v1076, 80
      %v1347 = vpop.permute.xlu0 %1346
      %1348 = vrot.lane.b32.xlu0 %v1077, 80
      %v1349 = vpop.permute.xlu0 %1348
      %1350 = vrot.lane.b32.xlu0 %v1078, 80
      %v1351 = vpop.permute.xlu0 %1350
      %1352 = vrot.lane.b32.xlu0 %v1079, 80
      %v1353 = vpop.permute.xlu0 %1352
      %1354 = vrot.lane.b32.xlu0 %v1080, 80
      %v1355 = vpop.permute.xlu0 %1354
      %1356 = vrot.lane.b32.xlu0 %v1081, 80
      %v1357 = vpop.permute.xlu0 %1356
      %1358 = vrot.lane.b32.xlu0 %v1082, 80
      %v1359 = vpop.permute.xlu0 %1358
      %1360 = vrot.lane.b32.xlu0 %v1083, 80
      %v1361 = vpop.permute.xlu0 %1360
      %1362 = vrot.lane.b32.xlu0 %v1084, 80
      %v1363 = vpop.permute.xlu0 %1362
      %1364 = vrot.lane.b32.xlu0 %v1085, 80
      %v1365 = vpop.permute.xlu0 %1364
      %1366 = vrot.lane.b32.xlu0 %v1086, 80
      %v1367 = vpop.permute.xlu0 %1366
      %1368 = vrot.lane.b32.xlu0 %v1087, 80
      %v1369 = vpop.permute.xlu0 %1368
      %1385 = vrot.lane.b32.xlu0 %v1075, 96
      %v1386 = vpop.permute.xlu0 %1385
      %1387 = vrot.lane.b32.xlu0 %v1076, 96
      %v1388 = vpop.permute.xlu0 %1387
      %1389 = vrot.lane.b32.xlu0 %v1077, 96
      %v1390 = vpop.permute.xlu0 %1389
      %1391 = vrot.lane.b32.xlu0 %v1078, 96
      %v1392 = vpop.permute.xlu0 %1391
      %1393 = vrot.lane.b32.xlu0 %v1079, 96
      %v1394 = vpop.permute.xlu0 %1393
      %1395 = vrot.lane.b32.xlu0 %v1080, 96
      %v1396 = vpop.permute.xlu0 %1395
      %1397 = vrot.lane.b32.xlu0 %v1081, 96
      %v1398 = vpop.permute.xlu0 %1397
      %1399 = vrot.lane.b32.xlu0 %v1082, 96
      %v1400 = vpop.permute.xlu0 %1399
      %1401 = vrot.lane.b32.xlu0 %v1083, 96
      %v1402 = vpop.permute.xlu0 %1401
      %1403 = vrot.lane.b32.xlu0 %v1084, 96
      %v1404 = vpop.permute.xlu0 %1403
      %1405 = vrot.lane.b32.xlu0 %v1085, 96
      %v1406 = vpop.permute.xlu0 %1405
      %1407 = vrot.lane.b32.xlu0 %v1086, 96
      %v1408 = vpop.permute.xlu0 %1407
      %1409 = vrot.lane.b32.xlu0 %v1087, 96
      %v1410 = vpop.permute.xlu0 %1409
      %1411 = vrot.lane.b32.xlu0 %v1088, 96
      %v1412 = vpop.permute.xlu0 %1411
      %1441 = vrot.lane.b32.xlu0 %v1089, 112
      %v1442 = vpop.permute.xlu0 %1441
      %1443 = vrot.lane.b32.xlu0 %v1090, 112
      %v1444 = vpop.permute.xlu0 %1443
      %1445 = vrot.lane.b32.xlu0 %v1091, 112
      %v1446 = vpop.permute.xlu0 %1445
      %1447 = vrot.lane.b32.xlu0 %v1092, 112
      %v1448 = vpop.permute.xlu0 %1447
      %1449 = vrot.lane.b32.xlu0 %v1093, 112
      %v1450 = vpop.permute.xlu0 %1449
      %1451 = vrot.lane.b32.xlu0 %v1094, 112
      %v1452 = vpop.permute.xlu0 %1451
      %1453 = vrot.lane.b32.xlu0 %v1095, 112
      %v1454 = vpop.permute.xlu0 %1453
      %1455 = vrot.lane.b32.xlu0 %v1096, 112
      %v1456 = vpop.permute.xlu0 %1455
      %1457 = vrot.lane.b32.xlu0 %v1097, 112
      %v1458 = vpop.permute.xlu0 %1457
      %1459 = vrot.lane.b32.xlu0 %v1098, 112
      %v1460 = vpop.permute.xlu0 %1459
      %1461 = vrot.lane.b32.xlu0 %v1099, 112
      %v1462 = vpop.permute.xlu0 %1461
      %1463 = vrot.lane.b32.xlu0 %v1100, 112
      %v1464 = vpop.permute.xlu0 %1463
      %1465 = vrot.lane.b32.xlu0 %v1101, 112
      %v1466 = vpop.permute.xlu0 %1465
      %1467 = vrot.lane.b32.xlu0 %v1102, 112
      %v1468 = vpop.permute.xlu0 %1467
      %v1483 = vsel %vm641, %v1017, %v1132
      %v1484 = vsel %vm641, %v1018, %v1134
      %v1485 = vsel %vm641, %v1019, %v1136
      %v1486 = vsel %vm641, %v1020, %v1138
      %v1487 = vsel %vm641, %v1021, %v1140
      %v1488 = vsel %vm641, %v1022, %v1142
      %v1489 = vsel %vm641, %v1023, %v1144
      %v1490 = vsel %vm641, %v1024, %v1146
      %v1491 = vsel %vm641, %v1025, %v1148
      %v1492 = vsel %vm641, %v1026, %v1150
      %v1493 = vsel %vm641, %v1027, %v1152
      %v1494 = vsel %vm641, %v1028, %v1154
      %v1495 = vsel %vm641, %v1029, %v1156
      %v1496 = vsel %vm641, %v1030, %v1158
      %vm1497 = vcmask 261120
      %v1498 = vsel %vm1497, %v1483, %v1188
      %v1499 = vsel %vm1497, %v1484, %v1190
      %v1500 = vsel %vm1497, %v1485, %v1192
      %v1501 = vsel %vm1497, %v1486, %v1194
      %v1502 = vsel %vm1497, %v1487, %v1196
      %v1503 = vsel %vm1497, %v1488, %v1198
      %v1504 = vsel %vm1497, %v1489, %v1200
      %v1505 = vsel %vm1497, %v1490, %v1202
      %v1506 = vsel %vm1497, %v1491, %v1204
      %v1507 = vsel %vm1497, %v1492, %v1206
      %v1508 = vsel %vm1497, %v1493, %v1208
      %v1509 = vsel %vm1497, %v1494, %v1210
      %v1510 = vsel %vm1497, %v1495, %v1212
      %v1511 = vsel %vm1497, %v1496, %v1214
      %vm1512 = vcmask 392192
      %v1513 = vsel %vm1512, %v1498, %v1231
      %v1514 = vsel %vm1512, %v1499, %v1233
      %v1515 = vsel %vm1512, %v1500, %v1235
      %v1516 = vsel %vm1512, %v1501, %v1237
      %v1517 = vsel %vm1512, %v1502, %v1239
      %v1518 = vsel %vm1512, %v1503, %v1241
      %v1519 = vsel %vm1512, %v1504, %v1243
      %v1520 = vsel %vm1512, %v1505, %v1245
      %v1521 = vsel %vm1512, %v1506, %v1247
      %v1522 = vsel %vm1512, %v1507, %v1249
      %v1523 = vsel %vm1512, %v1508, %v1251
      %v1524 = vsel %vm1512, %v1509, %v1253
      %v1525 = vsel %vm1512, %v1510, %v1255
      %v1526 = vsel %vm1512, %v1511, %v1257
      %vm1527 = vcmask 523264
      %v1528 = vsel %vm1527, %v1513, %v1287
      %v1529 = vsel %vm1527, %v1514, %v1289
      %v1530 = vsel %vm1527, %v1515, %v1291
      %v1531 = vsel %vm1527, %v1516, %v1293
      %v1532 = vsel %vm1527, %v1517, %v1295
      %v1533 = vsel %vm1527, %v1518, %v1297
      %v1534 = vsel %vm1527, %v1519, %v1299
      %v1535 = vsel %vm1527, %v1520, %v1301
      %v1536 = vsel %vm1527, %v1521, %v1303
      %v1537 = vsel %vm1527, %v1522, %v1305
      %v1538 = vsel %vm1527, %v1523, %v1307
      %v1539 = vsel %vm1527, %v1524, %v1309
      %v1540 = vsel %vm1527, %v1525, %v1311
      %v1541 = vsel %vm1527, %v1526, %v1313
      %vm1542 = vcmask 654336
      %v1543 = vsel %vm1542, %v1528, %v1343
      %v1544 = vsel %vm1542, %v1529, %v1345
      %v1545 = vsel %vm1542, %v1530, %v1347
      %v1546 = vsel %vm1542, %v1531, %v1349
      %v1547 = vsel %vm1542, %v1532, %v1351
      %v1548 = vsel %vm1542, %v1533, %v1353
      %v1549 = vsel %vm1542, %v1534, %v1355
      %v1550 = vsel %vm1542, %v1535, %v1357
      %v1551 = vsel %vm1542, %v1536, %v1359
      %v1552 = vsel %vm1542, %v1537, %v1361
      %v1553 = vsel %vm1542, %v1538, %v1363
      %v1554 = vsel %vm1542, %v1539, %v1365
      %v1555 = vsel %vm1542, %v1540, %v1367
      %v1556 = vsel %vm1542, %v1541, %v1369
      %vm1557 = vcmask 785408
      %v1558 = vsel %vm1557, %v1543, %v1386
      %v1559 = vsel %vm1557, %v1544, %v1388
      %v1560 = vsel %vm1557, %v1545, %v1390
      %v1561 = vsel %vm1557, %v1546, %v1392
      %v1562 = vsel %vm1557, %v1547, %v1394
      %v1563 = vsel %vm1557, %v1548, %v1396
      %v1564 = vsel %vm1557, %v1549, %v1398
      %v1565 = vsel %vm1557, %v1550, %v1400
      %v1566 = vsel %vm1557, %v1551, %v1402
      %v1567 = vsel %vm1557, %v1552, %v1404
      %v1568 = vsel %vm1557, %v1553, %v1406
      %v1569 = vsel %vm1557, %v1554, %v1408
      %v1570 = vsel %vm1557, %v1555, %v1410
      %v1571 = vsel %vm1557, %v1556, %v1412
      %vm1572 = vcmask 916480
      %v1573 = vsel %vm1572, %v1558, %v1442
      %v1574 = vsel %vm1572, %v1559, %v1444
      %v1575 = vsel %vm1572, %v1560, %v1446
      %v1576 = vsel %vm1572, %v1561, %v1448
      %v1577 = vsel %vm1572, %v1562, %v1450
      %v1578 = vsel %vm1572, %v1563, %v1452
      %v1579 = vsel %vm1572, %v1564, %v1454
      %v1580 = vsel %vm1572, %v1565, %v1456
      %v1581 = vsel %vm1572, %v1566, %v1458
      %v1582 = vsel %vm1572, %v1567, %v1460
      %v1583 = vsel %vm1572, %v1568, %v1462
      %v1584 = vsel %vm1572, %v1569, %v1464
      %v1585 = vsel %vm1572, %v1570, %v1466
      %v1586 = vsel %vm1572, %v1571, %v1468
      %v1587 = vpack.c.bf16 %v1574, %v1573
      %v1588 = vpack.c.bf16 %v1104, %v1103
      %v1589 = vpack.c.bf16 %v1576, %v1575
      %v1590 = vpack.c.bf16 %v1106, %v1105
      %v1591 = vpack.c.bf16 %v1578, %v1577
      %v1592 = vpack.c.bf16 %v1108, %v1107
      %v1593 = vpack.c.bf16 %v1580, %v1579
      %v1594 = vpack.c.bf16 %v1110, %v1109
      %v1595 = vpack.c.bf16 %v1582, %v1581
      %v1596 = vpack.c.bf16 %v1112, %v1111
      %v1597 = vpack.c.bf16 %v1584, %v1583
      %v1598 = vpack.c.bf16 %v1114, %v1113
      %v1599 = vpack.c.bf16 %v1586, %v1585
      %v1600 = vpack.c.bf16 %v1116, %v1115
      %v1601 = vld [vmem:[%s4] sm:$0xf]
      %v1602 = vld [vmem:[%s4 + $0x4] sm:$0xf]
      %v1603 = vld [vmem:[%s4 + $0x8] sm:$0xf]
      %v1604 = vld [vmem:[%s4 + $0xc] sm:$0xf]
      %v1605 = vld [vmem:[%s4 + $0x10] sm:$0xf]
      %v1606 = vld [vmem:[%s4 + $0x14] sm:$0xf]
      %v1607 = vld [vmem:[%s4 + $0x18] sm:$0xf]
      %v1608 = vld [vmem:[%s4 + $0x1c] sm:$0xf]
      %v1609 = vld [vmem:[%s4 + $0x20] sm:$0xf]
      %v1610 = vld [vmem:[%s4 + $0x24] sm:$0xf]
      %v1611 = vld [vmem:[%s4 + $0x28] sm:$0xf]
      %v1612 = vld [vmem:[%s4 + $0x2c] sm:$0xf]
      %v1613 = vld [vmem:[%s4 + $0x30] sm:$0xf]
      %v1614 = vld [vmem:[%s4 + $0x34] sm:$0xf]
      %v1615 = vld [vmem:[%s4 + $0x38] sm:$0xf]
      %v1616 = vld [vmem:[%s4 + $0x3c] sm:$0xf]
      %v1617 = vld [vmem:[%s4 + $0x40] sm:$0xf]
      %v1618 = vld [vmem:[%s4 + $0x44] sm:$0xf]
      %v1619 = vld [vmem:[%s5] sm:$0x1]
      %v1621 = vlaneseq
      %v1622 = vshrl.u32 %v1621, 7
      %v1623 = vsub.s32 0, %v1622
      %v1624 = vrot.slane %v1619, %v1623
      %v1644 = vunpack.c.l.b16 %v1601
      %v1645 = vunpack.c.l.b16 %v1602
      %v1646 = vunpack.c.l.b16 %v1603
      %v1647 = vunpack.c.l.b16 %v1604
      %v1648 = vunpack.c.l.b16 %v1605
      %v1649 = vunpack.c.l.b16 %v1606
      %v1650 = vunpack.c.l.b16 %v1607
      %v1651 = vunpack.c.l.b16 %v1608
      %v1652 = vunpack.c.l.b16 %v1609
      %v1653 = vunpack.c.l.b16 %v1610
      %v1654 = vunpack.c.l.b16 %v1611
      %v1655 = vunpack.c.l.b16 %v1612
      %v1656 = vunpack.c.l.b16 %v1613
      %v1657 = vunpack.c.l.b16 %v1614
      %v1658 = vunpack.c.l.b16 %v1615
      %v1659 = vunpack.c.l.b16 %v1616
      %v1660 = vunpack.c.l.b16 %v1617
      %v1661 = vunpack.c.l.b16 %v1618
      %v1662 = vpack.c.b16 %v1645, %v1644
      %v1663 = vpack.c.b16 %v1647, %v1646
      %v1664 = vpack.c.b16 %v1649, %v1648
      %v1665 = vpack.c.b16 %v1651, %v1650
      %v1666 = vpack.c.b16 %v1653, %v1652
      %v1667 = vpack.c.b16 %v1655, %v1654
      %v1668 = vpack.c.b16 %v1657, %v1656
      %v1669 = vpack.c.b16 %v1659, %v1658
      %v1670 = vpack.c.b16 %v1661, %v1660
      %v1681 = vsel %vm641, %v1588, 0
      %v1684 = vsel %vm641, %v1590, 0
      %v1687 = vsel %vm641, %v1592, 0
      %v1690 = vsel %vm641, %v1594, 0
      %v1693 = vsel %vm641, %v1596, 0
      %v1696 = vsel %vm641, %v1598, 0
      %v1699 = vsel %vm641, %v1600, 0
      %1701 = vmatprep.subr.bf16.mxu0 0
      %1702 = vmatpush1.bf16.msra.mxu0 %v1662
      %1703 = vmatprep.subr.bf16.mxu0 0
      %1704 = vmatpush1.bf16.msra.mxu0 %v1663
      %1705 = vmatprep.subr.bf16.mxu0 0
      %1706 = vmatpush1.bf16.msra.mxu0 %v1664
      %1707 = vmatprep.subr.bf16.mxu0 0
      %1708 = vmatpush1.bf16.msra.mxu0 %v1665
      %1709 = vmatprep.subr.bf16.mxu0 0
      %1710 = vmatpush1.bf16.msra.mxu0 %v1666
      %1711 = vmatprep.subr.bf16.mxu0 0
      %1712 = vmatpush1.bf16.msra.mxu0 %v1667
      %1713 = vmatprep.subr.bf16.mxu0 0
      %1714 = vmatpush1.bf16.msra.mxu0 %v1668
      %1715 = vmatprep.subr.bf16.mxu0 0
      %1716 = vmatpush1.bf16.msra.mxu0 %v1669
      %1717 = vmatprep.subr.bf16.mxu0 0
      %1718 = vmatpush1.bf16.msra.mxu0 %v1670
      %1719 = vmatprep.subr.bf16.mxu0 0
      %1720 = vmatpush1.bf16.msra.mxu0 0
      %1721 = vmatprep.subr.bf16.mxu0 0
      %1722 = vmatpush1.bf16.msra.mxu0 0
      %1723 = vmatprep.subr.bf16.mxu0 0
      %1724 = vmatpush1.bf16.msra.mxu0 0
      %1725 = vmatprep.subr.bf16.mxu0 0
      %1726 = vmatpush1.bf16.msra.mxu0 0
      %1727 = vmatprep.subr.bf16.mxu0 0
      %1728 = vmatpush1.bf16.msra.mxu0 0
      %1729 = vmatprep.subr.bf16.mxu0 0
      %1730 = vmatpush1.bf16.msra.mxu0 0
      %1731 = vmatprep.subr.bf16.mxu0 0
      %1732 = vmatpush1.bf16.msra.mxu0 0
      %1733 = vmatprep.mubr.bf16.mxu0 %v1681
      %1734 = vmatmul.mubr.bf16.gmra.mrb[0].mxu0 %v1587
      %v1735 = vpop.f32.mrb[0].mxu0
      %v1736 = vadd.f32 %v1624, %v1735
      %v1737 = vpop.f32.mrb[0].mxu0
      %v1738 = vpop.f32.mrb[0].mxu0
      %v1739 = vadd.f32 %v1624, %v1738
      %v1740 = vpop.f32.mrb[0].mxu0
      %1741 = vmatprep.mubr.bf16.mxu0 %v1684
      %1742 = vmatmul.mubr.bf16.gmra.mrb[0].mxu0 %v1589
      %v1743 = vpop.f32.mrb[0].mxu0
      %v1744 = vadd.f32 %v1624, %v1743
      %v1745 = vpop.f32.mrb[0].mxu0
      %v1746 = vpop.f32.mrb[0].mxu0
      %v1747 = vadd.f32 %v1624, %v1746
      %v1748 = vpop.f32.mrb[0].mxu0
      %1749 = vmatprep.mubr.bf16.mxu0 %v1687
      %1750 = vmatmul.mubr.bf16.gmra.mrb[0].mxu0 %v1591
      %v1751 = vpop.f32.mrb[0].mxu0
      %v1752 = vadd.f32 %v1624, %v1751
      %v1753 = vpop.f32.mrb[0].mxu0
      %v1754 = vpop.f32.mrb[0].mxu0
      %v1755 = vadd.f32 %v1624, %v1754
      %v1756 = vpop.f32.mrb[0].mxu0
      %1757 = vmatprep.mubr.bf16.mxu0 %v1690
      %1758 = vmatmul.mubr.bf16.gmra.mrb[0].mxu0 %v1593
      %v1759 = vpop.f32.mrb[0].mxu0
      %v1760 = vadd.f32 %v1624, %v1759
      %v1761 = vpop.f32.mrb[0].mxu0
      %v1762 = vpop.f32.mrb[0].mxu0
      %v1763 = vadd.f32 %v1624, %v1762
      %v1764 = vpop.f32.mrb[0].mxu0
      %1765 = vmatprep.mubr.bf16.mxu0 %v1693
      %1766 = vmatmul.mubr.bf16.gmra.mrb[0].mxu0 %v1595
      %v1767 = vpop.f32.mrb[0].mxu0
      %v1768 = vadd.f32 %v1624, %v1767
      %v1769 = vpop.f32.mrb[0].mxu0
      %v1770 = vpop.f32.mrb[0].mxu0
      %v1771 = vadd.f32 %v1624, %v1770
      %v1772 = vpop.f32.mrb[0].mxu0
      %1773 = vmatprep.mubr.bf16.mxu0 %v1696
      %1774 = vmatmul.mubr.bf16.gmra.mrb[0].mxu0 %v1597
      %v1775 = vpop.f32.mrb[0].mxu0
      %v1776 = vpop.f32.mrb[0].mxu0
      %v1777 = vpop.f32.mrb[0].mxu0
      %v1778 = vpop.f32.mrb[0].mxu0
      %1779 = vmatprep.mubr.bf16.mxu0 %v1699
      %1780 = vmatmul.mubr.bf16.gmra.mrb[0].mxu0 %v1599
      %v1781 = vpop.f32.mrb[0].mxu0
      %v1782 = vpop.f32.mrb[0].mxu0
      %v1783 = vpop.f32.mrb[0].mxu0
      %v1784 = vpop.f32.mrb[0].mxu0
      %1785 = vdwg.mxu0
      %v1786 = vmax.f32 %v1736, 0.0
      %v1787 = vmax.f32 %v1739, 0.0
      %v1788 = vmax.f32 %v1744, 0.0
      %v1789 = vmax.f32 %v1747, 0.0
      %v1790 = vmax.f32 %v1752, 0.0
      %v1791 = vmax.f32 %v1755, 0.0
      %v1792 = vmax.f32 %v1760, 0.0
      %v1793 = vmax.f32 %v1763, 0.0
      %v1794 = vmax.f32 %v1768, 0.0
      %v1795 = vmax.f32 %v1771, 0.0
      %v1796 = vpack.c.bf16 %v1787, %v1786
      %v1797 = vpack.c.bf16 %v1789, %v1788
      %v1798 = vpack.c.bf16 %v1791, %v1790
      %v1799 = vpack.c.bf16 %v1793, %v1792
      %v1800 = vpack.c.bf16 %v1795, %v1794
      %v1806 = vunpack.c.l.b16 %v1796
      %v1807 = vunpack.c.h.b16 %v1796
      %v1808 = vunpack.c.l.b16 %v1797
      %v1809 = vunpack.c.h.b16 %v1797
      %v1810 = vunpack.c.l.b16 %v1798
      %v1811 = vunpack.c.h.b16 %v1798
      %v1812 = vunpack.c.l.b16 %v1799
      %v1813 = vunpack.c.h.b16 %v1799
      %v1814 = vunpack.c.l.b16 %v1800
      %v1815 = vunpack.c.h.b16 %v1800
      %v1816 = vpack.c.b16 %v1806, %v1806
      %v1817 = vpack.c.b16 %v1807, %v1807
      %v1818 = vpack.c.b16 %v1808, %v1808
      %v1819 = vpack.c.b16 %v1809, %v1809
      %v1820 = vpack.c.b16 %v1810, %v1810
      %v1821 = vpack.c.b16 %v1811, %v1811
      %v1822 = vpack.c.b16 %v1812, %v1812
      %v1823 = vpack.c.b16 %v1813, %v1813
      %v1824 = vpack.c.b16 %v1814, %v1814
      %v1825 = vpack.c.b16 %v1815, %v1815
      %vm1836 = vcmask 257024
      %1837 = vst.msk [vmem:[%s253] sm:$0xf] %vm1836, %v1816
      %1838 = vst.msk [vmem:[%s253 + $0x4] sm:$0xf] %vm1836, %v1817
      %1839 = vst.msk [vmem:[%s253 + $0x8] sm:$0xf] %vm1836, %v1818
      %1840 = vst.msk [vmem:[%s253 + $0xc] sm:$0xf] %vm1836, %v1819
      %1841 = vst.msk [vmem:[%s253 + $0x10] sm:$0xf] %vm1836, %v1820
      %1842 = vst.msk [vmem:[%s253 + $0x14] sm:$0xf] %vm1836, %v1821
      %1843 = vst.msk [vmem:[%s253 + $0x18] sm:$0xf] %vm1836, %v1822
      %1844 = vst.msk [vmem:[%s253 + $0x1c] sm:$0xf] %vm1836, %v1823
      %1845 = vst.msk [vmem:[%s253 + $0x20] sm:$0xf] %vm1836, %v1824
      %1846 = vst.msk [vmem:[%s253 + $0x24] sm:$0xf] %vm1836, %v1825
      %s1847 = smul.u32 10, %s17
      %p1848 = scmp.lt.s32.totalorder %s1847, 19
      %s1849 = scalar_select %p1848, %s1847, 19
      %s1850 = smul.addr %s1849, 4
      %s1851 = scalar_lea.vmem %s6, %s1850
      // Predicated region
      $region45: #{custom_cnn_forward.2} parent=43 // pred_check
        %p1852 = pneg %p166
      $region46: #{custom_cnn_forward.2} parent=43 // pred_check_branch
        %1854 = sbr.rel (%p1852) target = $region48
      $region47: #{custom_cnn_forward.2} parent=43 // pred_region
        %s1855 = smul.u32 10, %s17
      $region48: #{custom_cnn_forward.2} parent=43 // pred_fallthru
        _
    $region44: #{custom_cnn_forward.2} parent=5 // pred_fallthru
      _
    %p1856 = scmp.le.s32.totalorder 2, %s12
    // Predicated region
    $region49: #{custom_cnn_forward.2} parent=5 // pred_check
      %p1857 = pneg %p1856
    $region50: #{custom_cnn_forward.2} parent=5 // pred_check_branch
      %1859 = sbr.rel (%p1857) target = $region52
    $region51: #{custom_cnn_forward.2} parent=5 // pred_region
      %s1860 = ssub.s32 %s12, 2
      // Predicated region
      $region53: #{custom_cnn_forward.2} parent=51 // pred_check
        %p1861 = pneg %p172
      $region54: #{custom_cnn_forward.2} parent=51 // pred_check_branch
        %1863 = sbr.rel (%p1861) target = $region56
      $region55: #{custom_cnn_forward.2} parent=51 // pred_region
        %s1864 = smul.u32 10, %s18
        %p1865 = scmp.lt.s32.totalorder %s1864, 19
        %s1866 = scalar_select %p1865, %s1864, 19
        %s1867 = smul.addr %s1866, 4
        %s1868 = scalar_lea.vmem %s6, %s1867
      $region56: #{custom_cnn_forward.2} parent=51 // pred_fallthru
        _
    $region52: #{custom_cnn_forward.2} parent=5 // pred_fallthru
      _
  $region6: #{custom_cnn_forward.2} parent=0 // loop_footer
    %s16 = sadd.s32 1, %s12
  $region7: #{custom_cnn_forward.2} parent=0 // loop_footer_branch
    %11 = sbr.rel target = $region3
  $region8: #{custom_cnn_forward.2} parent=0 // loop_exit
    _

// kernel: custom_cnn_forward.3
$region0: #{custom_cnn_forward.3}
  #allocation0 [shape = 'u32[]', space=smem, size = 0x4, offset = 0x4, fixed_abs, tag = 'smem constant byte address 0x4 - core index']
  #allocation1 [shape = 'u32[144,128]{1,0:T(1,128)}', space=vmem, size = 0x12000, scoped, tag = 'internal scratch']
  %s0 = inlined_call_operand.vmem [shape: bf16[2,2560], index: 0, kind: input, shape index: {}]
  %s1 = inlined_call_operand.vmem [shape: bf16[2560,128], index: 1, kind: input, shape index: {}]
  %s2 = inlined_call_operand.vmem [shape: f32[1,128], index: 2, kind: input, shape index: {}]
  %s3 = inlined_call_operand.vmem [shape: bf16[128,128], index: 3, kind: input, shape index: {}]
  %s4 = inlined_call_operand.vmem [shape: f32[1,128], index: 4, kind: input, shape index: {}]
  %s5 = inlined_call_operand.vmem [shape: bf16[128,8], index: 5, kind: input, shape index: {}]
  %s6 = inlined_call_operand.vmem [shape: f32[1,8], index: 6, kind: input, shape index: {}]
  %s7 = inlined_call_operand.hbm [shape: f32[2,8], index: 7, kind: output, shape index: {}]
  %s8 = sld [smem:[#allocation0]]
  $region38: #{custom_cnn_forward.3} parent=0
    _
  %s10 = ssub.s32 1, %s8
  %s11 = scalar_select 0, %s10, %s8
  $region1: #{custom_cnn_forward.3} parent=0
    #allocation2 [shape = 'u8[1024]{0}', space=vmem, size = 0x400, scoped, tag = 'output window, operand 0, single buffered']
    #allocation3 [shape = 's32[1]{0}', space=sflag, size = 0x4, scoped, tag = 'scoped memory for custom_cnn_forward.3']
    %12 = vsyncpa [#allocation3], 0
    // Predicated region
    $region2: #{custom_cnn_forward.3} parent=1 // pred_check
      _
    $region3: #{custom_cnn_forward.3} parent=1 // pred_check_branch
      %14 = sbr.rel (0) target = $region5
    $region4: #{custom_cnn_forward.3} parent=1 // pred_region
      _
    $region5: #{custom_cnn_forward.3} parent=1 // pred_fallthru
      _
    // Predicated region
    $region6: #{custom_cnn_forward.3} parent=1 // pred_check
      _
    $region7: #{custom_cnn_forward.3} parent=1 // pred_check_branch
      %16 = sbr.rel (0) target = $region9
    $region8: #{custom_cnn_forward.3} parent=1 // pred_region
      _
    $region9: #{custom_cnn_forward.3} parent=1 // pred_fallthru
      _
    // Predicated region
    $region10: #{custom_cnn_forward.3} parent=1 // pred_check
      _
    $region11: #{custom_cnn_forward.3} parent=1 // pred_check_branch
      %18 = sbr.rel (0) target = $region13
    $region12: #{custom_cnn_forward.3} parent=1 // pred_region
      _
    $region13: #{custom_cnn_forward.3} parent=1 // pred_fallthru
      _
    // Predicated region
    $region14: #{custom_cnn_forward.3} parent=1 // pred_check
      _
    $region15: #{custom_cnn_forward.3} parent=1 // pred_check_branch
      %20 = sbr.rel (0) target = $region17
    $region16: #{custom_cnn_forward.3} parent=1 // pred_region
      _
    $region17: #{custom_cnn_forward.3} parent=1 // pred_fallthru
      _
    // Predicated region
    $region18: #{custom_cnn_forward.3} parent=1 // pred_check
      _
    $region19: #{custom_cnn_forward.3} parent=1 // pred_check_branch
      %22 = sbr.rel (0) target = $region21
    $region20: #{custom_cnn_forward.3} parent=1 // pred_region
      _
    $region21: #{custom_cnn_forward.3} parent=1 // pred_fallthru
      _
    // Predicated region
    $region22: #{custom_cnn_forward.3} parent=1 // pred_check
      _
    $region23: #{custom_cnn_forward.3} parent=1 // pred_check_branch
      %24 = sbr.rel (0) target = $region25
    $region24: #{custom_cnn_forward.3} parent=1 // pred_region
      _
    $region25: #{custom_cnn_forward.3} parent=1 // pred_fallthru
      _
    // Predicated region
    $region26: #{custom_cnn_forward.3} parent=1 // pred_check
      _
    $region27: #{custom_cnn_forward.3} parent=1 // pred_check_branch
      %26 = sbr.rel (0) target = $region29
    $region28: #{custom_cnn_forward.3} parent=1 // pred_region
      _
    $region29: #{custom_cnn_forward.3} parent=1 // pred_fallthru
      _
    %v28 = vld [vmem:[%s0] sm:$0xff]
    %v29 = vld [vmem:[%s0 + $0x8] sm:$0xff]
    %v30 = vld [vmem:[%s0 + $0x10] sm:$0xf]
    %v31 = vld [vmem:[%s1] sm:$0xf]
    %v32 = vld [vmem:[%s1 + $0x4] sm:$0xf]
    %v33 = vld [vmem:[%s1 + $0x8] sm:$0xf]
    %v34 = vld [vmem:[%s1 + $0xc] sm:$0xf]
    %v35 = vld [vmem:[%s1 + $0x10] sm:$0xf]
    %v36 = vld [vmem:[%s1 + $0x14] sm:$0xf]
    %v37 = vld [vmem:[%s1 + $0x18] sm:$0xf]
    %v38 = vld [vmem:[%s1 + $0x1c] sm:$0xf]
    %v39 = vld [vmem:[%s1 + $0x20] sm:$0xf]
    %v40 = vld [vmem:[%s1 + $0x24] sm:$0xf]
    %v41 = vld [vmem:[%s1 + $0x28] sm:$0xf]
    %v42 = vld [vmem:[%s1 + $0x2c] sm:$0xf]
    %v43 = vld [vmem:[%s1 + $0x30] sm:$0xf]
    %v44 = vld [vmem:[%s1 + $0x34] sm:$0xf]
    %v45 = vld [vmem:[%s1 + $0x38] sm:$0xf]
    %v46 = vld [vmem:[%s1 + $0x3c] sm:$0xf]
    %v47 = vld [vmem:[%s1 + $0x40] sm:$0xf]
    %v48 = vld [vmem:[%s1 + $0x44] sm:$0xf]
    %v49 = vld [vmem:[%s1 + $0x48] sm:$0xf]
    %v50 = vld [vmem:[%s1 + $0x4c] sm:$0xf]
    %v51 = vld [vmem:[%s1 + $0x50] sm:$0xf]
    %v52 = vld [vmem:[%s1 + $0x54] sm:$0xf]
    %v53 = vld [vmem:[%s1 + $0x58] sm:$0xf]
    %v54 = vld [vmem:[%s1 + $0x5c] sm:$0xf]
    %v55 = vld [vmem:[%s1 + $0x60] sm:$0xf]
    %v56 = vld [vmem:[%s1 + $0x64] sm:$0xf]
    %v57 = vld [vmem:[%s1 + $0x68] sm:$0xf]
    %v58 = vld [vmem:[%s1 + $0x6c] sm:$0xf]
    %v59 = vld [vmem:[%s1 + $0x70] sm:$0xf]
    %v60 = vld [vmem:[%s1 + $0x74] sm:$0xf]
    %v61 = vld [vmem:[%s1 + $0x78] sm:$0xf]
    %v62 = vld [vmem:[%s1 + $0x7c] sm:$0xf]
    %v63 = vld [vmem:[%s1 + $0x80] sm:$0xf]
    %v64 = vld [vmem:[%s1 + $0x84] sm:$0xf]
    %v65 = vld [vmem:[%s1 + $0x88] sm:$0xf]
    %v66 = vld [vmem:[%s1 + $0x8c] sm:$0xf]
    %v67 = vld [vmem:[%s1 + $0x90] sm:$0xf]
    %v68 = vld [vmem:[%s1 + $0x94] sm:$0xf]
    %v69 = vld [vmem:[%s1 + $0x98] sm:$0xf]
    %v70 = vld [vmem:[%s1 + $0x9c] sm:$0xf]
    %v71 = vld [vmem:[%s1 + $0xa0] sm:$0xf]
    %v72 = vld [vmem:[%s1 + $0xa4] sm:$0xf]
    %v73 = vld [vmem:[%s1 + $0xa8] sm:$0xf]
    %v74 = vld [vmem:[%s1 + $0xac] sm:$0xf]
    %v75 = vld [vmem:[%s1 + $0xb0] sm:$0xf]
    %v76 = vld [vmem:[%s1 + $0xb4] sm:$0xf]
    %v77 = vld [vmem:[%s1 + $0xb8] sm:$0xf]
    %v78 = vld [vmem:[%s1 + $0xbc] sm:$0xf]
    %v79 = vld [vmem:[%s1 + $0xc0] sm:$0xf]
    %v80 = vld [vmem:[%s1 + $0xc4] sm:$0xf]
    %v81 = vld [vmem:[%s1 + $0xc8] sm:$0xf]
    %v82 = vld [vmem:[%s1 + $0xcc] sm:$0xf]
    %v83 = vld [vmem:[%s1 + $0xd0] sm:$0xf]
    %v84 = vld [vmem:[%s1 + $0xd4] sm:$0xf]
    %v85 = vld [vmem:[%s1 + $0xd8] sm:$0xf]
    %v86 = vld [vmem:[%s1 + $0xdc] sm:$0xf]
    %v87 = vld [vmem:[%s1 + $0xe0] sm:$0xf]
    %v88 = vld [vmem:[%s1 + $0xe4] sm:$0xf]
    %v89 = vld [vmem:[%s1 + $0xe8] sm:$0xf]
    %v90 = vld [vmem:[%s1 + $0xec] sm:$0xf]
    %v91 = vld [vmem:[%s1 + $0xf0] sm:$0xf]
    %v92 = vld [vmem:[%s1 + $0xf4] sm:$0xf]
    %v93 = vld [vmem:[%s1 + $0xf8] sm:$0xf]
    %v94 = vld [vmem:[%s1 + $0xfc] sm:$0xf]
    %v95 = vld [vmem:[%s1 + $0x100] sm:$0xf]
    %v96 = vld [vmem:[%s1 + $0x104] sm:$0xf]
    %v97 = vld [vmem:[%s1 + $0x108] sm:$0xf]
    %v98 = vld [vmem:[%s1 + $0x10c] sm:$0xf]
    %v99 = vld [vmem:[%s1 + $0x110] sm:$0xf]
    %v100 = vld [vmem:[%s1 + $0x114] sm:$0xf]
    %v101 = vld [vmem:[%s1 + $0x118] sm:$0xf]
    %v102 = vld [vmem:[%s1 + $0x11c] sm:$0xf]
    %v103 = vld [vmem:[%s1 + $0x120] sm:$0xf]
    %v104 = vld [vmem:[%s1 + $0x124] sm:$0xf]
    %v105 = vld [vmem:[%s1 + $0x128] sm:$0xf]
    %v106 = vld [vmem:[%s1 + $0x12c] sm:$0xf]
    %v107 = vld [vmem:[%s1 + $0x130] sm:$0xf]
    %v108 = vld [vmem:[%s1 + $0x134] sm:$0xf]
    %v109 = vld [vmem:[%s1 + $0x138] sm:$0xf]
    %v110 = vld [vmem:[%s1 + $0x13c] sm:$0xf]
    %v111 = vld [vmem:[%s1 + $0x140] sm:$0xf]
    %v112 = vld [vmem:[%s1 + $0x144] sm:$0xf]
    %v113 = vld [vmem:[%s1 + $0x148] sm:$0xf]
    %v114 = vld [vmem:[%s1 + $0x14c] sm:$0xf]
    %v115 = vld [vmem:[%s1 + $0x150] sm:$0xf]
    %v116 = vld [vmem:[%s1 + $0x154] sm:$0xf]
    %v117 = vld [vmem:[%s1 + $0x158] sm:$0xf]
    %v118 = vld [vmem:[%s1 + $0x15c] sm:$0xf]
    %v119 = vld [vmem:[%s1 + $0x160] sm:$0xf]
    %v120 = vld [vmem:[%s1 + $0x164] sm:$0xf]
    %v121 = vld [vmem:[%s1 + $0x168] sm:$0xf]
    %v122 = vld [vmem:[%s1 + $0x16c] sm:$0xf]
    %v123 = vld [vmem:[%s1 + $0x170] sm:$0xf]
    %v124 = vld [vmem:[%s1 + $0x174] sm:$0xf]
    %v125 = vld [vmem:[%s1 + $0x178] sm:$0xf]
    %v126 = vld [vmem:[%s1 + $0x17c] sm:$0xf]
    %v127 = vld [vmem:[%s1 + $0x180] sm:$0xf]
    %v128 = vld [vmem:[%s1 + $0x184] sm:$0xf]
    %v129 = vld [vmem:[%s1 + $0x188] sm:$0xf]
    %v130 = vld [vmem:[%s1 + $0x18c] sm:$0xf]
    %v131 = vld [vmem:[%s1 + $0x190] sm:$0xf]
    %v132 = vld [vmem:[%s1 + $0x194] sm:$0xf]
    %v133 = vld [vmem:[%s1 + $0x198] sm:$0xf]
    %v134 = vld [vmem:[%s1 + $0x19c] sm:$0xf]
    %v135 = vld [vmem:[%s1 + $0x1a0] sm:$0xf]
    %v136 = vld [vmem:[%s1 + $0x1a4] sm:$0xf]
    %v137 = vld [vmem:[%s1 + $0x1a8] sm:$0xf]
    %v138 = vld [vmem:[%s1 + $0x1ac] sm:$0xf]
    %v139 = vld [vmem:[%s1 + $0x1b0] sm:$0xf]
    %v140 = vld [vmem:[%s1 + $0x1b4] sm:$0xf]
    %v141 = vld [vmem:[%s1 + $0x1b8] sm:$0xf]
    %v142 = vld [vmem:[%s1 + $0x1bc] sm:$0xf]
    %v143 = vld [vmem:[%s1 + $0x1c0] sm:$0xf]
    %v144 = vld [vmem:[%s1 + $0x1c4] sm:$0xf]
    %v145 = vld [vmem:[%s1 + $0x1c8] sm:$0xf]
    %v146 = vld [vmem:[%s1 + $0x1cc] sm:$0xf]
    %v147 = vld [vmem:[%s1 + $0x1d0] sm:$0xf]
    %v148 = vld [vmem:[%s1 + $0x1d4] sm:$0xf]
    %v149 = vld [vmem:[%s1 + $0x1d8] sm:$0xf]
    %v150 = vld [vmem:[%s1 + $0x1dc] sm:$0xf]
    %v151 = vld [vmem:[%s1 + $0x1e0] sm:$0xf]
    %v152 = vld [vmem:[%s1 + $0x1e4] sm:$0xf]
    %v153 = vld [vmem:[%s1 + $0x1e8] sm:$0xf]
    %v154 = vld [vmem:[%s1 + $0x1ec] sm:$0xf]
    %v155 = vld [vmem:[%s1 + $0x1f0] sm:$0xf]
    %v156 = vld [vmem:[%s1 + $0x1f4] sm:$0xf]
    %v157 = vld [vmem:[%s1 + $0x1f8] sm:$0xf]
    %v158 = vld [vmem:[%s1 + $0x1fc] sm:$0xf]
    %v159 = vld [vmem:[%s1 + $0x200] sm:$0xf]
    %v160 = vld [vmem:[%s1 + $0x204] sm:$0xf]
    %v161 = vld [vmem:[%s1 + $0x208] sm:$0xf]
    %v162 = vld [vmem:[%s1 + $0x20c] sm:$0xf]
    %v163 = vld [vmem:[%s1 + $0x210] sm:$0xf]
    %v164 = vld [vmem:[%s1 + $0x214] sm:$0xf]
    %v165 = vld [vmem:[%s1 + $0x218] sm:$0xf]
    %v166 = vld [vmem:[%s1 + $0x21c] sm:$0xf]
    %v167 = vld [vmem:[%s1 + $0x220] sm:$0xf]
    %v168 = vld [vmem:[%s1 + $0x224] sm:$0xf]
    %v169 = vld [vmem:[%s1 + $0x228] sm:$0xf]
    %v170 = vld [vmem:[%s1 + $0x22c] sm:$0xf]
    %v171 = vld [vmem:[%s1 + $0x230] sm:$0xf]
    %v172 = vld [vmem:[%s1 + $0x234] sm:$0xf]
    %v173 = vld [vmem:[%s1 + $0x238] sm:$0xf]
    %v174 = vld [vmem:[%s1 + $0x23c] sm:$0xf]
    %v175 = vld [vmem:[%s1 + $0x240] sm:$0xf]
    %v176 = vld [vmem:[%s1 + $0x244] sm:$0xf]
    %v177 = vld [vmem:[%s1 + $0x248] sm:$0xf]
    %v178 = vld [vmem:[%s1 + $0x24c] sm:$0xf]
    %v179 = vld [vmem:[%s1 + $0x250] sm:$0xf]
    %v180 = vld [vmem:[%s1 + $0x254] sm:$0xf]
    %v181 = vld [vmem:[%s1 + $0x258] sm:$0xf]
    %v182 = vld [vmem:[%s1 + $0x25c] sm:$0xf]
    %v183 = vld [vmem:[%s1 + $0x260] sm:$0xf]
    %v184 = vld [vmem:[%s1 + $0x264] sm:$0xf]
    %v185 = vld [vmem:[%s1 + $0x268] sm:$0xf]
    %v186 = vld [vmem:[%s1 + $0x26c] sm:$0xf]
    %v187 = vld [vmem:[%s1 + $0x270] sm:$0xf]
    %v188 = vld [vmem:[%s1 + $0x274] sm:$0xf]
    %v189 = vld [vmem:[%s1 + $0x278] sm:$0xf]
    %v190 = vld [vmem:[%s1 + $0x27c] sm:$0xf]
    %v191 = vld [vmem:[%s1 + $0x280] sm:$0xf]
    %v192 = vld [vmem:[%s1 + $0x284] sm:$0xf]
    %v193 = vld [vmem:[%s1 + $0x288] sm:$0xf]
    %v194 = vld [vmem:[%s1 + $0x28c] sm:$0xf]
    %v195 = vld [vmem:[%s1 + $0x290] sm:$0xf]
    %v196 = vld [vmem:[%s1 + $0x294] sm:$0xf]
    %v197 = vld [vmem:[%s1 + $0x298] sm:$0xf]
    %v198 = vld [vmem:[%s1 + $0x29c] sm:$0xf]
    %v199 = vld [vmem:[%s1 + $0x2a0] sm:$0xf]
    %v200 = vld [vmem:[%s1 + $0x2a4] sm:$0xf]
    %v201 = vld [vmem:[%s1 + $0x2a8] sm:$0xf]
    %v202 = vld [vmem:[%s1 + $0x2ac] sm:$0xf]
    %v203 = vld [vmem:[%s1 + $0x2b0] sm:$0xf]
    %v204 = vld [vmem:[%s1 + $0x2b4] sm:$0xf]
    %v205 = vld [vmem:[%s1 + $0x2b8] sm:$0xf]
    %v206 = vld [vmem:[%s1 + $0x2bc] sm:$0xf]
    %v207 = vld [vmem:[%s1 + $0x2c0] sm:$0xf]
    %v208 = vld [vmem:[%s1 + $0x2c4] sm:$0xf]
    %v209 = vld [vmem:[%s1 + $0x2c8] sm:$0xf]
    %v210 = vld [vmem:[%s1 + $0x2cc] sm:$0xf]
    %v211 = vld [vmem:[%s1 + $0x2d0] sm:$0xf]
    %v212 = vld [vmem:[%s1 + $0x2d4] sm:$0xf]
    %v213 = vld [vmem:[%s1 + $0x2d8] sm:$0xf]
    %v214 = vld [vmem:[%s1 + $0x2dc] sm:$0xf]
    %v215 = vld [vmem:[%s1 + $0x2e0] sm:$0xf]
    %v216 = vld [vmem:[%s1 + $0x2e4] sm:$0xf]
    %v217 = vld [vmem:[%s1 + $0x2e8] sm:$0xf]
    %v218 = vld [vmem:[%s1 + $0x2ec] sm:$0xf]
    %v219 = vld [vmem:[%s1 + $0x2f0] sm:$0xf]
    %v220 = vld [vmem:[%s1 + $0x2f4] sm:$0xf]
    %v221 = vld [vmem:[%s1 + $0x2f8] sm:$0xf]
    %v222 = vld [vmem:[%s1 + $0x2fc] sm:$0xf]
    %v223 = vld [vmem:[%s1 + $0x300] sm:$0xf]
    %v224 = vld [vmem:[%s1 + $0x304] sm:$0xf]
    %v225 = vld [vmem:[%s1 + $0x308] sm:$0xf]
    %v226 = vld [vmem:[%s1 + $0x30c] sm:$0xf]
    %v227 = vld [vmem:[%s1 + $0x310] sm:$0xf]
    %v228 = vld [vmem:[%s1 + $0x314] sm:$0xf]
    %v229 = vld [vmem:[%s1 + $0x318] sm:$0xf]
    %v230 = vld [vmem:[%s1 + $0x31c] sm:$0xf]
    %v231 = vld [vmem:[%s1 + $0x320] sm:$0xf]
    %v232 = vld [vmem:[%s1 + $0x324] sm:$0xf]
    %v233 = vld [vmem:[%s1 + $0x328] sm:$0xf]
    %v234 = vld [vmem:[%s1 + $0x32c] sm:$0xf]
    %v235 = vld [vmem:[%s1 + $0x330] sm:$0xf]
    %v236 = vld [vmem:[%s1 + $0x334] sm:$0xf]
    %v237 = vld [vmem:[%s1 + $0x338] sm:$0xf]
    %v238 = vld [vmem:[%s1 + $0x33c] sm:$0xf]
    %v239 = vld [vmem:[%s1 + $0x340] sm:$0xf]
    %v240 = vld [vmem:[%s1 + $0x344] sm:$0xf]
    %v241 = vld [vmem:[%s1 + $0x348] sm:$0xf]
    %v242 = vld [vmem:[%s1 + $0x34c] sm:$0xf]
    %v243 = vld [vmem:[%s1 + $0x350] sm:$0xf]
    %v244 = vld [vmem:[%s1 + $0x354] sm:$0xf]
    %v245 = vld [vmem:[%s1 + $0x358] sm:$0xf]
    %v246 = vld [vmem:[%s1 + $0x35c] sm:$0xf]
    %v247 = vld [vmem:[%s1 + $0x360] sm:$0xf]
    %v248 = vld [vmem:[%s1 + $0x364] sm:$0xf]
    %v249 = vld [vmem:[%s1 + $0x368] sm:$0xf]
    %v250 = vld [vmem:[%s1 + $0x36c] sm:$0xf]
    %v251 = vld [vmem:[%s1 + $0x370] sm:$0xf]
    %v252 = vld [vmem:[%s1 + $0x374] sm:$0xf]
    %v253 = vld [vmem:[%s1 + $0x378] sm:$0xf]
    %v254 = vld [vmem:[%s1 + $0x37c] sm:$0xf]
    %v255 = vld [vmem:[%s1 + $0x380] sm:$0xf]
    %v256 = vld [vmem:[%s1 + $0x384] sm:$0xf]
    %v257 = vld [vmem:[%s1 + $0x388] sm:$0xf]
    %v258 = vld [vmem:[%s1 + $0x38c] sm:$0xf]
    %v259 = vld [vmem:[%s1 + $0x390] sm:$0xf]
    %v260 = vld [vmem:[%s1 + $0x394] sm:$0xf]
    %v261 = vld [vmem:[%s1 + $0x398] sm:$0xf]
    %v262 = vld [vmem:[%s1 + $0x39c] sm:$0xf]
    %v263 = vld [vmem:[%s1 + $0x3a0] sm:$0xf]
    %v264 = vld [vmem:[%s1 + $0x3a4] sm:$0xf]
    %v265 = vld [vmem:[%s1 + $0x3a8] sm:$0xf]
    %v266 = vld [vmem:[%s1 + $0x3ac] sm:$0xf]
    %v267 = vld [vmem:[%s1 + $0x3b0] sm:$0xf]
    %v268 = vld [vmem:[%s1 + $0x3b4] sm:$0xf]
    %v269 = vld [vmem:[%s1 + $0x3b8] sm:$0xf]
    %v270 = vld [vmem:[%s1 + $0x3bc] sm:$0xf]
    %v271 = vld [vmem:[%s1 + $0x3c0] sm:$0xf]
    %v272 = vld [vmem:[%s1 + $0x3c4] sm:$0xf]
    %v273 = vld [vmem:[%s1 + $0x3c8] sm:$0xf]
    %v274 = vld [vmem:[%s1 + $0x3cc] sm:$0xf]
    %v275 = vld [vmem:[%s1 + $0x3d0] sm:$0xf]
    %v276 = vld [vmem:[%s1 + $0x3d4] sm:$0xf]
    %v277 = vld [vmem:[%s1 + $0x3d8] sm:$0xf]
    %v278 = vld [vmem:[%s1 + $0x3dc] sm:$0xf]
    %v279 = vld [vmem:[%s1 + $0x3e0] sm:$0xf]
    %v280 = vld [vmem:[%s1 + $0x3e4] sm:$0xf]
    %v281 = vld [vmem:[%s1 + $0x3e8] sm:$0xf]
    %v282 = vld [vmem:[%s1 + $0x3ec] sm:$0xf]
    %v283 = vld [vmem:[%s1 + $0x3f0] sm:$0xf]
    %v284 = vld [vmem:[%s1 + $0x3f4] sm:$0xf]
    %v285 = vld [vmem:[%s1 + $0x3f8] sm:$0xf]
    %v286 = vld [vmem:[%s1 + $0x3fc] sm:$0xf]
    %v287 = vld [vmem:[%s1 + $0x400] sm:$0xf]
    %v288 = vld [vmem:[%s1 + $0x404] sm:$0xf]
    %v289 = vld [vmem:[%s1 + $0x408] sm:$0xf]
    %v290 = vld [vmem:[%s1 + $0x40c] sm:$0xf]
    %v291 = vld [vmem:[%s1 + $0x410] sm:$0xf]
    %v292 = vld [vmem:[%s1 + $0x414] sm:$0xf]
    %v293 = vld [vmem:[%s1 + $0x418] sm:$0xf]
    %v294 = vld [vmem:[%s1 + $0x41c] sm:$0xf]
    %v295 = vld [vmem:[%s1 + $0x420] sm:$0xf]
    %v296 = vld [vmem:[%s1 + $0x424] sm:$0xf]
    %v297 = vld [vmem:[%s1 + $0x428] sm:$0xf]
    %v298 = vld [vmem:[%s1 + $0x42c] sm:$0xf]
    %v299 = vld [vmem:[%s1 + $0x430] sm:$0xf]
    %v300 = vld [vmem:[%s1 + $0x434] sm:$0xf]
    %v301 = vld [vmem:[%s1 + $0x438] sm:$0xf]
    %v302 = vld [vmem:[%s1 + $0x43c] sm:$0xf]
    %v303 = vld [vmem:[%s1 + $0x440] sm:$0xf]
    %v304 = vld [vmem:[%s1 + $0x444] sm:$0xf]
    %v305 = vld [vmem:[%s1 + $0x448] sm:$0xf]
    %v306 = vld [vmem:[%s1 + $0x44c] sm:$0xf]
    %v307 = vld [vmem:[%s1 + $0x450] sm:$0xf]
    %v308 = vld [vmem:[%s1 + $0x454] sm:$0xf]
    %v309 = vld [vmem:[%s1 + $0x458] sm:$0xf]
    %v310 = vld [vmem:[%s1 + $0x45c] sm:$0xf]
    %v311 = vld [vmem:[%s1 + $0x460] sm:$0xf]
    %v312 = vld [vmem:[%s1 + $0x464] sm:$0xf]
    %v313 = vld [vmem:[%s1 + $0x468] sm:$0xf]
    %v314 = vld [vmem:[%s1 + $0x46c] sm:$0xf]
    %v315 = vld [vmem:[%s1 + $0x470] sm:$0xf]
    %v316 = vld [vmem:[%s1 + $0x474] sm:$0xf]
    %v317 = vld [vmem:[%s1 + $0x478] sm:$0xf]
    %v318 = vld [vmem:[%s1 + $0x47c] sm:$0xf]
    %v319 = vld [vmem:[%s1 + $0x480] sm:$0xf]
    %v320 = vld [vmem:[%s1 + $0x484] sm:$0xf]
    %v321 = vld [vmem:[%s1 + $0x488] sm:$0xf]
    %v322 = vld [vmem:[%s1 + $0x48c] sm:$0xf]
    %v323 = vld [vmem:[%s1 + $0x490] sm:$0xf]
    %v324 = vld [vmem:[%s1 + $0x494] sm:$0xf]
    %v325 = vld [vmem:[%s1 + $0x498] sm:$0xf]
    %v326 = vld [vmem:[%s1 + $0x49c] sm:$0xf]
    %v327 = vld [vmem:[%s1 + $0x4a0] sm:$0xf]
    %v328 = vld [vmem:[%s1 + $0x4a4] sm:$0xf]
    %v329 = vld [vmem:[%s1 + $0x4a8] sm:$0xf]
    %v330 = vld [vmem:[%s1 + $0x4ac] sm:$0xf]
    %v331 = vld [vmem:[%s1 + $0x4b0] sm:$0xf]
    %v332 = vld [vmem:[%s1 + $0x4b4] sm:$0xf]
    %v333 = vld [vmem:[%s1 + $0x4b8] sm:$0xf]
    %v334 = vld [vmem:[%s1 + $0x4bc] sm:$0xf]
    %v335 = vld [vmem:[%s1 + $0x4c0] sm:$0xf]
    %v336 = vld [vmem:[%s1 + $0x4c4] sm:$0xf]
    %v337 = vld [vmem:[%s1 + $0x4c8] sm:$0xf]
    %v338 = vld [vmem:[%s1 + $0x4cc] sm:$0xf]
    %v339 = vld [vmem:[%s1 + $0x4d0] sm:$0xf]
    %v340 = vld [vmem:[%s1 + $0x4d4] sm:$0xf]
    %v341 = vld [vmem:[%s1 + $0x4d8] sm:$0xf]
    %v342 = vld [vmem:[%s1 + $0x4dc] sm:$0xf]
    %v343 = vld [vmem:[%s1 + $0x4e0] sm:$0xf]
    %v344 = vld [vmem:[%s1 + $0x4e4] sm:$0xf]
    %v345 = vld [vmem:[%s1 + $0x4e8] sm:$0xf]
    %v346 = vld [vmem:[%s1 + $0x4ec] sm:$0xf]
    %v347 = vld [vmem:[%s1 + $0x4f0] sm:$0xf]
    %v348 = vld [vmem:[%s1 + $0x4f4] sm:$0xf]
    %v349 = vld [vmem:[%s1 + $0x4f8] sm:$0xf]
    %v350 = vld [vmem:[%s1 + $0x4fc] sm:$0xf]
    %v351 = vld [vmem:[%s2] sm:$0x1]
    %v353 = vlaneseq
    %v354 = vshrl.u32 %v353, 7
    %v355 = vsub.s32 0, %v354
    %v356 = vrot.slane %v351, %v355
    %v361 = vcombine.high %v28, %v28
    %v363 = vunpack.c.l.s4 1966171168
    %v364 = vunpack.c.0.s8 %v363
    %v365 = vlaneseq
    %v366 = vshrl.u32 %v365, 7
    %v367 = vsub.s32 %v364, %v366
    %v368 = vrot.slane %v28, %v367
    %v370 = vunpack.c.l.s4 1966171168
    %v371 = vunpack.c.0.s8 %v370
    %v372 = vlaneseq
    %v373 = vshrl.u32 %v372, 7
    %v374 = vsub.s32 %v371, %v373
    %v375 = vrot.slane %v361, %v374
    %v376 = vcombine.high %v368, %v368
    %v377 = vcombine.high %v375, %v375
    %v379 = vunpack.c.l.s4 1966171168
    %v380 = vunpack.c.0.s8 %v379
    %v381 = vlaneseq
    %v382 = vshrl.u32 %v381, 7
    %v383 = vsub.s32 %v380, %v382
    %v384 = vrot.slane %v368, %v383
    %v386 = vunpack.c.l.s4 1966171168
    %v387 = vunpack.c.0.s8 %v386
    %v388 = vlaneseq
    %v389 = vshrl.u32 %v388, 7
    %v390 = vsub.s32 %v387, %v389
    %v391 = vrot.slane %v375, %v390
    %v393 = vunpack.c.l.s4 1966171168
    %v394 = vunpack.c.0.s8 %v393
    %v395 = vlaneseq
    %v396 = vshrl.u32 %v395, 7
    %v397 = vsub.s32 %v394, %v396
    %v398 = vrot.slane %v376, %v397
    %v400 = vunpack.c.l.s4 1966171168
    %v401 = vunpack.c.0.s8 %v400
    %v402 = vlaneseq
    %v403 = vshrl.u32 %v402, 7
    %v404 = vsub.s32 %v401, %v403
    %v405 = vrot.slane %v377, %v404
    %v406 = vcombine.high %v384, %v384
    %v407 = vcombine.high %v391, %v391
    %v408 = vcombine.high %v398, %v398
    %v409 = vcombine.high %v405, %v405
    %v410 = vcombine.high %v29, %v29
    %v412 = vunpack.c.l.s4 1966171168
    %v413 = vunpack.c.0.s8 %v412
    %v414 = vlaneseq
    %v415 = vshrl.u32 %v414, 7
    %v416 = vsub.s32 %v413, %v415
    %v417 = vrot.slane %v29, %v416
    %v419 = vunpack.c.l.s4 1966171168
    %v420 = vunpack.c.0.s8 %v419
    %v421 = vlaneseq
    %v422 = vshrl.u32 %v421, 7
    %v423 = vsub.s32 %v420, %v422
    %v424 = vrot.slane %v410, %v423
    %v425 = vcombine.high %v417, %v417
    %v426 = vcombine.high %v424, %v424
    %v428 = vunpack.c.l.s4 1966171168
    %v429 = vunpack.c.0.s8 %v428
    %v430 = vlaneseq
    %v431 = vshrl.u32 %v430, 7
    %v432 = vsub.s32 %v429, %v431
    %v433 = vrot.slane %v417, %v432
    %v435 = vunpack.c.l.s4 1966171168
    %v436 = vunpack.c.0.s8 %v435
    %v437 = vlaneseq
    %v438 = vshrl.u32 %v437, 7
    %v439 = vsub.s32 %v436, %v438
    %v440 = vrot.slane %v424, %v439
    %v442 = vunpack.c.l.s4 1966171168
    %v443 = vunpack.c.0.s8 %v442
    %v444 = vlaneseq
    %v445 = vshrl.u32 %v444, 7
    %v446 = vsub.s32 %v443, %v445
    %v447 = vrot.slane %v425, %v446
    %v449 = vunpack.c.l.s4 1966171168
    %v450 = vunpack.c.0.s8 %v449
    %v451 = vlaneseq
    %v452 = vshrl.u32 %v451, 7
    %v453 = vsub.s32 %v450, %v452
    %v454 = vrot.slane %v426, %v453
    %v455 = vcombine.high %v433, %v433
    %v456 = vcombine.high %v440, %v440
    %v457 = vcombine.high %v447, %v447
    %v458 = vcombine.high %v454, %v454
    %v460 = vunpack.c.l.s4 1966171168
    %v461 = vunpack.c.0.s8 %v460
    %v462 = vlaneseq
    %v463 = vshrl.u32 %v462, 7
    %v464 = vsub.s32 %v461, %v463
    %v465 = vrot.slane %v30, %v464
    %v466 = vcombine.high %v465, %v465
    %v468 = vunpack.c.l.s4 1966171168
    %v469 = vunpack.c.0.s8 %v468
    %v470 = vlaneseq
    %v471 = vshrl.u32 %v470, 7
    %v472 = vsub.s32 %v469, %v471
    %v473 = vrot.slane %v465, %v472
    %v475 = vunpack.c.l.s4 1966171168
    %v476 = vunpack.c.0.s8 %v475
    %v477 = vlaneseq
    %v478 = vshrl.u32 %v477, 7
    %v479 = vsub.s32 %v476, %v478
    %v480 = vrot.slane %v466, %v479
    %v481 = vcombine.high %v473, %v473
    %v482 = vcombine.high %v480, %v480
    %v823 = vunpack.c.l.b16 %v31
    %v824 = vunpack.c.l.b16 %v32
    %v825 = vunpack.c.l.b16 %v33
    %v826 = vunpack.c.l.b16 %v34
    %v827 = vunpack.c.l.b16 %v35
    %v828 = vunpack.c.l.b16 %v36
    %v829 = vunpack.c.l.b16 %v37
    %v830 = vunpack.c.l.b16 %v38
    %v831 = vunpack.c.l.b16 %v39
    %v832 = vunpack.c.l.b16 %v40
    %v833 = vunpack.c.l.b16 %v41
    %v834 = vunpack.c.l.b16 %v42
    %v835 = vunpack.c.l.b16 %v43
    %v836 = vunpack.c.l.b16 %v44
    %v837 = vunpack.c.l.b16 %v45
    %v838 = vunpack.c.l.b16 %v46
    %v839 = vunpack.c.l.b16 %v47
    %v840 = vunpack.c.l.b16 %v48
    %v841 = vunpack.c.l.b16 %v49
    %v842 = vunpack.c.l.b16 %v50
    %v843 = vunpack.c.l.b16 %v51
    %v844 = vunpack.c.l.b16 %v52
    %v845 = vunpack.c.l.b16 %v53
    %v846 = vunpack.c.l.b16 %v54
    %v847 = vunpack.c.l.b16 %v55
    %v848 = vunpack.c.l.b16 %v56
    %v849 = vunpack.c.l.b16 %v57
    %v850 = vunpack.c.l.b16 %v58
    %v851 = vunpack.c.l.b16 %v59
    %v852 = vunpack.c.l.b16 %v60
    %v853 = vunpack.c.l.b16 %v61
    %v854 = vunpack.c.l.b16 %v62
    %v855 = vunpack.c.l.b16 %v63
    %v856 = vunpack.c.l.b16 %v64
    %v857 = vunpack.c.l.b16 %v65
    %v858 = vunpack.c.l.b16 %v66
    %v859 = vunpack.c.l.b16 %v67
    %v860 = vunpack.c.l.b16 %v68
    %v861 = vunpack.c.l.b16 %v69
    %v862 = vunpack.c.l.b16 %v70
    %v863 = vunpack.c.l.b16 %v71
    %v864 = vunpack.c.l.b16 %v72
    %v865 = vunpack.c.l.b16 %v73
    %v866 = vunpack.c.l.b16 %v74
    %v867 = vunpack.c.l.b16 %v75
    %v868 = vunpack.c.l.b16 %v76
    %v869 = vunpack.c.l.b16 %v77
    %v870 = vunpack.c.l.b16 %v78
    %v871 = vunpack.c.l.b16 %v79
    %v872 = vunpack.c.l.b16 %v80
    %v873 = vunpack.c.l.b16 %v81
    %v874 = vunpack.c.l.b16 %v82
    %v875 = vunpack.c.l.b16 %v83
    %v876 = vunpack.c.l.b16 %v84
    %v877 = vunpack.c.l.b16 %v85
    %v878 = vunpack.c.l.b16 %v86
    %v879 = vunpack.c.l.b16 %v87
    %v880 = vunpack.c.l.b16 %v88
    %v881 = vunpack.c.l.b16 %v89
    %v882 = vunpack.c.l.b16 %v90
    %v883 = vunpack.c.l.b16 %v91
    %v884 = vunpack.c.l.b16 %v92
    %v885 = vunpack.c.l.b16 %v93
    %v886 = vunpack.c.l.b16 %v94
    %v887 = vunpack.c.l.b16 %v95
    %v888 = vunpack.c.l.b16 %v96
    %v889 = vunpack.c.l.b16 %v97
    %v890 = vunpack.c.l.b16 %v98
    %v891 = vunpack.c.l.b16 %v99
    %v892 = vunpack.c.l.b16 %v100
    %v893 = vunpack.c.l.b16 %v101
    %v894 = vunpack.c.l.b16 %v102
    %v895 = vunpack.c.l.b16 %v103
    %v896 = vunpack.c.l.b16 %v104
    %v897 = vunpack.c.l.b16 %v105
    %v898 = vunpack.c.l.b16 %v106
    %v899 = vunpack.c.l.b16 %v107
    %v900 = vunpack.c.l.b16 %v108
    %v901 = vunpack.c.l.b16 %v109
    %v902 = vunpack.c.l.b16 %v110
    %v903 = vunpack.c.l.b16 %v111
    %v904 = vunpack.c.l.b16 %v112
    %v905 = vunpack.c.l.b16 %v113
    %v906 = vunpack.c.l.b16 %v114
    %v907 = vunpack.c.l.b16 %v115
    %v908 = vunpack.c.l.b16 %v116
    %v909 = vunpack.c.l.b16 %v117
    %v910 = vunpack.c.l.b16 %v118
    %v911 = vunpack.c.l.b16 %v119
    %v912 = vunpack.c.l.b16 %v120
    %v913 = vunpack.c.l.b16 %v121
    %v914 = vunpack.c.l.b16 %v122
    %v915 = vunpack.c.l.b16 %v123
    %v916 = vunpack.c.l.b16 %v124
    %v917 = vunpack.c.l.b16 %v125
    %v918 = vunpack.c.l.b16 %v126
    %v919 = vunpack.c.l.b16 %v127
    %v920 = vunpack.c.l.b16 %v128
    %v921 = vunpack.c.l.b16 %v129
    %v922 = vunpack.c.l.b16 %v130
    %v923 = vunpack.c.l.b16 %v131
    %v924 = vunpack.c.l.b16 %v132
    %v925 = vunpack.c.l.b16 %v133
    %v926 = vunpack.c.l.b16 %v134
    %v927 = vunpack.c.l.b16 %v135
    %v928 = vunpack.c.l.b16 %v136
    %v929 = vunpack.c.l.b16 %v137
    %v930 = vunpack.c.l.b16 %v138
    %v931 = vunpack.c.l.b16 %v139
    %v932 = vunpack.c.l.b16 %v140
    %v933 = vunpack.c.l.b16 %v141
    %v934 = vunpack.c.l.b16 %v142
    %v935 = vunpack.c.l.b16 %v143
    %v936 = vunpack.c.l.b16 %v144
    %v937 = vunpack.c.l.b16 %v145
    %v938 = vunpack.c.l.b16 %v146
    %v939 = vunpack.c.l.b16 %v147
    %v940 = vunpack.c.l.b16 %v148
    %v941 = vunpack.c.l.b16 %v149
    %v942 = vunpack.c.l.b16 %v150
    %v943 = vunpack.c.l.b16 %v151
    %v944 = vunpack.c.l.b16 %v152
    %v945 = vunpack.c.l.b16 %v153
    %v946 = vunpack.c.l.b16 %v154
    %v947 = vunpack.c.l.b16 %v155
    %v948 = vunpack.c.l.b16 %v156
    %v949 = vunpack.c.l.b16 %v157
    %v950 = vunpack.c.l.b16 %v158
    %v951 = vunpack.c.l.b16 %v159
    %v952 = vunpack.c.l.b16 %v160
    %v953 = vunpack.c.l.b16 %v161
    %v954 = vunpack.c.l.b16 %v162
    %v955 = vunpack.c.l.b16 %v163
    %v956 = vunpack.c.l.b16 %v164
    %v957 = vunpack.c.l.b16 %v165
    %v958 = vunpack.c.l.b16 %v166
    %v959 = vunpack.c.l.b16 %v167
    %v960 = vunpack.c.l.b16 %v168
    %v961 = vunpack.c.l.b16 %v169
    %v962 = vunpack.c.l.b16 %v170
    %v963 = vunpack.c.l.b16 %v171
    %v964 = vunpack.c.l.b16 %v172
    %v965 = vunpack.c.l.b16 %v173
    %v966 = vunpack.c.l.b16 %v174
    %v967 = vunpack.c.l.b16 %v175
    %v968 = vunpack.c.l.b16 %v176
    %v969 = vunpack.c.l.b16 %v177
    %v970 = vunpack.c.l.b16 %v178
    %v971 = vunpack.c.l.b16 %v179
    %v972 = vunpack.c.l.b16 %v180
    %v973 = vunpack.c.l.b16 %v181
    %v974 = vunpack.c.l.b16 %v182
    %v975 = vunpack.c.l.b16 %v183
    %v976 = vunpack.c.l.b16 %v184
    %v977 = vunpack.c.l.b16 %v185
    %v978 = vunpack.c.l.b16 %v186
    %v979 = vunpack.c.l.b16 %v187
    %v980 = vunpack.c.l.b16 %v188
    %v981 = vunpack.c.l.b16 %v189
    %v982 = vunpack.c.l.b16 %v190
    %v983 = vunpack.c.l.b16 %v191
    %v984 = vunpack.c.l.b16 %v192
    %v985 = vunpack.c.l.b16 %v193
    %v986 = vunpack.c.l.b16 %v194
    %v987 = vunpack.c.l.b16 %v195
    %v988 = vunpack.c.l.b16 %v196
    %v989 = vunpack.c.l.b16 %v197
    %v990 = vunpack.c.l.b16 %v198
    %v991 = vunpack.c.l.b16 %v199
    %v992 = vunpack.c.l.b16 %v200
    %v993 = vunpack.c.l.b16 %v201
    %v994 = vunpack.c.l.b16 %v202
    %v995 = vunpack.c.l.b16 %v203
    %v996 = vunpack.c.l.b16 %v204
    %v997 = vunpack.c.l.b16 %v205
    %v998 = vunpack.c.l.b16 %v206
    %v999 = vunpack.c.l.b16 %v207
    %v1000 = vunpack.c.l.b16 %v208
    %v1001 = vunpack.c.l.b16 %v209
    %v1002 = vunpack.c.l.b16 %v210
    %v1003 = vunpack.c.l.b16 %v211
    %v1004 = vunpack.c.l.b16 %v212
    %v1005 = vunpack.c.l.b16 %v213
    %v1006 = vunpack.c.l.b16 %v214
    %v1007 = vunpack.c.l.b16 %v215
    %v1008 = vunpack.c.l.b16 %v216
    %v1009 = vunpack.c.l.b16 %v217
    %v1010 = vunpack.c.l.b16 %v218
    %v1011 = vunpack.c.l.b16 %v219
    %v1012 = vunpack.c.l.b16 %v220
    %v1013 = vunpack.c.l.b16 %v221
    %v1014 = vunpack.c.l.b16 %v222
    %v1015 = vunpack.c.l.b16 %v223
    %v1016 = vunpack.c.l.b16 %v224
    %v1017 = vunpack.c.l.b16 %v225
    %v1018 = vunpack.c.l.b16 %v226
    %v1019 = vunpack.c.l.b16 %v227
    %v1020 = vunpack.c.l.b16 %v228
    %v1021 = vunpack.c.l.b16 %v229
    %v1022 = vunpack.c.l.b16 %v230
    %v1023 = vunpack.c.l.b16 %v231
    %v1024 = vunpack.c.l.b16 %v232
    %v1025 = vunpack.c.l.b16 %v233
    %v1026 = vunpack.c.l.b16 %v234
    %v1027 = vunpack.c.l.b16 %v235
    %v1028 = vunpack.c.l.b16 %v236
    %v1029 = vunpack.c.l.b16 %v237
    %v1030 = vunpack.c.l.b16 %v238
    %v1031 = vunpack.c.l.b16 %v239
    %v1032 = vunpack.c.l.b16 %v240
    %v1033 = vunpack.c.l.b16 %v241
    %v1034 = vunpack.c.l.b16 %v242
    %v1035 = vunpack.c.l.b16 %v243
    %v1036 = vunpack.c.l.b16 %v244
    %v1037 = vunpack.c.l.b16 %v245
    %v1038 = vunpack.c.l.b16 %v246
    %v1039 = vunpack.c.l.b16 %v247
    %v1040 = vunpack.c.l.b16 %v248
    %v1041 = vunpack.c.l.b16 %v249
    %v1042 = vunpack.c.l.b16 %v250
    %v1043 = vunpack.c.l.b16 %v251
    %v1044 = vunpack.c.l.b16 %v252
    %v1045 = vunpack.c.l.b16 %v253
    %v1046 = vunpack.c.l.b16 %v254
    %v1047 = vunpack.c.l.b16 %v255
    %v1048 = vunpack.c.l.b16 %v256
    %v1049 = vunpack.c.l.b16 %v257
    %v1050 = vunpack.c.l.b16 %v258
    %v1051 = vunpack.c.l.b16 %v259
    %v1052 = vunpack.c.l.b16 %v260
    %v1053 = vunpack.c.l.b16 %v261
    %v1054 = vunpack.c.l.b16 %v262
    %v1055 = vunpack.c.l.b16 %v263
    %v1056 = vunpack.c.l.b16 %v264
    %v1057 = vunpack.c.l.b16 %v265
    %v1058 = vunpack.c.l.b16 %v266
    %v1059 = vunpack.c.l.b16 %v267
    %v1060 = vunpack.c.l.b16 %v268
    %v1061 = vunpack.c.l.b16 %v269
    %v1062 = vunpack.c.l.b16 %v270
    %v1063 = vunpack.c.l.b16 %v271
    %v1064 = vunpack.c.l.b16 %v272
    %v1065 = vunpack.c.l.b16 %v273
    %v1066 = vunpack.c.l.b16 %v274
    %v1067 = vunpack.c.l.b16 %v275
    %v1068 = vunpack.c.l.b16 %v276
    %v1069 = vunpack.c.l.b16 %v277
    %v1070 = vunpack.c.l.b16 %v278
    %v1071 = vunpack.c.l.b16 %v279
    %v1072 = vunpack.c.l.b16 %v280
    %v1073 = vunpack.c.l.b16 %v281
    %v1074 = vunpack.c.l.b16 %v282
    %v1075 = vunpack.c.l.b16 %v283
    %v1076 = vunpack.c.l.b16 %v284
    %v1077 = vunpack.c.l.b16 %v285
    %v1078 = vunpack.c.l.b16 %v286
    %v1079 = vunpack.c.l.b16 %v287
    %v1080 = vunpack.c.l.b16 %v288
    %v1081 = vunpack.c.l.b16 %v289
    %v1082 = vunpack.c.l.b16 %v290
    %v1083 = vunpack.c.l.b16 %v291
    %v1084 = vunpack.c.l.b16 %v292
    %v1085 = vunpack.c.l.b16 %v293
    %v1086 = vunpack.c.l.b16 %v294
    %v1087 = vunpack.c.l.b16 %v295
    %v1088 = vunpack.c.l.b16 %v296
    %v1089 = vunpack.c.l.b16 %v297
    %v1090 = vunpack.c.l.b16 %v298
    %v1091 = vunpack.c.l.b16 %v299
    %v1092 = vunpack.c.l.b16 %v300
    %v1093 = vunpack.c.l.b16 %v301
    %v1094 = vunpack.c.l.b16 %v302
    %v1095 = vunpack.c.l.b16 %v303
    %v1096 = vunpack.c.l.b16 %v304
    %v1097 = vunpack.c.l.b16 %v305
    %v1098 = vunpack.c.l.b16 %v306
    %v1099 = vunpack.c.l.b16 %v307
    %v1100 = vunpack.c.l.b16 %v308
    %v1101 = vunpack.c.l.b16 %v309
    %v1102 = vunpack.c.l.b16 %v310
    %v1103 = vunpack.c.l.b16 %v311
    %v1104 = vunpack.c.l.b16 %v312
    %v1105 = vunpack.c.l.b16 %v313
    %v1106 = vunpack.c.l.b16 %v314
    %v1107 = vunpack.c.l.b16 %v315
    %v1108 = vunpack.c.l.b16 %v316
    %v1109 = vunpack.c.l.b16 %v317
    %v1110 = vunpack.c.l.b16 %v318
    %v1111 = vunpack.c.l.b16 %v319
    %v1112 = vunpack.c.l.b16 %v320
    %v1113 = vunpack.c.l.b16 %v321
    %v1114 = vunpack.c.l.b16 %v322
    %v1115 = vunpack.c.l.b16 %v323
    %v1116 = vunpack.c.l.b16 %v324
    %v1117 = vunpack.c.l.b16 %v325
    %v1118 = vunpack.c.l.b16 %v326
    %v1119 = vunpack.c.l.b16 %v327
    %v1120 = vunpack.c.l.b16 %v328
    %v1121 = vunpack.c.l.b16 %v329
    %v1122 = vunpack.c.l.b16 %v330
    %v1123 = vunpack.c.l.b16 %v331
    %v1124 = vunpack.c.l.b16 %v332
    %v1125 = vunpack.c.l.b16 %v333
    %v1126 = vunpack.c.l.b16 %v334
    %v1127 = vunpack.c.l.b16 %v335
    %v1128 = vunpack.c.l.b16 %v336
    %v1129 = vunpack.c.l.b16 %v337
    %v1130 = vunpack.c.l.b16 %v338
    %v1131 = vunpack.c.l.b16 %v339
    %v1132 = vunpack.c.l.b16 %v340
    %v1133 = vunpack.c.l.b16 %v341
    %v1134 = vunpack.c.l.b16 %v342
    %v1135 = vunpack.c.l.b16 %v343
    %v1136 = vunpack.c.l.b16 %v344
    %v1137 = vunpack.c.l.b16 %v345
    %v1138 = vunpack.c.l.b16 %v346
    %v1139 = vunpack.c.l.b16 %v347
    %v1140 = vunpack.c.l.b16 %v348
    %v1141 = vunpack.c.l.b16 %v349
    %v1142 = vunpack.c.l.b16 %v350
    %v1143 = vpack.c.b16 %v824, %v823
    %v1144 = vpack.c.b16 %v826, %v825
    %v1145 = vpack.c.b16 %v828, %v827
    %v1146 = vpack.c.b16 %v830, %v829
    %v1147 = vpack.c.b16 %v832, %v831
    %v1148 = vpack.c.b16 %v834, %v833
    %v1149 = vpack.c.b16 %v836, %v835
    %v1150 = vpack.c.b16 %v838, %v837
    %v1151 = vpack.c.b16 %v840, %v839
    %v1152 = vpack.c.b16 %v842, %v841
    %v1153 = vpack.c.b16 %v844, %v843
    %v1154 = vpack.c.b16 %v846, %v845
    %v1155 = vpack.c.b16 %v848, %v847
    %v1156 = vpack.c.b16 %v850, %v849
    %v1157 = vpack.c.b16 %v852, %v851
    %v1158 = vpack.c.b16 %v854, %v853
    %v1159 = vpack.c.b16 %v856, %v855
    %v1160 = vpack.c.b16 %v858, %v857
    %v1161 = vpack.c.b16 %v860, %v859
    %v1162 = vpack.c.b16 %v862, %v861
    %v1163 = vpack.c.b16 %v864, %v863
    %v1164 = vpack.c.b16 %v866, %v865
    %v1165 = vpack.c.b16 %v868, %v867
    %v1166 = vpack.c.b16 %v870, %v869
    %v1167 = vpack.c.b16 %v872, %v871
    %v1168 = vpack.c.b16 %v874, %v873
    %v1169 = vpack.c.b16 %v876, %v875
    %v1170 = vpack.c.b16 %v878, %v877
    %v1171 = vpack.c.b16 %v880, %v879
    %v1172 = vpack.c.b16 %v882, %v881
    %v1173 = vpack.c.b16 %v884, %v883
    %v1174 = vpack.c.b16 %v886, %v885
    %v1175 = vpack.c.b16 %v888, %v887
    %v1176 = vpack.c.b16 %v890, %v889
    %v1177 = vpack.c.b16 %v892, %v891
    %v1178 = vpack.c.b16 %v894, %v893
    %v1179 = vpack.c.b16 %v896, %v895
    %v1180 = vpack.c.b16 %v898, %v897
    %v1181 = vpack.c.b16 %v900, %v899
    %v1182 = vpack.c.b16 %v902, %v901
    %v1183 = vpack.c.b16 %v904, %v903
    %v1184 = vpack.c.b16 %v906, %v905
    %v1185 = vpack.c.b16 %v908, %v907
    %v1186 = vpack.c.b16 %v910, %v909
    %v1187 = vpack.c.b16 %v912, %v911
    %v1188 = vpack.c.b16 %v914, %v913
    %v1189 = vpack.c.b16 %v916, %v915
    %v1190 = vpack.c.b16 %v918, %v917
    %v1191 = vpack.c.b16 %v920, %v919
    %v1192 = vpack.c.b16 %v922, %v921
    %v1193 = vpack.c.b16 %v924, %v923
    %v1194 = vpack.c.b16 %v926, %v925
    %v1195 = vpack.c.b16 %v928, %v927
    %v1196 = vpack.c.b16 %v930, %v929
    %v1197 = vpack.c.b16 %v932, %v931
    %v1198 = vpack.c.b16 %v934, %v933
    %v1199 = vpack.c.b16 %v936, %v935
    %v1200 = vpack.c.b16 %v938, %v937
    %v1201 = vpack.c.b16 %v940, %v939
    %v1202 = vpack.c.b16 %v942, %v941
    %v1203 = vpack.c.b16 %v944, %v943
    %v1204 = vpack.c.b16 %v946, %v945
    %v1205 = vpack.c.b16 %v948, %v947
    %v1206 = vpack.c.b16 %v950, %v949
    %v1207 = vpack.c.b16 %v952, %v951
    %v1208 = vpack.c.b16 %v954, %v953
    %v1209 = vpack.c.b16 %v956, %v955
    %v1210 = vpack.c.b16 %v958, %v957
    %v1211 = vpack.c.b16 %v960, %v959
    %v1212 = vpack.c.b16 %v962, %v961
    %v1213 = vpack.c.b16 %v964, %v963
    %v1214 = vpack.c.b16 %v966, %v965
    %v1215 = vpack.c.b16 %v968, %v967
    %v1216 = vpack.c.b16 %v970, %v969
    %v1217 = vpack.c.b16 %v972, %v971
    %v1218 = vpack.c.b16 %v974, %v973
    %v1219 = vpack.c.b16 %v976, %v975
    %v1220 = vpack.c.b16 %v978, %v977
    %v1221 = vpack.c.b16 %v980, %v979
    %v1222 = vpack.c.b16 %v982, %v981
    %v1223 = vpack.c.b16 %v984, %v983
    %v1224 = vpack.c.b16 %v986, %v985
    %v1225 = vpack.c.b16 %v988, %v987
    %v1226 = vpack.c.b16 %v990, %v989
    %v1227 = vpack.c.b16 %v992, %v991
    %v1228 = vpack.c.b16 %v994, %v993
    %v1229 = vpack.c.b16 %v996, %v995
    %v1230 = vpack.c.b16 %v998, %v997
    %v1231 = vpack.c.b16 %v1000, %v999
    %v1232 = vpack.c.b16 %v1002, %v1001
    %v1233 = vpack.c.b16 %v1004, %v1003
    %v1234 = vpack.c.b16 %v1006, %v1005
    %v1235 = vpack.c.b16 %v1008, %v1007
    %v1236 = vpack.c.b16 %v1010, %v1009
    %v1237 = vpack.c.b16 %v1012, %v1011
    %v1238 = vpack.c.b16 %v1014, %v1013
    %v1239 = vpack.c.b16 %v1016, %v1015
    %v1240 = vpack.c.b16 %v1018, %v1017
    %v1241 = vpack.c.b16 %v1020, %v1019
    %v1242 = vpack.c.b16 %v1022, %v1021
    %v1243 = vpack.c.b16 %v1024, %v1023
    %v1244 = vpack.c.b16 %v1026, %v1025
    %v1245 = vpack.c.b16 %v1028, %v1027
    %v1246 = vpack.c.b16 %v1030, %v1029
    %v1247 = vpack.c.b16 %v1032, %v1031
    %v1248 = vpack.c.b16 %v1034, %v1033
    %v1249 = vpack.c.b16 %v1036, %v1035
    %v1250 = vpack.c.b16 %v1038, %v1037
    %v1251 = vpack.c.b16 %v1040, %v1039
    %v1252 = vpack.c.b16 %v1042, %v1041
    %v1253 = vpack.c.b16 %v1044, %v1043
    %v1254 = vpack.c.b16 %v1046, %v1045
    %v1255 = vpack.c.b16 %v1048, %v1047
    %v1256 = vpack.c.b16 %v1050, %v1049
    %v1257 = vpack.c.b16 %v1052, %v1051
    %v1258 = vpack.c.b16 %v1054, %v1053
    %v1259 = vpack.c.b16 %v1056, %v1055
    %v1260 = vpack.c.b16 %v1058, %v1057
    %v1261 = vpack.c.b16 %v1060, %v1059
    %v1262 = vpack.c.b16 %v1062, %v1061
    %v1263 = vpack.c.b16 %v1064, %v1063
    %v1264 = vpack.c.b16 %v1066, %v1065
    %v1265 = vpack.c.b16 %v1068, %v1067
    %v1266 = vpack.c.b16 %v1070, %v1069
    %v1267 = vpack.c.b16 %v1072, %v1071
    %v1268 = vpack.c.b16 %v1074, %v1073
    %v1269 = vpack.c.b16 %v1076, %v1075
    %v1270 = vpack.c.b16 %v1078, %v1077
    %v1271 = vpack.c.b16 %v1080, %v1079
    %v1272 = vpack.c.b16 %v1082, %v1081
    %v1273 = vpack.c.b16 %v1084, %v1083
    %v1274 = vpack.c.b16 %v1086, %v1085
    %v1275 = vpack.c.b16 %v1088, %v1087
    %v1276 = vpack.c.b16 %v1090, %v1089
    %v1277 = vpack.c.b16 %v1092, %v1091
    %v1278 = vpack.c.b16 %v1094, %v1093
    %v1279 = vpack.c.b16 %v1096, %v1095
    %v1280 = vpack.c.b16 %v1098, %v1097
    %v1281 = vpack.c.b16 %v1100, %v1099
    %v1282 = vpack.c.b16 %v1102, %v1101
    %v1283 = vpack.c.b16 %v1104, %v1103
    %v1284 = vpack.c.b16 %v1106, %v1105
    %v1285 = vpack.c.b16 %v1108, %v1107
    %v1286 = vpack.c.b16 %v1110, %v1109
    %v1287 = vpack.c.b16 %v1112, %v1111
    %v1288 = vpack.c.b16 %v1114, %v1113
    %v1289 = vpack.c.b16 %v1116, %v1115
    %v1290 = vpack.c.b16 %v1118, %v1117
    %v1291 = vpack.c.b16 %v1120, %v1119
    %v1292 = vpack.c.b16 %v1122, %v1121
    %v1293 = vpack.c.b16 %v1124, %v1123
    %v1294 = vpack.c.b16 %v1126, %v1125
    %v1295 = vpack.c.b16 %v1128, %v1127
    %v1296 = vpack.c.b16 %v1130, %v1129
    %v1297 = vpack.c.b16 %v1132, %v1131
    %v1298 = vpack.c.b16 %v1134, %v1133
    %v1299 = vpack.c.b16 %v1136, %v1135
    %v1300 = vpack.c.b16 %v1138, %v1137
    %v1301 = vpack.c.b16 %v1140, %v1139
    %v1302 = vpack.c.b16 %v1142, %v1141
    %1463 = vmatprep.subr.bf16.mxu0 0
    %1464 = vmatpush1.bf16.msra.mxu0 %v1143
    %1465 = vmatprep.subr.bf16.mxu0 0
    %1466 = vmatpush1.bf16.msra.mxu0 %v1144
    %1467 = vmatprep.subr.bf16.mxu0 0
    %1468 = vmatpush1.bf16.msra.mxu0 %v1145
    %1469 = vmatprep.subr.bf16.mxu0 0
    %1470 = vmatpush1.bf16.msra.mxu0 %v1146
    %1471 = vmatprep.subr.bf16.mxu0 0
    %1472 = vmatpush1.bf16.msra.mxu0 %v1147
    %1473 = vmatprep.subr.bf16.mxu0 0
    %1474 = vmatpush1.bf16.msra.mxu0 %v1148
    %1475 = vmatprep.subr.bf16.mxu0 0
    %1476 = vmatpush1.bf16.msra.mxu0 %v1149
    %1477 = vmatprep.subr.bf16.mxu0 0
    %1478 = vmatpush1.bf16.msra.mxu0 %v1150
    %1479 = vmatprep.subr.bf16.mxu0 0
    %1480 = vmatpush1.bf16.msra.mxu0 %v1151
    %1481 = vmatprep.subr.bf16.mxu0 0
    %1482 = vmatpush1.bf16.msra.mxu0 %v1152
    %1483 = vmatprep.subr.bf16.mxu0 0
    %1484 = vmatpush1.bf16.msra.mxu0 %v1153
    %1485 = vmatprep.subr.bf16.mxu0 0
    %1486 = vmatpush1.bf16.msra.mxu0 %v1154
    %1487 = vmatprep.subr.bf16.mxu0 0
    %1488 = vmatpush1.bf16.msra.mxu0 %v1155
    %1489 = vmatprep.subr.bf16.mxu0 0
    %1490 = vmatpush1.bf16.msra.mxu0 %v1156
    %1491 = vmatprep.subr.bf16.mxu0 0
    %1492 = vmatpush1.bf16.msra.mxu0 %v1157
    %1493 = vmatprep.subr.bf16.mxu0 0
    %1494 = vmatpush1.bf16.msra.mxu0 %v1158
    %1495 = vmatprep.mubr.bf16.mxu0 %v398
    %1496 = vmatmul.mubr.bf16.gmra.mrb[0].mxu0 %v384
    %v1497 = vpop.f32.mrb[0].mxu0
    %v1498 = vadd.f32 %v356, %v1497
    %v1499 = vpop.f32.mrb[0].mxu0
    %v1500 = vpop.f32.mrb[0].mxu0
    %v1501 = vpop.f32.mrb[0].mxu0
    %1502 = vdwg.mxu0
    %1503 = vmatprep.subr.bf16.mxu0 0
    %1504 = vmatpush1.bf16.msra.mxu0 %v1159
    %1505 = vmatprep.subr.bf16.mxu0 0
    %1506 = vmatpush1.bf16.msra.mxu0 %v1160
    %1507 = vmatprep.subr.bf16.mxu0 0
    %1508 = vmatpush1.bf16.msra.mxu0 %v1161
    %1509 = vmatprep.subr.bf16.mxu0 0
    %1510 = vmatpush1.bf16.msra.mxu0 %v1162
    %1511 = vmatprep.subr.bf16.mxu0 0
    %1512 = vmatpush1.bf16.msra.mxu0 %v1163
    %1513 = vmatprep.subr.bf16.mxu0 0
    %1514 = vmatpush1.bf16.msra.mxu0 %v1164
    %1515 = vmatprep.subr.bf16.mxu0 0
    %1516 = vmatpush1.bf16.msra.mxu0 %v1165
    %1517 = vmatprep.subr.bf16.mxu0 0
    %1518 = vmatpush1.bf16.msra.mxu0 %v1166
    %1519 = vmatprep.subr.bf16.mxu0 0
    %1520 = vmatpush1.bf16.msra.mxu0 %v1167
    %1521 = vmatprep.subr.bf16.mxu0 0
    %1522 = vmatpush1.bf16.msra.mxu0 %v1168
    %1523 = vmatprep.subr.bf16.mxu0 0
    %1524 = vmatpush1.bf16.msra.mxu0 %v1169
    %1525 = vmatprep.subr.bf16.mxu0 0
    %1526 = vmatpush1.bf16.msra.mxu0 %v1170
    %1527 = vmatprep.subr.bf16.mxu0 0
    %1528 = vmatpush1.bf16.msra.mxu0 %v1171
    %1529 = vmatprep.subr.bf16.mxu0 0
    %1530 = vmatpush1.bf16.msra.mxu0 %v1172
    %1531 = vmatprep.subr.bf16.mxu0 0
    %1532 = vmatpush1.bf16.msra.mxu0 %v1173
    %1533 = vmatprep.subr.bf16.mxu0 0
    %1534 = vmatpush1.bf16.msra.mxu0 %v1174
    %1535 = vmatprep.mubr.bf16.mxu0 %v408
    %1536 = vmatmul.mubr.bf16.gmra.mrb[0].mxu0 %v406
    %v1537 = vpop.f32.mrb[0].mxu0
    %v1538 = vadd.f32 %v1498, %v1537
    %v1539 = vpop.f32.mrb[0].mxu0
    %v1540 = vpop.f32.mrb[0].mxu0
    %v1541 = vpop.f32.mrb[0].mxu0
    %1542 = vdwg.mxu0
    %1543 = vmatprep.subr.bf16.mxu0 0
    %1544 = vmatpush1.bf16.msra.mxu0 %v1175
    %1545 = vmatprep.subr.bf16.mxu0 0
    %1546 = vmatpush1.bf16.msra.mxu0 %v1176
    %1547 = vmatprep.subr.bf16.mxu0 0
    %1548 = vmatpush1.bf16.msra.mxu0 %v1177
    %1549 = vmatprep.subr.bf16.mxu0 0
    %1550 = vmatpush1.bf16.msra.mxu0 %v1178
    %1551 = vmatprep.subr.bf16.mxu0 0
    %1552 = vmatpush1.bf16.msra.mxu0 %v1179
    %1553 = vmatprep.subr.bf16.mxu0 0
    %1554 = vmatpush1.bf16.msra.mxu0 %v1180
    %1555 = vmatprep.subr.bf16.mxu0 0
    %1556 = vmatpush1.bf16.msra.mxu0 %v1181
    %1557 = vmatprep.subr.bf16.mxu0 0
    %1558 = vmatpush1.bf16.msra.mxu0 %v1182
    %1559 = vmatprep.subr.bf16.mxu0 0
    %1560 = vmatpush1.bf16.msra.mxu0 %v1183
    %1561 = vmatprep.subr.bf16.mxu0 0
    %1562 = vmatpush1.bf16.msra.mxu0 %v1184
    %1563 = vmatprep.subr.bf16.mxu0 0
    %1564 = vmatpush1.bf16.msra.mxu0 %v1185
    %1565 = vmatprep.subr.bf16.mxu0 0
    %1566 = vmatpush1.bf16.msra.mxu0 %v1186
    %1567 = vmatprep.subr.bf16.mxu0 0
    %1568 = vmatpush1.bf16.msra.mxu0 %v1187
    %1569 = vmatprep.subr.bf16.mxu0 0
    %1570 = vmatpush1.bf16.msra.mxu0 %v1188
    %1571 = vmatprep.subr.bf16.mxu0 0
    %1572 = vmatpush1.bf16.msra.mxu0 %v1189
    %1573 = vmatprep.subr.bf16.mxu0 0
    %1574 = vmatpush1.bf16.msra.mxu0 %v1190
    %1575 = vmatprep.mubr.bf16.mxu0 %v405
    %1576 = vmatmul.mubr.bf16.gmra.mrb[0].mxu0 %v391
    %v1577 = vpop.f32.mrb[0].mxu0
    %v1578 = vadd.f32 %v1538, %v1577
    %v1579 = vpop.f32.mrb[0].mxu0
    %v1580 = vpop.f32.mrb[0].mxu0
    %v1581 = vpop.f32.mrb[0].mxu0
    %1582 = vdwg.mxu0
    %1583 = vmatprep.subr.bf16.mxu0 0
    %1584 = vmatpush1.bf16.msra.mxu0 %v1191
    %1585 = vmatprep.subr.bf16.mxu0 0
    %1586 = vmatpush1.bf16.msra.mxu0 %v1192
    %1587 = vmatprep.subr.bf16.mxu0 0
    %1588 = vmatpush1.bf16.msra.mxu0 %v1193
    %1589 = vmatprep.subr.bf16.mxu0 0
    %1590 = vmatpush1.bf16.msra.mxu0 %v1194
    %1591 = vmatprep.subr.bf16.mxu0 0
    %1592 = vmatpush1.bf16.msra.mxu0 %v1195
    %1593 = vmatprep.subr.bf16.mxu0 0
    %1594 = vmatpush1.bf16.msra.mxu0 %v1196
    %1595 = vmatprep.subr.bf16.mxu0 0
    %1596 = vmatpush1.bf16.msra.mxu0 %v1197
    %1597 = vmatprep.subr.bf16.mxu0 0
    %1598 = vmatpush1.bf16.msra.mxu0 %v1198
    %1599 = vmatprep.subr.bf16.mxu0 0
    %1600 = vmatpush1.bf16.msra.mxu0 %v1199
    %1601 = vmatprep.subr.bf16.mxu0 0
    %1602 = vmatpush1.bf16.msra.mxu0 %v1200
    %1603 = vmatprep.subr.bf16.mxu0 0
    %1604 = vmatpush1.bf16.msra.mxu0 %v1201
    %1605 = vmatprep.subr.bf16.mxu0 0
    %1606 = vmatpush1.bf16.msra.mxu0 %v1202
    %1607 = vmatprep.subr.bf16.mxu0 0
    %1608 = vmatpush1.bf16.msra.mxu0 %v1203
    %1609 = vmatprep.subr.bf16.mxu0 0
    %1610 = vmatpush1.bf16.msra.mxu0 %v1204
    %1611 = vmatprep.subr.bf16.mxu0 0
    %1612 = vmatpush1.bf16.msra.mxu0 %v1205
    %1613 = vmatprep.subr.bf16.mxu0 0
    %1614 = vmatpush1.bf16.msra.mxu0 %v1206
    %1615 = vmatprep.mubr.bf16.mxu0 %v409
    %1616 = vmatmul.mubr.bf16.gmra.mrb[0].mxu0 %v407
    %v1617 = vpop.f32.mrb[0].mxu0
    %v1618 = vadd.f32 %v1578, %v1617
    %v1619 = vpop.f32.mrb[0].mxu0
    %v1620 = vpop.f32.mrb[0].mxu0
    %v1621 = vpop.f32.mrb[0].mxu0
    %1622 = vdwg.mxu0
    %1623 = vmatprep.subr.bf16.mxu0 0
    %1624 = vmatpush1.bf16.msra.mxu0 %v1207
    %1625 = vmatprep.subr.bf16.mxu0 0
    %1626 = vmatpush1.bf16.msra.mxu0 %v1208
    %1627 = vmatprep.subr.bf16.mxu0 0
    %1628 = vmatpush1.bf16.msra.mxu0 %v1209
    %1629 = vmatprep.subr.bf16.mxu0 0
    %1630 = vmatpush1.bf16.msra.mxu0 %v1210
    %1631 = vmatprep.subr.bf16.mxu0 0
    %1632 = vmatpush1.bf16.msra.mxu0 %v1211
    %1633 = vmatprep.subr.bf16.mxu0 0
    %1634 = vmatpush1.bf16.msra.mxu0 %v1212
    %1635 = vmatprep.subr.bf16.mxu0 0
    %1636 = vmatpush1.bf16.msra.mxu0 %v1213
    %1637 = vmatprep.subr.bf16.mxu0 0
    %1638 = vmatpush1.bf16.msra.mxu0 %v1214
    %1639 = vmatprep.subr.bf16.mxu0 0
    %1640 = vmatpush1.bf16.msra.mxu0 %v1215
    %1641 = vmatprep.subr.bf16.mxu0 0
    %1642 = vmatpush1.bf16.msra.mxu0 %v1216
    %1643 = vmatprep.subr.bf16.mxu0 0
    %1644 = vmatpush1.bf16.msra.mxu0 %v1217
    %1645 = vmatprep.subr.bf16.mxu0 0
    %1646 = vmatpush1.bf16.msra.mxu0 %v1218
    %1647 = vmatprep.subr.bf16.mxu0 0
    %1648 = vmatpush1.bf16.msra.mxu0 %v1219
    %1649 = vmatprep.subr.bf16.mxu0 0
    %1650 = vmatpush1.bf16.msra.mxu0 %v1220
    %1651 = vmatprep.subr.bf16.mxu0 0
    %1652 = vmatpush1.bf16.msra.mxu0 %v1221
    %1653 = vmatprep.subr.bf16.mxu0 0
    %1654 = vmatpush1.bf16.msra.mxu0 %v1222
    %1655 = vmatprep.mubr.bf16.mxu0 %v447
    %1656 = vmatmul.mubr.bf16.gmra.mrb[0].mxu0 %v433
    %v1657 = vpop.f32.mrb[0].mxu0
    %v1658 = vadd.f32 %v1618, %v1657
    %v1659 = vpop.f32.mrb[0].mxu0
    %v1660 = vpop.f32.mrb[0].mxu0
    %v1661 = vpop.f32.mrb[0].mxu0
    %1662 = vdwg.mxu0
    %1663 = vmatprep.subr.bf16.mxu0 0
    %1664 = vmatpush1.bf16.msra.mxu0 %v1223
    %1665 = vmatprep.subr.bf16.mxu0 0
    %1666 = vmatpush1.bf16.msra.mxu0 %v1224
    %1667 = vmatprep.subr.bf16.mxu0 0
    %1668 = vmatpush1.bf16.msra.mxu0 %v1225
    %1669 = vmatprep.subr.bf16.mxu0 0
    %1670 = vmatpush1.bf16.msra.mxu0 %v1226
    %1671 = vmatprep.subr.bf16.mxu0 0
    %1672 = vmatpush1.bf16.msra.mxu0 %v1227
    %1673 = vmatprep.subr.bf16.mxu0 0
    %1674 = vmatpush1.bf16.msra.mxu0 %v1228
    %1675 = vmatprep.subr.bf16.mxu0 0
    %1676 = vmatpush1.bf16.msra.mxu0 %v1229
    %1677 = vmatprep.subr.bf16.mxu0 0
    %1678 = vmatpush1.bf16.msra.mxu0 %v1230
    %1679 = vmatprep.subr.bf16.mxu0 0
    %1680 = vmatpush1.bf16.msra.mxu0 %v1231
    %1681 = vmatprep.subr.bf16.mxu0 0
    %1682 = vmatpush1.bf16.msra.mxu0 %v1232
    %1683 = vmatprep.subr.bf16.mxu0 0
    %1684 = vmatpush1.bf16.msra.mxu0 %v1233
    %1685 = vmatprep.subr.bf16.mxu0 0
    %1686 = vmatpush1.bf16.msra.mxu0 %v1234
    %1687 = vmatprep.subr.bf16.mxu0 0
    %1688 = vmatpush1.bf16.msra.mxu0 %v1235
    %1689 = vmatprep.subr.bf16.mxu0 0
    %1690 = vmatpush1.bf16.msra.mxu0 %v1236
    %1691 = vmatprep.subr.bf16.mxu0 0
    %1692 = vmatpush1.bf16.msra.mxu0 %v1237
    %1693 = vmatprep.subr.bf16.mxu0 0
    %1694 = vmatpush1.bf16.msra.mxu0 %v1238
    %1695 = vmatprep.mubr.bf16.mxu0 %v457
    %1696 = vmatmul.mubr.bf16.gmra.mrb[0].mxu0 %v455
    %v1697 = vpop.f32.mrb[0].mxu0
    %v1698 = vadd.f32 %v1658, %v1697
    %v1699 = vpop.f32.mrb[0].mxu0
    %v1700 = vpop.f32.mrb[0].mxu0
    %v1701 = vpop.f32.mrb[0].mxu0
    %1702 = vdwg.mxu0
    %1703 = vmatprep.subr.bf16.mxu0 0
    %1704 = vmatpush1.bf16.msra.mxu0 %v1239
    %1705 = vmatprep.subr.bf16.mxu0 0
    %1706 = vmatpush1.bf16.msra.mxu0 %v1240
    %1707 = vmatprep.subr.bf16.mxu0 0
    %1708 = vmatpush1.bf16.msra.mxu0 %v1241
    %1709 = vmatprep.subr.bf16.mxu0 0
    %1710 = vmatpush1.bf16.msra.mxu0 %v1242
    %1711 = vmatprep.subr.bf16.mxu0 0
    %1712 = vmatpush1.bf16.msra.mxu0 %v1243
    %1713 = vmatprep.subr.bf16.mxu0 0
    %1714 = vmatpush1.bf16.msra.mxu0 %v1244
    %1715 = vmatprep.subr.bf16.mxu0 0
    %1716 = vmatpush1.bf16.msra.mxu0 %v1245
    %1717 = vmatprep.subr.bf16.mxu0 0
    %1718 = vmatpush1.bf16.msra.mxu0 %v1246
    %1719 = vmatprep.subr.bf16.mxu0 0
    %1720 = vmatpush1.bf16.msra.mxu0 %v1247
    %1721 = vmatprep.subr.bf16.mxu0 0
    %1722 = vmatpush1.bf16.msra.mxu0 %v1248
    %1723 = vmatprep.subr.bf16.mxu0 0
    %1724 = vmatpush1.bf16.msra.mxu0 %v1249
    %1725 = vmatprep.subr.bf16.mxu0 0
    %1726 = vmatpush1.bf16.msra.mxu0 %v1250
    %1727 = vmatprep.subr.bf16.mxu0 0
    %1728 = vmatpush1.bf16.msra.mxu0 %v1251
    %1729 = vmatprep.subr.bf16.mxu0 0
    %1730 = vmatpush1.bf16.msra.mxu0 %v1252
    %1731 = vmatprep.subr.bf16.mxu0 0
    %1732 = vmatpush1.bf16.msra.mxu0 %v1253
    %1733 = vmatprep.subr.bf16.mxu0 0
    %1734 = vmatpush1.bf16.msra.mxu0 %v1254
    %1735 = vmatprep.mubr.bf16.mxu0 %v454
    %1736 = vmatmul.mubr.bf16.gmra.mrb[0].mxu0 %v440
    %v1737 = vpop.f32.mrb[0].mxu0
    %v1738 = vadd.f32 %v1698, %v1737
    %v1739 = vpop.f32.mrb[0].mxu0
    %v1740 = vpop.f32.mrb[0].mxu0
    %v1741 = vpop.f32.mrb[0].mxu0
    %1742 = vdwg.mxu0
    %1743 = vmatprep.subr.bf16.mxu0 0
    %1744 = vmatpush1.bf16.msra.mxu0 %v1255
    %1745 = vmatprep.subr.bf16.mxu0 0
    %1746 = vmatpush1.bf16.msra.mxu0 %v1256
    %1747 = vmatprep.subr.bf16.mxu0 0
    %1748 = vmatpush1.bf16.msra.mxu0 %v1257
    %1749 = vmatprep.subr.bf16.mxu0 0
    %1750 = vmatpush1.bf16.msra.mxu0 %v1258
    %1751 = vmatprep.subr.bf16.mxu0 0
    %1752 = vmatpush1.bf16.msra.mxu0 %v1259
    %1753 = vmatprep.subr.bf16.mxu0 0
    %1754 = vmatpush1.bf16.msra.mxu0 %v1260
    %1755 = vmatprep.subr.bf16.mxu0 0
    %1756 = vmatpush1.bf16.msra.mxu0 %v1261
    %1757 = vmatprep.subr.bf16.mxu0 0
    %1758 = vmatpush1.bf16.msra.mxu0 %v1262
    %1759 = vmatprep.subr.bf16.mxu0 0
    %1760 = vmatpush1.bf16.msra.mxu0 %v1263
    %1761 = vmatprep.subr.bf16.mxu0 0
    %1762 = vmatpush1.bf16.msra.mxu0 %v1264
    %1763 = vmatprep.subr.bf16.mxu0 0
    %1764 = vmatpush1.bf16.msra.mxu0 %v1265
    %1765 = vmatprep.subr.bf16.mxu0 0
    %1766 = vmatpush1.bf16.msra.mxu0 %v1266
    %1767 = vmatprep.subr.bf16.mxu0 0
    %1768 = vmatpush1.bf16.msra.mxu0 %v1267
    %1769 = vmatprep.subr.bf16.mxu0 0
    %1770 = vmatpush1.bf16.msra.mxu0 %v1268
    %1771 = vmatprep.subr.bf16.mxu0 0
    %1772 = vmatpush1.bf16.msra.mxu0 %v1269
    %1773 = vmatprep.subr.bf16.mxu0 0
    %1774 = vmatpush1.bf16.msra.mxu0 %v1270
    %1775 = vmatprep.mubr.bf16.mxu0 %v458
    %1776 = vmatmul.mubr.bf16.gmra.mrb[0].mxu0 %v456
    %v1777 = vpop.f32.mrb[0].mxu0
    %v1778 = vadd.f32 %v1738, %v1777
    %v1779 = vpop.f32.mrb[0].mxu0
    %v1780 = vpop.f32.mrb[0].mxu0
    %v1781 = vpop.f32.mrb[0].mxu0
    %1782 = vdwg.mxu0
    %1783 = vmatprep.subr.bf16.mxu0 0
    %1784 = vmatpush1.bf16.msra.mxu0 %v1271
    %1785 = vmatprep.subr.bf16.mxu0 0
    %1786 = vmatpush1.bf16.msra.mxu0 %v1272
    %1787 = vmatprep.subr.bf16.mxu0 0
    %1788 = vmatpush1.bf16.msra.mxu0 %v1273
    %1789 = vmatprep.subr.bf16.mxu0 0
    %1790 = vmatpush1.bf16.msra.mxu0 %v1274
    %1791 = vmatprep.subr.bf16.mxu0 0
    %1792 = vmatpush1.bf16.msra.mxu0 %v1275
    %1793 = vmatprep.subr.bf16.mxu0 0
    %1794 = vmatpush1.bf16.msra.mxu0 %v1276
    %1795 = vmatprep.subr.bf16.mxu0 0
    %1796 = vmatpush1.bf16.msra.mxu0 %v1277
    %1797 = vmatprep.subr.bf16.mxu0 0
    %1798 = vmatpush1.bf16.msra.mxu0 %v1278
    %1799 = vmatprep.subr.bf16.mxu0 0
    %1800 = vmatpush1.bf16.msra.mxu0 %v1279
    %1801 = vmatprep.subr.bf16.mxu0 0
    %1802 = vmatpush1.bf16.msra.mxu0 %v1280
    %1803 = vmatprep.subr.bf16.mxu0 0
    %1804 = vmatpush1.bf16.msra.mxu0 %v1281
    %1805 = vmatprep.subr.bf16.mxu0 0
    %1806 = vmatpush1.bf16.msra.mxu0 %v1282
    %1807 = vmatprep.subr.bf16.mxu0 0
    %1808 = vmatpush1.bf16.msra.mxu0 %v1283
    %1809 = vmatprep.subr.bf16.mxu0 0
    %1810 = vmatpush1.bf16.msra.mxu0 %v1284
    %1811 = vmatprep.subr.bf16.mxu0 0
    %1812 = vmatpush1.bf16.msra.mxu0 %v1285
    %1813 = vmatprep.subr.bf16.mxu0 0
    %1814 = vmatpush1.bf16.msra.mxu0 %v1286
    %1815 = vmatprep.mubr.bf16.mxu0 %v480
    %1816 = vmatmul.mubr.bf16.gmra.mrb[0].mxu0 %v473
    %v1817 = vpop.f32.mrb[0].mxu0
    %v1818 = vadd.f32 %v1778, %v1817
    %v1819 = vpop.f32.mrb[0].mxu0
    %v1820 = vpop.f32.mrb[0].mxu0
    %v1821 = vpop.f32.mrb[0].mxu0
    %1822 = vdwg.mxu0
    %1823 = vmatprep.subr.bf16.mxu0 0
    %1824 = vmatpush1.bf16.msra.mxu0 %v1287
    %1825 = vmatprep.subr.bf16.mxu0 0
    %1826 = vmatpush1.bf16.msra.mxu0 %v1288
    %1827 = vmatprep.subr.bf16.mxu0 0
    %1828 = vmatpush1.bf16.msra.mxu0 %v1289
    %1829 = vmatprep.subr.bf16.mxu0 0
    %1830 = vmatpush1.bf16.msra.mxu0 %v1290
    %1831 = vmatprep.subr.bf16.mxu0 0
    %1832 = vmatpush1.bf16.msra.mxu0 %v1291
    %1833 = vmatprep.subr.bf16.mxu0 0
    %1834 = vmatpush1.bf16.msra.mxu0 %v1292
    %1835 = vmatprep.subr.bf16.mxu0 0
    %1836 = vmatpush1.bf16.msra.mxu0 %v1293
    %1837 = vmatprep.subr.bf16.mxu0 0
    %1838 = vmatpush1.bf16.msra.mxu0 %v1294
    %1839 = vmatprep.subr.bf16.mxu0 0
    %1840 = vmatpush1.bf16.msra.mxu0 %v1295
    %1841 = vmatprep.subr.bf16.mxu0 0
    %1842 = vmatpush1.bf16.msra.mxu0 %v1296
    %1843 = vmatprep.subr.bf16.mxu0 0
    %1844 = vmatpush1.bf16.msra.mxu0 %v1297
    %1845 = vmatprep.subr.bf16.mxu0 0
    %1846 = vmatpush1.bf16.msra.mxu0 %v1298
    %1847 = vmatprep.subr.bf16.mxu0 0
    %1848 = vmatpush1.bf16.msra.mxu0 %v1299
    %1849 = vmatprep.subr.bf16.mxu0 0
    %1850 = vmatpush1.bf16.msra.mxu0 %v1300
    %1851 = vmatprep.subr.bf16.mxu0 0
    %1852 = vmatpush1.bf16.msra.mxu0 %v1301
    %1853 = vmatprep.subr.bf16.mxu0 0
    %1854 = vmatpush1.bf16.msra.mxu0 %v1302
    %1855 = vmatprep.mubr.bf16.mxu0 %v482
    %1856 = vmatmul.mubr.bf16.gmra.mrb[0].mxu0 %v481
    %v1857 = vpop.f32.mrb[0].mxu0
    %v1858 = vadd.f32 %v1818, %v1857
    %v1859 = vpop.f32.mrb[0].mxu0
    %v1860 = vpop.f32.mrb[0].mxu0
    %v1861 = vpop.f32.mrb[0].mxu0
    %1862 = vdwg.mxu0
    %v1863 = vmax.f32 %v1858, 0.0
    %v1864 = vpack.c.bf16 %v1863, %v1863
    %v1865 = vld [vmem:[%s3] sm:$0xf]
    %v1866 = vld [vmem:[%s3 + $0x4] sm:$0xf]
    %v1867 = vld [vmem:[%s3 + $0x8] sm:$0xf]
    %v1868 = vld [vmem:[%s3 + $0xc] sm:$0xf]
    %v1869 = vld [vmem:[%s3 + $0x10] sm:$0xf]
    %v1870 = vld [vmem:[%s3 + $0x14] sm:$0xf]
    %v1871 = vld [vmem:[%s3 + $0x18] sm:$0xf]
    %v1872 = vld [vmem:[%s3 + $0x1c] sm:$0xf]
    %v1873 = vld [vmem:[%s3 + $0x20] sm:$0xf]
    %v1874 = vld [vmem:[%s3 + $0x24] sm:$0xf]
    %v1875 = vld [vmem:[%s3 + $0x28] sm:$0xf]
    %v1876 = vld [vmem:[%s3 + $0x2c] sm:$0xf]
    %v1877 = vld [vmem:[%s3 + $0x30] sm:$0xf]
    %v1878 = vld [vmem:[%s3 + $0x34] sm:$0xf]
    %v1879 = vld [vmem:[%s3 + $0x38] sm:$0xf]
    %v1880 = vld [vmem:[%s3 + $0x3c] sm:$0xf]
    %v1881 = vld [vmem:[%s4] sm:$0x1]
    %v1883 = vlaneseq
    %v1884 = vshrl.u32 %v1883, 7
    %v1885 = vsub.s32 0, %v1884
    %v1886 = vrot.slane %v1881, %v1885
    %v1904 = vunpack.c.l.b16 %v1865
    %v1905 = vunpack.c.l.b16 %v1866
    %v1906 = vunpack.c.l.b16 %v1867
    %v1907 = vunpack.c.l.b16 %v1868
    %v1908 = vunpack.c.l.b16 %v1869
    %v1909 = vunpack.c.l.b16 %v1870
    %v1910 = vunpack.c.l.b16 %v1871
    %v1911 = vunpack.c.l.b16 %v1872
    %v1912 = vunpack.c.l.b16 %v1873
    %v1913 = vunpack.c.l.b16 %v1874
    %v1914 = vunpack.c.l.b16 %v1875
    %v1915 = vunpack.c.l.b16 %v1876
    %v1916 = vunpack.c.l.b16 %v1877
    %v1917 = vunpack.c.l.b16 %v1878
    %v1918 = vunpack.c.l.b16 %v1879
    %v1919 = vunpack.c.l.b16 %v1880
    %v1920 = vpack.c.b16 %v1905, %v1904
    %v1921 = vpack.c.b16 %v1907, %v1906
    %v1922 = vpack.c.b16 %v1909, %v1908
    %v1923 = vpack.c.b16 %v1911, %v1910
    %v1924 = vpack.c.b16 %v1913, %v1912
    %v1925 = vpack.c.b16 %v1915, %v1914
    %v1926 = vpack.c.b16 %v1917, %v1916
    %v1927 = vpack.c.b16 %v1919, %v1918
    %1936 = vmatprep.subr.bf16.mxu0 0
    %1937 = vmatpush1.bf16.msra.mxu0 %v1920
    %1938 = vmatprep.subr.bf16.mxu0 0
    %1939 = vmatpush1.bf16.msra.mxu0 %v1921
    %1940 = vmatprep.subr.bf16.mxu0 0
    %1941 = vmatpush1.bf16.msra.mxu0 %v1922
    %1942 = vmatprep.subr.bf16.mxu0 0
    %1943 = vmatpush1.bf16.msra.mxu0 %v1923
    %1944 = vmatprep.subr.bf16.mxu0 0
    %1945 = vmatpush1.bf16.msra.mxu0 %v1924
    %1946 = vmatprep.subr.bf16.mxu0 0
    %1947 = vmatpush1.bf16.msra.mxu0 %v1925
    %1948 = vmatprep.subr.bf16.mxu0 0
    %1949 = vmatpush1.bf16.msra.mxu0 %v1926
    %1950 = vmatprep.subr.bf16.mxu0 0
    %1951 = vmatpush1.bf16.msra.mxu0 %v1927
    %1952 = vmatprep.subr.bf16.mxu0 0
    %1953 = vmatpush1.bf16.msra.mxu0 0
    %1954 = vmatprep.subr.bf16.mxu0 0
    %1955 = vmatpush1.bf16.msra.mxu0 0
    %1956 = vmatprep.subr.bf16.mxu0 0
    %1957 = vmatpush1.bf16.msra.mxu0 0
    %1958 = vmatprep.subr.bf16.mxu0 0
    %1959 = vmatpush1.bf16.msra.mxu0 0
    %1960 = vmatprep.subr.bf16.mxu0 0
    %1961 = vmatpush1.bf16.msra.mxu0 0
    %1962 = vmatprep.subr.bf16.mxu0 0
    %1963 = vmatpush1.bf16.msra.mxu0 0
    %1964 = vmatprep.subr.bf16.mxu0 0
    %1965 = vmatpush1.bf16.msra.mxu0 0
    %1966 = vmatprep.subr.bf16.mxu0 0
    %1967 = vmatpush1.bf16.msra.mxu0 0
    %1968 = vmatprep.mubr.bf16.mxu0 0
    %1969 = vmatmul.mubr.bf16.gmra.mrb[0].mxu0 %v1864
    %v1970 = vpop.f32.mrb[0].mxu0
    %v1971 = vadd.f32 %v1886, %v1970
    %v1972 = vpop.f32.mrb[0].mxu0
    %v1973 = vpop.f32.mrb[0].mxu0
    %v1974 = vpop.f32.mrb[0].mxu0
    %1975 = vdwg.mxu0
    %v1976 = vmax.f32 %v1971, 0.0
    %v1977 = vpack.c.bf16 %v1976, %v1976
    %v1978 = vld [vmem:[%s5] sm:$0xf]
    %v1979 = vld [vmem:[%s5 + $0x4] sm:$0xf]
    %v1980 = vld [vmem:[%s5 + $0x8] sm:$0xf]
    %v1981 = vld [vmem:[%s5 + $0xc] sm:$0xf]
    %v1982 = vld [vmem:[%s5 + $0x10] sm:$0xf]
    %v1983 = vld [vmem:[%s5 + $0x14] sm:$0xf]
    %v1984 = vld [vmem:[%s5 + $0x18] sm:$0xf]
    %v1985 = vld [vmem:[%s5 + $0x1c] sm:$0xf]
    %v1986 = vld [vmem:[%s5 + $0x20] sm:$0xf]
    %v1987 = vld [vmem:[%s5 + $0x24] sm:$0xf]
    %v1988 = vld [vmem:[%s5 + $0x28] sm:$0xf]
    %v1989 = vld [vmem:[%s5 + $0x2c] sm:$0xf]
    %v1990 = vld [vmem:[%s5 + $0x30] sm:$0xf]
    %v1991 = vld [vmem:[%s5 + $0x34] sm:$0xf]
    %v1992 = vld [vmem:[%s5 + $0x38] sm:$0xf]
    %v1993 = vld [vmem:[%s5 + $0x3c] sm:$0xf]
    %v1994 = vld [vmem:[%s6] sm:$0x1]
    %v1996 = vlaneseq
    %v1997 = vshrl.u32 %v1996, 7
    %v1998 = vsub.s32 0, %v1997
    %v1999 = vrot.slane %v1994, %v1998
    %v2017 = vunpack.c.l.b16 %v1978
    %v2018 = vunpack.c.l.b16 %v1979
    %v2019 = vunpack.c.l.b16 %v1980
    %v2020 = vunpack.c.l.b16 %v1981
    %v2021 = vunpack.c.l.b16 %v1982
    %v2022 = vunpack.c.l.b16 %v1983
    %v2023 = vunpack.c.l.b16 %v1984
    %v2024 = vunpack.c.l.b16 %v1985
    %v2025 = vunpack.c.l.b16 %v1986
    %v2026 = vunpack.c.l.b16 %v1987
    %v2027 = vunpack.c.l.b16 %v1988
    %v2028 = vunpack.c.l.b16 %v1989
    %v2029 = vunpack.c.l.b16 %v1990
    %v2030 = vunpack.c.l.b16 %v1991
    %v2031 = vunpack.c.l.b16 %v1992
    %v2032 = vunpack.c.l.b16 %v1993
    %v2033 = vpack.c.b16 %v2018, %v2017
    %v2034 = vpack.c.b16 %v2020, %v2019
    %v2035 = vpack.c.b16 %v2022, %v2021
    %v2036 = vpack.c.b16 %v2024, %v2023
    %v2037 = vpack.c.b16 %v2026, %v2025
    %v2038 = vpack.c.b16 %v2028, %v2027
    %v2039 = vpack.c.b16 %v2030, %v2029
    %v2040 = vpack.c.b16 %v2032, %v2031
    %2049 = vmatprep.subr.bf16.mxu0 0
    %2050 = vmatpush1.bf16.msra.mxu0 %v2033
    %2051 = vmatprep.subr.bf16.mxu0 0
    %2052 = vmatpush1.bf16.msra.mxu0 %v2034
    %2053 = vmatprep.subr.bf16.mxu0 0
    %2054 = vmatpush1.bf16.msra.mxu0 %v2035
    %2055 = vmatprep.subr.bf16.mxu0 0
    %2056 = vmatpush1.bf16.msra.mxu0 %v2036
    %2057 = vmatprep.subr.bf16.mxu0 0
    %2058 = vmatpush1.bf16.msra.mxu0 %v2037
    %2059 = vmatprep.subr.bf16.mxu0 0
    %2060 = vmatpush1.bf16.msra.mxu0 %v2038
    %2061 = vmatprep.subr.bf16.mxu0 0
    %2062 = vmatpush1.bf16.msra.mxu0 %v2039
    %2063 = vmatprep.subr.bf16.mxu0 0
    %2064 = vmatpush1.bf16.msra.mxu0 %v2040
    %2065 = vmatprep.subr.bf16.mxu0 0
    %2066 = vmatpush1.bf16.msra.mxu0 0
    %2067 = vmatprep.subr.bf16.mxu0 0
    %2068 = vmatpush1.bf16.msra.mxu0 0
    %2069 = vmatprep.subr.bf16.mxu0 0
    %2070 = vmatpush1.bf16.msra.mxu0 0
    %2071 = vmatprep.subr.bf16.mxu0 0
    %2072 = vmatpush1.bf16.msra.mxu0 0
    %2073 = vmatprep.subr.bf16.mxu0 0
    %2074 = vmatpush1.bf16.msra.mxu0 0
    %2075 = vmatprep.subr.bf16.mxu0 0
    %2076 = vmatpush1.bf16.msra.mxu0 0
    %2077 = vmatprep.subr.bf16.mxu0 0
    %2078 = vmatpush1.bf16.msra.mxu0 0
    %2079 = vmatprep.subr.bf16.mxu0 0
    %2080 = vmatpush1.bf16.msra.mxu0 0
    %2081 = vmatprep.mubr.bf16.mxu0 0
    %2082 = vmatmul.mubr.bf16.gmra.mrb[0].mxu0 %v1977
    %v2083 = vpop.f32.mrb[0].mxu0
    %v2084 = vadd.f32 %v1999, %v2083
    %v2085 = vpop.f32.mrb[0].mxu0
    %v2086 = vpop.f32.mrb[0].mxu0
    %v2087 = vpop.f32.mrb[0].mxu0
    %2088 = vdwg.mxu0
    %vm2089 = vcmask 58368
    %2090 = vst.msk [vmem:[#allocation2] sm:$0x3] %vm2089, %v2084
    // Predicated region
    $region30: #{custom_cnn_forward.3} parent=1 // pred_check
      _
    $region31: #{custom_cnn_forward.3} parent=1 // pred_check_branch
      %2092 = sbr.rel (0) target = $region33
    $region32: #{custom_cnn_forward.3} parent=1 // pred_region
      %s2094 = ssub.s32 32, 32
      %2095 = vsyncadd [#allocation3], %s2094
      %s2097 = sshll.u32 [#allocation2], 4
      %s2098 = int_to_ptr.vmem [resolvable:$true] %s2097
      %2100 = dma.vmem_to_hbm [thread:$0]  %s2098, 32, %s7, [#allocation3]
    $region33: #{custom_cnn_forward.3} parent=1 // pred_fallthru
      _
    // Predicated region
    $region34: #{custom_cnn_forward.3} parent=1 // pred_check
      _
    $region35: #{custom_cnn_forward.3} parent=1 // pred_check_branch
      %2102 = sbr.rel (0) target = $region37
    $region36: #{custom_cnn_forward.3} parent=1 // pred_region
      %2103 = dma.done [#allocation3], 32
    $region37: #{custom_cnn_forward.3} parent=1 // pred_fallthru
      _
    %2104 = vsyncpa [#allocation3], 1

</llo_original>
